<compile_context>
chip_gen: v5e
topology: v5e:2x2
jax: 0.10.0
libtpu: 0.0.40
codegen_flags: <defaults>
</compile_context>

<pallas_src>
import jax
import jax.numpy as jnp
from jax.experimental import pallas as pl
from jax.experimental.pallas import tpu as pltpu

PAD_IDX = 0          # glove.pad_idx (padding row / padding value)
ATT_EPS = 1e-10      # epsilon in the AttLayer softmax denominator


def _round_up(x, m):
    return (x + m - 1) // m * m


def _pad_gates(w, h, hp):
    """(rows, 3*h) -> (rows, 3*hp): each gate chunk placed at g*hp, zero padded."""
    parts = [jnp.pad(w[:, g * h:(g + 1) * h], ((0, 0), (0, hp - h)))
             for g in range(3)]
    return jnp.concatenate(parts, axis=1)


def _glove_encoder_kernel(tile_max_ref,                       # SMEM (nb,) i32 (scalar prefetch)
                          emb_ref, len_ref,
                          w_ih_ref, w_hh_ref, b_gi_ref, b_hn_ref,
                          w_att_ref, b_att_ref, u_att_ref,
                          out_ref,
                          h_scr, num_scr, den_scr, gi_scr, out_scr):
    Tb, Bt, E = emb_ref.shape
    Hp = h_scr.shape[1]
    b_idx = pl.program_id(0)
    t_idx = pl.program_id(1)
    nt = pl.num_programs(1)
    t0 = t_idx * Tb

    @pl.when(t_idx == 0)
    def _init():
        h_scr[...] = jnp.zeros_like(h_scr)
        num_scr[...] = jnp.zeros_like(num_scr)
        den_scr[...] = jnp.zeros_like(den_scr)

    # Skip time blocks that lie entirely past every sentence in this batch tile.
    @pl.when(t0 < tile_max_ref[b_idx])
    def _body():
        # ---- hoisted input projection (with folded b_ih + b_hh[r,z]) ----
        x_blk = emb_ref[...].reshape(Tb * Bt, E)
        gi_scr[...] = (jnp.dot(x_blk, w_ih_ref[...],
                               preferred_element_type=jnp.float32)
                       + b_gi_ref[...]).reshape(Tb, Bt, 3 * Hp)

        b_hn = jnp.broadcast_to(b_hn_ref[...], (Bt, Hp))    # hoisted broadcast
        len_v = len_ref[...]                                 # (Bt, 1) i32, hoisted load

        # ---- recurrence: only h @ w_hh + gate math on the serial chain ----
        h = h_scr[...]
        for s in range(Tb):                                  # static unroll
            gi = gi_scr[s]                                   # (Bt, 3Hp)
            gh = jnp.dot(h, w_hh_ref[...],
                         preferred_element_type=jnp.float32)
            rz = jax.nn.sigmoid(gi[:, :2 * Hp] + gh[:, :2 * Hp])
            r = rz[:, :Hp]
            z = rz[:, Hp:]
            n = jnp.tanh(gi[:, 2 * Hp:] + r * (gh[:, 2 * Hp:] + b_hn))
            h_new = (1.0 - z) * n + z * h
            valid = ((t0 + s) < len_v).astype(jnp.float32)   # (Bt, 1)
            h = valid * h_new + (1.0 - valid) * h            # freeze past length
            out_scr[s] = valid * h_new                       # pad value (PAD_IDX==0) otherwise
        h_scr[...] = h

        # ---- batched attention over the whole time block ----
        out_flat = out_scr[...].reshape(Tb * Bt, Hp)
        nz = (out_flat != jnp.float32(PAD_IDX)).astype(jnp.float32)
        out_flat = out_flat * nz                             # pad_mask * padded
        seq_m = (jnp.sum(nz, axis=-1, keepdims=True) > 0.0).astype(jnp.float32)
        uit = jnp.tanh(jnp.dot(out_flat, w_att_ref[...],
                               preferred_element_type=jnp.float32)
                       + b_att_ref[...])
        logit = jnp.sum(uit * u_att_ref[...], axis=-1, keepdims=True)  # replaces (H,1) matmul
        a = jnp.exp(logit) * seq_m                           # (Tb*Bt, 1)
        num_scr[...] += jnp.sum((out_flat * a).reshape(Tb, Bt, Hp), axis=0)
        den_scr[...] += jnp.sum(a.reshape(Tb, Bt, 1), axis=0)

    @pl.when(t_idx == nt - 1)
    def _fin():
        out_ref[...] = num_scr[...] / (den_scr[...] + jnp.float32(ATT_EPS))


def glove_encoder_forward(input_ids_tb, lengths, embedding_matrix, params,
                          *, b_tile=8, t_blk=8):
    """input_ids_tb: (T, B) int32 (same orientation as sentences['input_ids'])."""
    T, B = input_ids_tb.shape
    E = embedding_matrix.shape[1]
    H = params["w_hh"].shape[0]
    Hp = _round_up(H, 128)                 # lane-pad hidden dim (per gate)

    # Pad batch / time to whole tiles (padding rows get length 0, padding steps
    # are past every length, so they never contribute).
    Tp = _round_up(T, t_blk)
    Bp = _round_up(B, b_tile)
    ids = jnp.pad(input_ids_tb.astype(jnp.int32),
                  ((0, Tp - T), (0, Bp - B)), constant_values=PAD_IDX)
    lens = jnp.pad(lengths.astype(jnp.int32), (0, Bp - B))

    # Time-major embedding gather directly from (T, B) ids -> (Tp, Bp, E); no
    # extra HBM transpose of the biggest tensor.
    # TODO(synk): the vocab-table gather stays an XLA op (data-dependent HBM
    # gather; the table generally does not fit in VMEM).
    emb = jnp.take(embedding_matrix.astype(jnp.float32), ids, axis=0)

    # Lane-pad weights (zeros in padded rows/cols keep padded lanes of h at 0).
    w_ih = _pad_gates(params["w_ih"].astype(jnp.float32), H, Hp)              # (E, 3Hp)
    w_hh = jnp.pad(_pad_gates(params["w_hh"].astype(jnp.float32), H, Hp),
                   ((0, Hp - H), (0, 0)))                                     # (Hp, 3Hp)
    b_ih = _pad_gates(params["b_ih"].astype(jnp.float32), H, Hp)              # (1, 3Hp)
    b_hh = _pad_gates(params["b_hh"].astype(jnp.float32), H, Hp)              # (1, 3Hp)
    # Fold b_ih and the r/z recurrent biases into the hoisted input projection;
    # only the n-gate recurrent bias stays on the per-step serial chain.
    b_gi = b_ih + jnp.concatenate(
        [b_hh[:, :2 * Hp], jnp.zeros((1, Hp), jnp.float32)], axis=1)          # (1, 3Hp)
    b_hn = b_hh[:, 2 * Hp:]                                                   # (1, Hp)
    w_att = jnp.pad(params["w_att"].astype(jnp.float32),
                    ((0, Hp - H), (0, Hp - H)))                               # (Hp, Hp)
    b_att = jnp.pad(params["b_att"].astype(jnp.float32), ((0, 0), (0, Hp - H)))  # (1, Hp)
    u_att = jnp.pad(params["u_att"].astype(jnp.float32).T, ((0, 0), (0, Hp - H)))  # (1, Hp)

    nb = Bp // b_tile
    nt = Tp // t_blk
    tile_max = jnp.max(lens.reshape(nb, b_tile), axis=1).astype(jnp.int32)    # (nb,)

    out = pl.pallas_call(
        _glove_encoder_kernel,
        out_shape=jax.ShapeDtypeStruct((Bp, Hp), jnp.float32),
        grid_spec=pltpu.PrefetchScalarGridSpec(
            num_scalar_prefetch=1,
            grid=(nb, nt),
            in_specs=[
                pl.BlockSpec((t_blk, b_tile, E), lambda i, t, tm: (t, i, 0)),  # embeddings
                pl.BlockSpec((b_tile, 1),        lambda i, t, tm: (i, 0)),     # lengths
                pl.BlockSpec((E, 3 * Hp),        lambda i, t, tm: (0, 0)),     # w_ih
                pl.BlockSpec((Hp, 3 * Hp),       lambda i, t, tm: (0, 0)),     # w_hh
                pl.BlockSpec((1, 3 * Hp),        lambda i, t, tm: (0, 0)),     # b_gi (folded)
                pl.BlockSpec((1, Hp),            lambda i, t, tm: (0, 0)),     # b_hn
                pl.BlockSpec((Hp, Hp),           lambda i, t, tm: (0, 0)),     # w_att
                pl.BlockSpec((1, Hp),            lambda i, t, tm: (0, 0)),     # b_att
                pl.BlockSpec((1, Hp),            lambda i, t, tm: (0, 0)),     # u_att^T
            ],
            out_specs=pl.BlockSpec((b_tile, Hp), lambda i, t, tm: (i, 0)),
            scratch_shapes=[
                pltpu.VMEM((b_tile, Hp), jnp.float32),            # GRU hidden state
                pltpu.VMEM((b_tile, Hp), jnp.float32),            # attention numerator
                pltpu.VMEM((b_tile, 1), jnp.float32),             # attention denominator
                pltpu.VMEM((t_blk, b_tile, 3 * Hp), jnp.float32), # hoisted input projection
                pltpu.VMEM((t_blk, b_tile, Hp), jnp.float32),     # per-block GRU outputs
            ]),
        compiler_params=pltpu.CompilerParams(
            dimension_semantics=("parallel", "arbitrary")),
    )(tile_max, emb, lens.reshape(Bp, 1),
      w_ih, w_hh, b_gi, b_hn, w_att, b_att, u_att)

    return out[:B, :H]


def _reference(input_ids_tb, lengths, embedding_matrix, params):
    """Pure-JAX mirror of the PyTorch forward, for a sanity check."""
    inp_bt = input_ids_tb.T
    emb = jnp.take(embedding_matrix, inp_bt, axis=0)          # (B, T, E)
    B, T, _ = emb.shape
    H = params["w_hh"].shape[0]
    h = jnp.zeros((B, H), jnp.float32)
    outs = []
    for t in range(T):
        x_t = emb[:, t, :]
        gi = x_t @ params["w_ih"] + params["b_ih"]
        gh = h @ params["w_hh"] + params["b_hh"]
        r = jax.nn.sigmoid(gi[:, :H] + gh[:, :H])
        z = jax.nn.sigmoid(gi[:, H:2 * H] + gh[:, H:2 * H])
        n = jnp.tanh(gi[:, 2 * H:] + r * gh[:, 2 * H:])
        h_new = (1 - z) * n + z * h
        valid = (t < lengths).astype(jnp.float32)[:, None]
        h = valid * h_new + (1 - valid) * h
        outs.append(valid * h_new + (1 - valid) * PAD_IDX)
    padded = jnp.stack(outs, axis=1)                          # (B, T, H)
    elem_mask = (padded != float(PAD_IDX)).astype(jnp.float32)
    padded = padded * elem_mask
    seq_mask = jnp.any(elem_mask != 0, axis=-1).astype(jnp.float32)[..., None]
    uit = jnp.tanh(padded @ params["w_att"] + params["b_att"])
    ait = jnp.exp(uit @ params["u_att"]) * seq_mask
    ait = ait / (jnp.sum(ait, axis=1, keepdims=True) + ATT_EPS)
    return jnp.sum(padded * ait, axis=1)


if __name__ == "__main__":
    V, E, H = 50, 32, 32      # vocab, embedding dim, GRU hidden dim
    T, B = 16, 16             # max sequence length, batch  -> grid (2, 2)

    key = jax.random.PRNGKey(0)
    ks = jax.random.split(key, 10)
    embedding_matrix = jax.random.uniform(ks[0], (V, E), jnp.float32, -0.5, 0.5)
    params = {
        "w_ih":  jax.random.uniform(ks[1], (E, 3 * H), jnp.float32, -0.1, 0.1),
        "w_hh":  jax.random.uniform(ks[2], (H, 3 * H), jnp.float32, -0.1, 0.1),
        "b_ih":  jax.random.uniform(ks[3], (1, 3 * H), jnp.float32, -0.1, 0.1),
        "b_hh":  jax.random.uniform(ks[4], (1, 3 * H), jnp.float32, -0.1, 0.1),
        "w_att": jax.random.uniform(ks[5], (H, H),     jnp.float32, -0.1, 0.1),
        "b_att": jax.random.uniform(ks[6], (1, H),     jnp.float32, -0.1, 0.1),
        "u_att": jax.random.uniform(ks[7], (H, 1),     jnp.float32, -0.1, 0.1),
    }

    # Second batch tile (rows 8..15) has max length 8 -> its second time block
    # is skipped entirely via the scalar-prefetched tile_max.
    lengths = jnp.array([16, 11, 9, 16, 3, 12, 14, 5,
                         8,  4,  7,  2, 8,  6,  1, 3], dtype=jnp.int32)
    input_ids = jax.random.randint(ks[8], (T, B), 1, V, dtype=jnp.int32)  # (seq, batch)
    tpos = jnp.arange(T)[:, None]
    input_ids = jnp.where(tpos < lengths[None, :], input_ids, PAD_IDX)

    out = glove_encoder_forward(input_ids, lengths, embedding_matrix, params)
    out = jax.block_until_ready(out)

    ref = _reference(input_ids, lengths, embedding_matrix, params)
    assert out.shape == (B, H)
    assert jnp.allclose(out, ref, atol=2e-3, rtol=2e-3), "mismatch vs reference"

    print("KERNEL_OK")
</pallas_src>

<mosaic_0001>
module attributes {stable_mosaic.version = 11 : i64} {
  func.func @_glove_encoder_kernel(%arg0: i32, %arg1: i32, %arg2: memref<2xi32, #tpu.memory_space<smem>>, %arg3: memref<8x8x32xf32, #tpu.memory_space<vmem>>, %arg4: memref<8x1xi32, #tpu.memory_space<vmem>>, %arg5: memref<32x384xf32, #tpu.memory_space<vmem>>, %arg6: memref<128x384xf32, #tpu.memory_space<vmem>>, %arg7: memref<1x384xf32, #tpu.memory_space<vmem>>, %arg8: memref<1x128xf32, #tpu.memory_space<vmem>>, %arg9: memref<128x128xf32, #tpu.memory_space<vmem>>, %arg10: memref<1x128xf32, #tpu.memory_space<vmem>>, %arg11: memref<1x128xf32, #tpu.memory_space<vmem>>, %arg12: memref<8x128xf32, #tpu.memory_space<vmem>>, %arg13: memref<8x128xf32, #tpu.memory_space<vmem>>, %arg14: memref<8x128xf32, #tpu.memory_space<vmem>>, %arg15: memref<8x1xf32, #tpu.memory_space<vmem>>, %arg16: memref<8x8x384xf32, #tpu.memory_space<vmem>>, %arg17: memref<8x8x128xf32, #tpu.memory_space<vmem>>) attributes {dimension_semantics = [#tpu.dimension_semantics<parallel>, #tpu.dimension_semantics<arbitrary>], iteration_bounds = array<i64: 2, 2>, scalar_prefetch = 1 : i64, scratch_operands = 5 : i64, tpu.core_type = #tpu.core_type<tc>, window_params = [{transform_indices = @transform_0, window_bounds = array<i64: 8, 8, 32>}, {transform_indices = @transform_1, window_bounds = array<i64: 8, 1>}, {pipeline_mode = #tpu.pipeline_mode<synchronous>, transform_indices = @transform_2, window_bounds = array<i64: 32, 384>}, {pipeline_mode = #tpu.pipeline_mode<synchronous>, transform_indices = @transform_3, window_bounds = array<i64: 128, 384>}, {pipeline_mode = #tpu.pipeline_mode<synchronous>, transform_indices = @transform_4, window_bounds = array<i64: 1, 384>}, {pipeline_mode = #tpu.pipeline_mode<synchronous>, transform_indices = @transform_5, window_bounds = array<i64: 1, 128>}, {pipeline_mode = #tpu.pipeline_mode<synchronous>, transform_indices = @transform_6, window_bounds = array<i64: 128, 128>}, {pipeline_mode = #tpu.pipeline_mode<synchronous>, transform_indices = @transform_7, window_bounds = array<i64: 1, 128>}, {pipeline_mode = #tpu.pipeline_mode<synchronous>, transform_indices = @transform_8, window_bounds = array<i64: 1, 128>}, {transform_indices = @transform_9, window_bounds = array<i64: 8, 128>}]} {
    %c8_i32 = arith.constant 8 : i32
    %0 = arith.muli %arg1, %c8_i32 : i32
    %c0_i32 = arith.constant 0 : i32
    %1 = arith.cmpi eq, %arg1, %c0_i32 : i32
    %2 = arith.extui %1 : i1 to i32
    %c0_i32_0 = arith.constant 0 : i32
    %3 = arith.cmpi ne, %2, %c0_i32_0 : i32
    scf.if %3 {
      %cst = arith.constant 0.000000e+00 : f32
      %12 = vector.broadcast %cst : f32 to vector<8x128xf32>
      %c0 = arith.constant 0 : index
      %c0_3 = arith.constant 0 : index
      %13 = vector.load %arg13[%c0, %c0_3] : memref<8x128xf32, #tpu.memory_space<vmem>>, vector<8x128xf32>
      tpu.vector_store %arg13[%c0, %c0_3], %12 {strides = array<i32>} : memref<8x128xf32, #tpu.memory_space<vmem>>, vector<8x128xf32>,
      %cst_4 = arith.constant 0.000000e+00 : f32
      %14 = vector.broadcast %cst_4 : f32 to vector<8x128xf32>
      %c0_5 = arith.constant 0 : index
      %c0_6 = arith.constant 0 : index
      %15 = vector.load %arg14[%c0_5, %c0_6] : memref<8x128xf32, #tpu.memory_space<vmem>>, vector<8x128xf32>
      tpu.vector_store %arg14[%c0_5, %c0_6], %14 {strides = array<i32>} : memref<8x128xf32, #tpu.memory_space<vmem>>, vector<8x128xf32>,
      %cst_7 = arith.constant 0.000000e+00 : f32
      %16 = vector.broadcast %cst_7 : f32 to vector<8x1xf32>
      %c0_8 = arith.constant 0 : index
      %c0_9 = arith.constant 0 : index
      %17 = vector.load %arg15[%c0_8, %c0_9] : memref<8x1xf32, #tpu.memory_space<vmem>>, vector<8x1xf32>
      tpu.vector_store %arg15[%c0_8, %c0_9], %16 {strides = array<i32>} : memref<8x1xf32, #tpu.memory_space<vmem>>, vector<8x1xf32>,
    } else {
    }
    %4 = arith.index_cast %arg0 : i32 to index
    %5 = memref.load %arg2[%4] : memref<2xi32, #tpu.memory_space<smem>>
    %6 = arith.cmpi slt, %0, %5 : i32
    %7 = arith.extui %6 : i1 to i32
    %c0_i32_1 = arith.constant 0 : i32
    %8 = arith.cmpi ne, %7, %c0_i32_1 : i32
    scf.if %8 {
      %c0 = arith.constant 0 : index
      %c0_3 = arith.constant 0 : index
      %c0_4 = arith.constant 0 : index
      %12 = vector.load %arg3[%c0, %c0_3, %c0_4] : memref<8x8x32xf32, #tpu.memory_space<vmem>>, vector<8x8x32xf32>
      %13 = vector.shape_cast %12 : vector<8x8x32xf32> to vector<64x32xf32>
      %c0_5 = arith.constant 0 : index
      %c0_6 = arith.constant 0 : index
      %14 = vector.load %arg5[%c0_5, %c0_6] : memref<32x384xf32, #tpu.memory_space<vmem>>, vector<32x384xf32>
      %cst = arith.constant dense<0.000000e+00> : vector<64x384xf32>
      %15 = tpu.matmul %13, %14, %cst {dimension_numbers = #tpu.dot_dimension_numbers<[1], [0], [0], [1], [0, 0, 1, 1], [], []>} : vector<64x32xf32>, vector<32x384xf32>, vector<64x384xf32> -> vector<64x384xf32>
      %c0_7 = arith.constant 0 : index
      %c0_8 = arith.constant 0 : index
      %16 = vector.load %arg7[%c0_7, %c0_8] : memref<1x384xf32, #tpu.memory_space<vmem>>, vector<1x384xf32>
      %17 = vector.broadcast %16 : vector<1x384xf32> to vector<64x384xf32>
      %18 = arith.addf %15, %17 : vector<64x384xf32>
      %19 = vector.shape_cast %18 : vector<64x384xf32> to vector<8x8x384xf32>
      %c0_9 = arith.constant 0 : index
      %c0_10 = arith.constant 0 : index
      %c0_11 = arith.constant 0 : index
      %20 = vector.load %arg16[%c0_9, %c0_10, %c0_11] : memref<8x8x384xf32, #tpu.memory_space<vmem>>, vector<8x8x384xf32>
      tpu.vector_store %arg16[%c0_9, %c0_10, %c0_11], %19 {strides = array<i32>} : memref<8x8x384xf32, #tpu.memory_space<vmem>>, vector<8x8x384xf32>,
      %c0_12 = arith.constant 0 : index
      %c0_13 = arith.constant 0 : index
      %21 = vector.load %arg8[%c0_12, %c0_13] : memref<1x128xf32, #tpu.memory_space<vmem>>, vector<1x128xf32>
      %22 = vector.shape_cast %21 : vector<1x128xf32> to vector<1x128xf32>
      %23 = vector.broadcast %22 : vector<1x128xf32> to vector<8x128xf32>
      %c0_14 = arith.constant 0 : index
      %c0_15 = arith.constant 0 : index
      %24 = vector.load %arg4[%c0_14, %c0_15] : memref<8x1xi32, #tpu.memory_space<vmem>>, vector<8x1xi32>
      %c0_16 = arith.constant 0 : index
      %c0_17 = arith.constant 0 : index
      %25 = vector.load %arg13[%c0_16, %c0_17] : memref<8x128xf32, #tpu.memory_space<vmem>>, vector<8x128xf32>
      %c0_18 = arith.constant 0 : index
      %c0_19 = arith.constant 0 : index
      %c0_20 = arith.constant 0 : index
      %26 = vector.load %arg16[%c0_18, %c0_19, %c0_20] : memref<8x8x384xf32, #tpu.memory_space<vmem>>, vector<1x8x384xf32>
      %27 = vector.shape_cast %26 : vector<1x8x384xf32> to vector<8x384xf32>
      %c0_21 = arith.constant 0 : index
      %c0_22 = arith.constant 0 : index
      %28 = vector.load %arg6[%c0_21, %c0_22] : memref<128x384xf32, #tpu.memory_space<vmem>>, vector<128x384xf32>
      %cst_23 = arith.constant dense<0.000000e+00> : vector<8x384xf32>
      %29 = tpu.matmul %25, %28, %cst_23 {dimension_numbers = #tpu.dot_dimension_numbers<[1], [0], [0], [1], [0, 0, 1, 1], [], []>} : vector<8x128xf32>, vector<128x384xf32>, vector<8x384xf32> -> vector<8x384xf32>
      %30 = vector.extract_strided_slice %27 {offsets = [0, 0], sizes = [8, 256], strides = [1, 1]} : vector<8x384xf32> to vector<8x256xf32>
      %31 = vector.extract_strided_slice %29 {offsets = [0, 0], sizes = [8, 256], strides = [1, 1]} : vector<8x384xf32> to vector<8x256xf32>
      %32 = arith.addf %30, %31 : vector<8x256xf32>
      %33 = arith.negf %32 : vector<8x256xf32>
      %34 = math.exp %33 : vector<8x256xf32>
      %cst_24 = arith.constant 1.000000e+00 : f32
      %35 = vector.broadcast %cst_24 : f32 to vector<8x256xf32>
      %36 = arith.addf %35, %34 : vector<8x256xf32>
      %37 = arith.divf %35, %36 : vector<8x256xf32>
      %38 = vector.extract_strided_slice %37 {offsets = [0, 0], sizes = [8, 128], strides = [1, 1]} : vector<8x256xf32> to vector<8x128xf32>
      %39 = vector.extract_strided_slice %37 {offsets = [0, 128], sizes = [8, 128], strides = [1, 1]} : vector<8x256xf32> to vector<8x128xf32>
      %40 = vector.extract_strided_slice %27 {offsets = [0, 256], sizes = [8, 128], strides = [1, 1]} : vector<8x384xf32> to vector<8x128xf32>
      %41 = vector.extract_strided_slice %29 {offsets = [0, 256], sizes = [8, 128], strides = [1, 1]} : vector<8x384xf32> to vector<8x128xf32>
      %42 = arith.addf %41, %23 : vector<8x128xf32>
      %43 = arith.mulf %38, %42 : vector<8x128xf32>
      %44 = arith.addf %40, %43 : vector<8x128xf32>
      %45 = math.tanh %44 : vector<8x128xf32>
      %cst_25 = arith.constant 1.000000e+00 : f32
      %46 = vector.broadcast %cst_25 : f32 to vector<8x128xf32>
      %47 = arith.subf %46, %39 : vector<8x128xf32>
      %48 = arith.mulf %47, %45 : vector<8x128xf32>
      %49 = arith.mulf %39, %25 : vector<8x128xf32>
      %50 = arith.addf %48, %49 : vector<8x128xf32>
      %c0_i32_26 = arith.constant 0 : i32
      %51 = arith.addi %0, %c0_i32_26 : i32
      %52 = vector.broadcast %51 : i32 to vector<8x1xi32>
      %53 = arith.cmpi slt, %52, %24 : vector<8x1xi32>
      %54 = arith.extui %53 : vector<8x1xi1> to vector<8x1xi32>
      %55 = arith.sitofp %54 : vector<8x1xi32> to vector<8x1xf32>
      %56 = vector.broadcast %55 : vector<8x1xf32> to vector<8x128xf32>
      %57 = arith.mulf %56, %50 : vector<8x128xf32>
      %cst_27 = arith.constant 1.000000e+00 : f32
      %58 = vector.broadcast %cst_27 : f32 to vector<8x1xf32>
      %59 = arith.subf %58, %55 : vector<8x1xf32>
      %60 = vector.broadcast %59 : vector<8x1xf32> to vector<8x128xf32>
      %61 = arith.mulf %60, %25 : vector<8x128xf32>
      %62 = arith.addf %57, %61 : vector<8x128xf32>
      %63 = vector.broadcast %55 : vector<8x1xf32> to vector<8x128xf32>
      %64 = arith.mulf %63, %50 : vector<8x128xf32>
      %c0_28 = arith.constant 0 : index
      %c0_29 = arith.constant 0 : index
      %c0_30 = arith.constant 0 : index
      %65 = vector.load %arg17[%c0_28, %c0_29, %c0_30] : memref<8x8x128xf32, #tpu.memory_space<vmem>>, vector<1x8x128xf32>
      %66 = vector.shape_cast %65 : vector<1x8x128xf32> to vector<8x128xf32>
      %67 = vector.shape_cast %64 : vector<8x128xf32> to vector<1x8x128xf32>
      tpu.vector_store %arg17[%c0_28, %c0_29, %c0_30], %67 {strides = array<i32>} : memref<8x8x128xf32, #tpu.memory_space<vmem>>, vector<1x8x128xf32>,
      %c1 = arith.constant 1 : index
      %c0_31 = arith.constant 0 : index
      %c0_32 = arith.constant 0 : index
      %68 = vector.load %arg16[%c1, %c0_31, %c0_32] : memref<8x8x384xf32, #tpu.memory_space<vmem>>, vector<1x8x384xf32>
      %69 = vector.shape_cast %68 : vector<1x8x384xf32> to vector<8x384xf32>
      %c0_33 = arith.constant 0 : index
      %c0_34 = arith.constant 0 : index
      %70 = vector.load %arg6[%c0_33, %c0_34] : memref<128x384xf32, #tpu.memory_space<vmem>>, vector<128x384xf32>
      %cst_35 = arith.constant dense<0.000000e+00> : vector<8x384xf32>
      %71 = tpu.matmul %62, %70, %cst_35 {dimension_numbers = #tpu.dot_dimension_numbers<[1], [0], [0], [1], [0, 0, 1, 1], [], []>} : vector<8x128xf32>, vector<128x384xf32>, vector<8x384xf32> -> vector<8x384xf32>
      %72 = vector.extract_strided_slice %69 {offsets = [0, 0], sizes = [8, 256], strides = [1, 1]} : vector<8x384xf32> to vector<8x256xf32>
      %73 = vector.extract_strided_slice %71 {offsets = [0, 0], sizes = [8, 256], strides = [1, 1]} : vector<8x384xf32> to vector<8x256xf32>
      %74 = arith.addf %72, %73 : vector<8x256xf32>
      %75 = arith.negf %74 : vector<8x256xf32>
      %76 = math.exp %75 : vector<8x256xf32>
      %cst_36 = arith.constant 1.000000e+00 : f32
      %77 = vector.broadcast %cst_36 : f32 to vector<8x256xf32>
      %78 = arith.addf %77, %76 : vector<8x256xf32>
      %79 = arith.divf %77, %78 : vector<8x256xf32>
      %80 = vector.extract_strided_slice %79 {offsets = [0, 0], sizes = [8, 128], strides = [1, 1]} : vector<8x256xf32> to vector<8x128xf32>
      %81 = vector.extract_strided_slice %79 {offsets = [0, 128], sizes = [8, 128], strides = [1, 1]} : vector<8x256xf32> to vector<8x128xf32>
      %82 = vector.extract_strided_slice %69 {offsets = [0, 256], sizes = [8, 128], strides = [1, 1]} : vector<8x384xf32> to vector<8x128xf32>
      %83 = vector.extract_strided_slice %71 {offsets = [0, 256], sizes = [8, 128], strides = [1, 1]} : vector<8x384xf32> to vector<8x128xf32>
      %84 = arith.addf %83, %23 : vector<8x128xf32>
      %85 = arith.mulf %80, %84 : vector<8x128xf32>
      %86 = arith.addf %82, %85 : vector<8x128xf32>
      %87 = math.tanh %86 : vector<8x128xf32>
      %cst_37 = arith.constant 1.000000e+00 : f32
      %88 = vector.broadcast %cst_37 : f32 to vector<8x128xf32>
      %89 = arith.subf %88, %81 : vector<8x128xf32>
      %90 = arith.mulf %89, %87 : vector<8x128xf32>
      %91 = arith.mulf %81, %62 : vector<8x128xf32>
      %92 = arith.addf %90, %91 : vector<8x128xf32>
      %c1_i32_38 = arith.constant 1 : i32
      %93 = arith.addi %0, %c1_i32_38 : i32
      %94 = vector.broadcast %93 : i32 to vector<8x1xi32>
      %95 = arith.cmpi slt, %94, %24 : vector<8x1xi32>
      %96 = arith.extui %95 : vector<8x1xi1> to vector<8x1xi32>
      %97 = arith.sitofp %96 : vector<8x1xi32> to vector<8x1xf32>
      %98 = vector.broadcast %97 : vector<8x1xf32> to vector<8x128xf32>
      %99 = arith.mulf %98, %92 : vector<8x128xf32>
      %cst_39 = arith.constant 1.000000e+00 : f32
      %100 = vector.broadcast %cst_39 : f32 to vector<8x1xf32>
      %101 = arith.subf %100, %97 : vector<8x1xf32>
      %102 = vector.broadcast %101 : vector<8x1xf32> to vector<8x128xf32>
      %103 = arith.mulf %102, %62 : vector<8x128xf32>
      %104 = arith.addf %99, %103 : vector<8x128xf32>
      %105 = vector.broadcast %97 : vector<8x1xf32> to vector<8x128xf32>
      %106 = arith.mulf %105, %92 : vector<8x128xf32>
      %c1_40 = arith.constant 1 : index
      %c0_41 = arith.constant 0 : index
      %c0_42 = arith.constant 0 : index
      %107 = vector.load %arg17[%c1_40, %c0_41, %c0_42] : memref<8x8x128xf32, #tpu.memory_space<vmem>>, vector<1x8x128xf32>
      %108 = vector.shape_cast %107 : vector<1x8x128xf32> to vector<8x128xf32>
      %109 = vector.shape_cast %106 : vector<8x128xf32> to vector<1x8x128xf32>
      tpu.vector_store %arg17[%c1_40, %c0_41, %c0_42], %109 {strides = array<i32>} : memref<8x8x128xf32, #tpu.memory_space<vmem>>, vector<1x8x128xf32>,
      %c2 = arith.constant 2 : index
      %c0_43 = arith.constant 0 : index
      %c0_44 = arith.constant 0 : index
      %110 = vector.load %arg16[%c2, %c0_43, %c0_44] : memref<8x8x384xf32, #tpu.memory_space<vmem>>, vector<1x8x384xf32>
      %111 = vector.shape_cast %110 : vector<1x8x384xf32> to vector<8x384xf32>
      %c0_45 = arith.constant 0 : index
      %c0_46 = arith.constant 0 : index
      %112 = vector.load %arg6[%c0_45, %c0_46] : memref<128x384xf32, #tpu.memory_space<vmem>>, vector<128x384xf32>
      %cst_47 = arith.constant dense<0.000000e+00> : vector<8x384xf32>
      %113 = tpu.matmul %104, %112, %cst_47 {dimension_numbers = #tpu.dot_dimension_numbers<[1], [0], [0], [1], [0, 0, 1, 1], [], []>} : vector<8x128xf32>, vector<128x384xf32>, vector<8x384xf32> -> vector<8x384xf32>
      %114 = vector.extract_strided_slice %111 {offsets = [0, 0], sizes = [8, 256], strides = [1, 1]} : vector<8x384xf32> to vector<8x256xf32>
      %115 = vector.extract_strided_slice %113 {offsets = [0, 0], sizes = [8, 256], strides = [1, 1]} : vector<8x384xf32> to vector<8x256xf32>
      %116 = arith.addf %114, %115 : vector<8x256xf32>
      %117 = arith.negf %116 : vector<8x256xf32>
      %118 = math.exp %117 : vector<8x256xf32>
      %cst_48 = arith.constant 1.000000e+00 : f32
      %119 = vector.broadcast %cst_48 : f32 to vector<8x256xf32>
      %120 = arith.addf %119, %118 : vector<8x256xf32>
      %121 = arith.divf %119, %120 : vector<8x256xf32>
      %122 = vector.extract_strided_slice %121 {offsets = [0, 0], sizes = [8, 128], strides = [1, 1]} : vector<8x256xf32> to vector<8x128xf32>
      %123 = vector.extract_strided_slice %121 {offsets = [0, 128], sizes = [8, 128], strides = [1, 1]} : vector<8x256xf32> to vector<8x128xf32>
      %124 = vector.extract_strided_slice %111 {offsets = [0, 256], sizes = [8, 128], strides = [1, 1]} : vector<8x384xf32> to vector<8x128xf32>
      %125 = vector.extract_strided_slice %113 {offsets = [0, 256], sizes = [8, 128], strides = [1, 1]} : vector<8x384xf32> to vector<8x128xf32>
      %126 = arith.addf %125, %23 : vector<8x128xf32>
      %127 = arith.mulf %122, %126 : vector<8x128xf32>
      %128 = arith.addf %124, %127 : vector<8x128xf32>
      %129 = math.tanh %128 : vector<8x128xf32>
      %cst_49 = arith.constant 1.000000e+00 : f32
      %130 = vector.broadcast %cst_49 : f32 to vector<8x128xf32>
      %131 = arith.subf %130, %123 : vector<8x128xf32>
      %132 = arith.mulf %131, %129 : vector<8x128xf32>
      %133 = arith.mulf %123, %104 : vector<8x128xf32>
      %134 = arith.addf %132, %133 : vector<8x128xf32>
      %c2_i32 = arith.constant 2 : i32
      %135 = arith.addi %0, %c2_i32 : i32
      %136 = vector.broadcast %135 : i32 to vector<8x1xi32>
      %137 = arith.cmpi slt, %136, %24 : vector<8x1xi32>
      %138 = arith.extui %137 : vector<8x1xi1> to vector<8x1xi32>
      %139 = arith.sitofp %138 : vector<8x1xi32> to vector<8x1xf32>
      %140 = vector.broadcast %139 : vector<8x1xf32> to vector<8x128xf32>
      %141 = arith.mulf %140, %134 : vector<8x128xf32>
      %cst_50 = arith.constant 1.000000e+00 : f32
      %142 = vector.broadcast %cst_50 : f32 to vector<8x1xf32>
      %143 = arith.subf %142, %139 : vector<8x1xf32>
      %144 = vector.broadcast %143 : vector<8x1xf32> to vector<8x128xf32>
      %145 = arith.mulf %144, %104 : vector<8x128xf32>
      %146 = arith.addf %141, %145 : vector<8x128xf32>
      %147 = vector.broadcast %139 : vector<8x1xf32> to vector<8x128xf32>
      %148 = arith.mulf %147, %134 : vector<8x128xf32>
      %c2_51 = arith.constant 2 : index
      %c0_52 = arith.constant 0 : index
      %c0_53 = arith.constant 0 : index
      %149 = vector.load %arg17[%c2_51, %c0_52, %c0_53] : memref<8x8x128xf32, #tpu.memory_space<vmem>>, vector<1x8x128xf32>
      %150 = vector.shape_cast %149 : vector<1x8x128xf32> to vector<8x128xf32>
      %151 = vector.shape_cast %148 : vector<8x128xf32> to vector<1x8x128xf32>
      tpu.vector_store %arg17[%c2_51, %c0_52, %c0_53], %151 {strides = array<i32>} : memref<8x8x128xf32, #tpu.memory_space<vmem>>, vector<1x8x128xf32>,
      %c3 = arith.constant 3 : index
      %c0_54 = arith.constant 0 : index
      %c0_55 = arith.constant 0 : index
      %152 = vector.load %arg16[%c3, %c0_54, %c0_55] : memref<8x8x384xf32, #tpu.memory_space<vmem>>, vector<1x8x384xf32>
      %153 = vector.shape_cast %152 : vector<1x8x384xf32> to vector<8x384xf32>
      %c0_56 = arith.constant 0 : index
      %c0_57 = arith.constant 0 : index
      %154 = vector.load %arg6[%c0_56, %c0_57] : memref<128x384xf32, #tpu.memory_space<vmem>>, vector<128x384xf32>
      %cst_58 = arith.constant dense<0.000000e+00> : vector<8x384xf32>
      %155 = tpu.matmul %146, %154, %cst_58 {dimension_numbers = #tpu.dot_dimension_numbers<[1], [0], [0], [1], [0, 0, 1, 1], [], []>} : vector<8x128xf32>, vector<128x384xf32>, vector<8x384xf32> -> vector<8x384xf32>
      %156 = vector.extract_strided_slice %153 {offsets = [0, 0], sizes = [8, 256], strides = [1, 1]} : vector<8x384xf32> to vector<8x256xf32>
      %157 = vector.extract_strided_slice %155 {offsets = [0, 0], sizes = [8, 256], strides = [1, 1]} : vector<8x384xf32> to vector<8x256xf32>
      %158 = arith.addf %156, %157 : vector<8x256xf32>
      %159 = arith.negf %158 : vector<8x256xf32>
      %160 = math.exp %159 : vector<8x256xf32>
      %cst_59 = arith.constant 1.000000e+00 : f32
      %161 = vector.broadcast %cst_59 : f32 to vector<8x256xf32>
      %162 = arith.addf %161, %160 : vector<8x256xf32>
      %163 = arith.divf %161, %162 : vector<8x256xf32>
      %164 = vector.extract_strided_slice %163 {offsets = [0, 0], sizes = [8, 128], strides = [1, 1]} : vector<8x256xf32> to vector<8x128xf32>
      %165 = vector.extract_strided_slice %163 {offsets = [0, 128], sizes = [8, 128], strides = [1, 1]} : vector<8x256xf32> to vector<8x128xf32>
      %166 = vector.extract_strided_slice %153 {offsets = [0, 256], sizes = [8, 128], strides = [1, 1]} : vector<8x384xf32> to vector<8x128xf32>
      %167 = vector.extract_strided_slice %155 {offsets = [0, 256], sizes = [8, 128], strides = [1, 1]} : vector<8x384xf32> to vector<8x128xf32>
      %168 = arith.addf %167, %23 : vector<8x128xf32>
      %169 = arith.mulf %164, %168 : vector<8x128xf32>
      %170 = arith.addf %166, %169 : vector<8x128xf32>
      %171 = math.tanh %170 : vector<8x128xf32>
      %cst_60 = arith.constant 1.000000e+00 : f32
      %172 = vector.broadcast %cst_60 : f32 to vector<8x128xf32>
      %173 = arith.subf %172, %165 : vector<8x128xf32>
      %174 = arith.mulf %173, %171 : vector<8x128xf32>
      %175 = arith.mulf %165, %146 : vector<8x128xf32>
      %176 = arith.addf %174, %175 : vector<8x128xf32>
      %c3_i32 = arith.constant 3 : i32
      %177 = arith.addi %0, %c3_i32 : i32
      %178 = vector.broadcast %177 : i32 to vector<8x1xi32>
      %179 = arith.cmpi slt, %178, %24 : vector<8x1xi32>
      %180 = arith.extui %179 : vector<8x1xi1> to vector<8x1xi32>
      %181 = arith.sitofp %180 : vector<8x1xi32> to vector<8x1xf32>
      %182 = vector.broadcast %181 : vector<8x1xf32> to vector<8x128xf32>
      %183 = arith.mulf %182, %176 : vector<8x128xf32>
      %cst_61 = arith.constant 1.000000e+00 : f32
      %184 = vector.broadcast %cst_61 : f32 to vector<8x1xf32>
      %185 = arith.subf %184, %181 : vector<8x1xf32>
      %186 = vector.broadcast %185 : vector<8x1xf32> to vector<8x128xf32>
      %187 = arith.mulf %186, %146 : vector<8x128xf32>
      %188 = arith.addf %183, %187 : vector<8x128xf32>
      %189 = vector.broadcast %181 : vector<8x1xf32> to vector<8x128xf32>
      %190 = arith.mulf %189, %176 : vector<8x128xf32>
      %c3_62 = arith.constant 3 : index
      %c0_63 = arith.constant 0 : index
      %c0_64 = arith.constant 0 : index
      %191 = vector.load %arg17[%c3_62, %c0_63, %c0_64] : memref<8x8x128xf32, #tpu.memory_space<vmem>>, vector<1x8x128xf32>
      %192 = vector.shape_cast %191 : vector<1x8x128xf32> to vector<8x128xf32>
      %193 = vector.shape_cast %190 : vector<8x128xf32> to vector<1x8x128xf32>
      tpu.vector_store %arg17[%c3_62, %c0_63, %c0_64], %193 {strides = array<i32>} : memref<8x8x128xf32, #tpu.memory_space<vmem>>, vector<1x8x128xf32>,
      %c4 = arith.constant 4 : index
      %c0_65 = arith.constant 0 : index
      %c0_66 = arith.constant 0 : index
      %194 = vector.load %arg16[%c4, %c0_65, %c0_66] : memref<8x8x384xf32, #tpu.memory_space<vmem>>, vector<1x8x384xf32>
      %195 = vector.shape_cast %194 : vector<1x8x384xf32> to vector<8x384xf32>
      %c0_67 = arith.constant 0 : index
      %c0_68 = arith.constant 0 : index
      %196 = vector.load %arg6[%c0_67, %c0_68] : memref<128x384xf32, #tpu.memory_space<vmem>>, vector<128x384xf32>
      %cst_69 = arith.constant dense<0.000000e+00> : vector<8x384xf32>
      %197 = tpu.matmul %188, %196, %cst_69 {dimension_numbers = #tpu.dot_dimension_numbers<[1], [0], [0], [1], [0, 0, 1, 1], [], []>} : vector<8x128xf32>, vector<128x384xf32>, vector<8x384xf32> -> vector<8x384xf32>
      %198 = vector.extract_strided_slice %195 {offsets = [0, 0], sizes = [8, 256], strides = [1, 1]} : vector<8x384xf32> to vector<8x256xf32>
      %199 = vector.extract_strided_slice %197 {offsets = [0, 0], sizes = [8, 256], strides = [1, 1]} : vector<8x384xf32> to vector<8x256xf32>
      %200 = arith.addf %198, %199 : vector<8x256xf32>
      %201 = arith.negf %200 : vector<8x256xf32>
      %202 = math.exp %201 : vector<8x256xf32>
      %cst_70 = arith.constant 1.000000e+00 : f32
      %203 = vector.broadcast %cst_70 : f32 to vector<8x256xf32>
      %204 = arith.addf %203, %202 : vector<8x256xf32>
      %205 = arith.divf %203, %204 : vector<8x256xf32>
      %206 = vector.extract_strided_slice %205 {offsets = [0, 0], sizes = [8, 128], strides = [1, 1]} : vector<8x256xf32> to vector<8x128xf32>
      %207 = vector.extract_strided_slice %205 {offsets = [0, 128], sizes = [8, 128], strides = [1, 1]} : vector<8x256xf32> to vector<8x128xf32>
      %208 = vector.extract_strided_slice %195 {offsets = [0, 256], sizes = [8, 128], strides = [1, 1]} : vector<8x384xf32> to vector<8x128xf32>
      %209 = vector.extract_strided_slice %197 {offsets = [0, 256], sizes = [8, 128], strides = [1, 1]} : vector<8x384xf32> to vector<8x128xf32>
      %210 = arith.addf %209, %23 : vector<8x128xf32>
      %211 = arith.mulf %206, %210 : vector<8x128xf32>
      %212 = arith.addf %208, %211 : vector<8x128xf32>
      %213 = math.tanh %212 : vector<8x128xf32>
      %cst_71 = arith.constant 1.000000e+00 : f32
      %214 = vector.broadcast %cst_71 : f32 to vector<8x128xf32>
      %215 = arith.subf %214, %207 : vector<8x128xf32>
      %216 = arith.mulf %215, %213 : vector<8x128xf32>
      %217 = arith.mulf %207, %188 : vector<8x128xf32>
      %218 = arith.addf %216, %217 : vector<8x128xf32>
      %c4_i32 = arith.constant 4 : i32
      %219 = arith.addi %0, %c4_i32 : i32
      %220 = vector.broadcast %219 : i32 to vector<8x1xi32>
      %221 = arith.cmpi slt, %220, %24 : vector<8x1xi32>
      %222 = arith.extui %221 : vector<8x1xi1> to vector<8x1xi32>
      %223 = arith.sitofp %222 : vector<8x1xi32> to vector<8x1xf32>
      %224 = vector.broadcast %223 : vector<8x1xf32> to vector<8x128xf32>
      %225 = arith.mulf %224, %218 : vector<8x128xf32>
      %cst_72 = arith.constant 1.000000e+00 : f32
      %226 = vector.broadcast %cst_72 : f32 to vector<8x1xf32>
      %227 = arith.subf %226, %223 : vector<8x1xf32>
      %228 = vector.broadcast %227 : vector<8x1xf32> to vector<8x128xf32>
      %229 = arith.mulf %228, %188 : vector<8x128xf32>
      %230 = arith.addf %225, %229 : vector<8x128xf32>
      %231 = vector.broadcast %223 : vector<8x1xf32> to vector<8x128xf32>
      %232 = arith.mulf %231, %218 : vector<8x128xf32>
      %c4_73 = arith.constant 4 : index
      %c0_74 = arith.constant 0 : index
      %c0_75 = arith.constant 0 : index
      %233 = vector.load %arg17[%c4_73, %c0_74, %c0_75] : memref<8x8x128xf32, #tpu.memory_space<vmem>>, vector<1x8x128xf32>
      %234 = vector.shape_cast %233 : vector<1x8x128xf32> to vector<8x128xf32>
      %235 = vector.shape_cast %232 : vector<8x128xf32> to vector<1x8x128xf32>
      tpu.vector_store %arg17[%c4_73, %c0_74, %c0_75], %235 {strides = array<i32>} : memref<8x8x128xf32, #tpu.memory_space<vmem>>, vector<1x8x128xf32>,
      %c5 = arith.constant 5 : index
      %c0_76 = arith.constant 0 : index
      %c0_77 = arith.constant 0 : index
      %236 = vector.load %arg16[%c5, %c0_76, %c0_77] : memref<8x8x384xf32, #tpu.memory_space<vmem>>, vector<1x8x384xf32>
      %237 = vector.shape_cast %236 : vector<1x8x384xf32> to vector<8x384xf32>
      %c0_78 = arith.constant 0 : index
      %c0_79 = arith.constant 0 : index
      %238 = vector.load %arg6[%c0_78, %c0_79] : memref<128x384xf32, #tpu.memory_space<vmem>>, vector<128x384xf32>
      %cst_80 = arith.constant dense<0.000000e+00> : vector<8x384xf32>
      %239 = tpu.matmul %230, %238, %cst_80 {dimension_numbers = #tpu.dot_dimension_numbers<[1], [0], [0], [1], [0, 0, 1, 1], [], []>} : vector<8x128xf32>, vector<128x384xf32>, vector<8x384xf32> -> vector<8x384xf32>
      %240 = vector.extract_strided_slice %237 {offsets = [0, 0], sizes = [8, 256], strides = [1, 1]} : vector<8x384xf32> to vector<8x256xf32>
      %241 = vector.extract_strided_slice %239 {offsets = [0, 0], sizes = [8, 256], strides = [1, 1]} : vector<8x384xf32> to vector<8x256xf32>
      %242 = arith.addf %240, %241 : vector<8x256xf32>
      %243 = arith.negf %242 : vector<8x256xf32>
      %244 = math.exp %243 : vector<8x256xf32>
      %cst_81 = arith.constant 1.000000e+00 : f32
      %245 = vector.broadcast %cst_81 : f32 to vector<8x256xf32>
      %246 = arith.addf %245, %244 : vector<8x256xf32>
      %247 = arith.divf %245, %246 : vector<8x256xf32>
      %248 = vector.extract_strided_slice %247 {offsets = [0, 0], sizes = [8, 128], strides = [1, 1]} : vector<8x256xf32> to vector<8x128xf32>
      %249 = vector.extract_strided_slice %247 {offsets = [0, 128], sizes = [8, 128], strides = [1, 1]} : vector<8x256xf32> to vector<8x128xf32>
      %250 = vector.extract_strided_slice %237 {offsets = [0, 256], sizes = [8, 128], strides = [1, 1]} : vector<8x384xf32> to vector<8x128xf32>
      %251 = vector.extract_strided_slice %239 {offsets = [0, 256], sizes = [8, 128], strides = [1, 1]} : vector<8x384xf32> to vector<8x128xf32>
      %252 = arith.addf %251, %23 : vector<8x128xf32>
      %253 = arith.mulf %248, %252 : vector<8x128xf32>
      %254 = arith.addf %250, %253 : vector<8x128xf32>
      %255 = math.tanh %254 : vector<8x128xf32>
      %cst_82 = arith.constant 1.000000e+00 : f32
      %256 = vector.broadcast %cst_82 : f32 to vector<8x128xf32>
      %257 = arith.subf %256, %249 : vector<8x128xf32>
      %258 = arith.mulf %257, %255 : vector<8x128xf32>
      %259 = arith.mulf %249, %230 : vector<8x128xf32>
      %260 = arith.addf %258, %259 : vector<8x128xf32>
      %c5_i32 = arith.constant 5 : i32
      %261 = arith.addi %0, %c5_i32 : i32
      %262 = vector.broadcast %261 : i32 to vector<8x1xi32>
      %263 = arith.cmpi slt, %262, %24 : vector<8x1xi32>
      %264 = arith.extui %263 : vector<8x1xi1> to vector<8x1xi32>
      %265 = arith.sitofp %264 : vector<8x1xi32> to vector<8x1xf32>
      %266 = vector.broadcast %265 : vector<8x1xf32> to vector<8x128xf32>
      %267 = arith.mulf %266, %260 : vector<8x128xf32>
      %cst_83 = arith.constant 1.000000e+00 : f32
      %268 = vector.broadcast %cst_83 : f32 to vector<8x1xf32>
      %269 = arith.subf %268, %265 : vector<8x1xf32>
      %270 = vector.broadcast %269 : vector<8x1xf32> to vector<8x128xf32>
      %271 = arith.mulf %270, %230 : vector<8x128xf32>
      %272 = arith.addf %267, %271 : vector<8x128xf32>
      %273 = vector.broadcast %265 : vector<8x1xf32> to vector<8x128xf32>
      %274 = arith.mulf %273, %260 : vector<8x128xf32>
      %c5_84 = arith.constant 5 : index
      %c0_85 = arith.constant 0 : index
      %c0_86 = arith.constant 0 : index
      %275 = vector.load %arg17[%c5_84, %c0_85, %c0_86] : memref<8x8x128xf32, #tpu.memory_space<vmem>>, vector<1x8x128xf32>
      %276 = vector.shape_cast %275 : vector<1x8x128xf32> to vector<8x128xf32>
      %277 = vector.shape_cast %274 : vector<8x128xf32> to vector<1x8x128xf32>
      tpu.vector_store %arg17[%c5_84, %c0_85, %c0_86], %277 {strides = array<i32>} : memref<8x8x128xf32, #tpu.memory_space<vmem>>, vector<1x8x128xf32>,
      %c6 = arith.constant 6 : index
      %c0_87 = arith.constant 0 : index
      %c0_88 = arith.constant 0 : index
      %278 = vector.load %arg16[%c6, %c0_87, %c0_88] : memref<8x8x384xf32, #tpu.memory_space<vmem>>, vector<1x8x384xf32>
      %279 = vector.shape_cast %278 : vector<1x8x384xf32> to vector<8x384xf32>
      %c0_89 = arith.constant 0 : index
      %c0_90 = arith.constant 0 : index
      %280 = vector.load %arg6[%c0_89, %c0_90] : memref<128x384xf32, #tpu.memory_space<vmem>>, vector<128x384xf32>
      %cst_91 = arith.constant dense<0.000000e+00> : vector<8x384xf32>
      %281 = tpu.matmul %272, %280, %cst_91 {dimension_numbers = #tpu.dot_dimension_numbers<[1], [0], [0], [1], [0, 0, 1, 1], [], []>} : vector<8x128xf32>, vector<128x384xf32>, vector<8x384xf32> -> vector<8x384xf32>
      %282 = vector.extract_strided_slice %279 {offsets = [0, 0], sizes = [8, 256], strides = [1, 1]} : vector<8x384xf32> to vector<8x256xf32>
      %283 = vector.extract_strided_slice %281 {offsets = [0, 0], sizes = [8, 256], strides = [1, 1]} : vector<8x384xf32> to vector<8x256xf32>
      %284 = arith.addf %282, %283 : vector<8x256xf32>
      %285 = arith.negf %284 : vector<8x256xf32>
      %286 = math.exp %285 : vector<8x256xf32>
      %cst_92 = arith.constant 1.000000e+00 : f32
      %287 = vector.broadcast %cst_92 : f32 to vector<8x256xf32>
      %288 = arith.addf %287, %286 : vector<8x256xf32>
      %289 = arith.divf %287, %288 : vector<8x256xf32>
      %290 = vector.extract_strided_slice %289 {offsets = [0, 0], sizes = [8, 128], strides = [1, 1]} : vector<8x256xf32> to vector<8x128xf32>
      %291 = vector.extract_strided_slice %289 {offsets = [0, 128], sizes = [8, 128], strides = [1, 1]} : vector<8x256xf32> to vector<8x128xf32>
      %292 = vector.extract_strided_slice %279 {offsets = [0, 256], sizes = [8, 128], strides = [1, 1]} : vector<8x384xf32> to vector<8x128xf32>
      %293 = vector.extract_strided_slice %281 {offsets = [0, 256], sizes = [8, 128], strides = [1, 1]} : vector<8x384xf32> to vector<8x128xf32>
      %294 = arith.addf %293, %23 : vector<8x128xf32>
      %295 = arith.mulf %290, %294 : vector<8x128xf32>
      %296 = arith.addf %292, %295 : vector<8x128xf32>
      %297 = math.tanh %296 : vector<8x128xf32>
      %cst_93 = arith.constant 1.000000e+00 : f32
      %298 = vector.broadcast %cst_93 : f32 to vector<8x128xf32>
      %299 = arith.subf %298, %291 : vector<8x128xf32>
      %300 = arith.mulf %299, %297 : vector<8x128xf32>
      %301 = arith.mulf %291, %272 : vector<8x128xf32>
      %302 = arith.addf %300, %301 : vector<8x128xf32>
      %c6_i32 = arith.constant 6 : i32
      %303 = arith.addi %0, %c6_i32 : i32
      %304 = vector.broadcast %303 : i32 to vector<8x1xi32>
      %305 = arith.cmpi slt, %304, %24 : vector<8x1xi32>
      %306 = arith.extui %305 : vector<8x1xi1> to vector<8x1xi32>
      %307 = arith.sitofp %306 : vector<8x1xi32> to vector<8x1xf32>
      %308 = vector.broadcast %307 : vector<8x1xf32> to vector<8x128xf32>
      %309 = arith.mulf %308, %302 : vector<8x128xf32>
      %cst_94 = arith.constant 1.000000e+00 : f32
      %310 = vector.broadcast %cst_94 : f32 to vector<8x1xf32>
      %311 = arith.subf %310, %307 : vector<8x1xf32>
      %312 = vector.broadcast %311 : vector<8x1xf32> to vector<8x128xf32>
      %313 = arith.mulf %312, %272 : vector<8x128xf32>
      %314 = arith.addf %309, %313 : vector<8x128xf32>
      %315 = vector.broadcast %307 : vector<8x1xf32> to vector<8x128xf32>
      %316 = arith.mulf %315, %302 : vector<8x128xf32>
      %c6_95 = arith.constant 6 : index
      %c0_96 = arith.constant 0 : index
      %c0_97 = arith.constant 0 : index
      %317 = vector.load %arg17[%c6_95, %c0_96, %c0_97] : memref<8x8x128xf32, #tpu.memory_space<vmem>>, vector<1x8x128xf32>
      %318 = vector.shape_cast %317 : vector<1x8x128xf32> to vector<8x128xf32>
      %319 = vector.shape_cast %316 : vector<8x128xf32> to vector<1x8x128xf32>
      tpu.vector_store %arg17[%c6_95, %c0_96, %c0_97], %319 {strides = array<i32>} : memref<8x8x128xf32, #tpu.memory_space<vmem>>, vector<1x8x128xf32>,
      %c7 = arith.constant 7 : index
      %c0_98 = arith.constant 0 : index
      %c0_99 = arith.constant 0 : index
      %320 = vector.load %arg16[%c7, %c0_98, %c0_99] : memref<8x8x384xf32, #tpu.memory_space<vmem>>, vector<1x8x384xf32>
      %321 = vector.shape_cast %320 : vector<1x8x384xf32> to vector<8x384xf32>
      %c0_100 = arith.constant 0 : index
      %c0_101 = arith.constant 0 : index
      %322 = vector.load %arg6[%c0_100, %c0_101] : memref<128x384xf32, #tpu.memory_space<vmem>>, vector<128x384xf32>
      %cst_102 = arith.constant dense<0.000000e+00> : vector<8x384xf32>
      %323 = tpu.matmul %314, %322, %cst_102 {dimension_numbers = #tpu.dot_dimension_numbers<[1], [0], [0], [1], [0, 0, 1, 1], [], []>} : vector<8x128xf32>, vector<128x384xf32>, vector<8x384xf32> -> vector<8x384xf32>
      %324 = vector.extract_strided_slice %321 {offsets = [0, 0], sizes = [8, 256], strides = [1, 1]} : vector<8x384xf32> to vector<8x256xf32>
      %325 = vector.extract_strided_slice %323 {offsets = [0, 0], sizes = [8, 256], strides = [1, 1]} : vector<8x384xf32> to vector<8x256xf32>
      %326 = arith.addf %324, %325 : vector<8x256xf32>
      %327 = arith.negf %326 : vector<8x256xf32>
      %328 = math.exp %327 : vector<8x256xf32>
      %cst_103 = arith.constant 1.000000e+00 : f32
      %329 = vector.broadcast %cst_103 : f32 to vector<8x256xf32>
      %330 = arith.addf %329, %328 : vector<8x256xf32>
      %331 = arith.divf %329, %330 : vector<8x256xf32>
      %332 = vector.extract_strided_slice %331 {offsets = [0, 0], sizes = [8, 128], strides = [1, 1]} : vector<8x256xf32> to vector<8x128xf32>
      %333 = vector.extract_strided_slice %331 {offsets = [0, 128], sizes = [8, 128], strides = [1, 1]} : vector<8x256xf32> to vector<8x128xf32>
      %334 = vector.extract_strided_slice %321 {offsets = [0, 256], sizes = [8, 128], strides = [1, 1]} : vector<8x384xf32> to vector<8x128xf32>
      %335 = vector.extract_strided_slice %323 {offsets = [0, 256], sizes = [8, 128], strides = [1, 1]} : vector<8x384xf32> to vector<8x128xf32>
      %336 = arith.addf %335, %23 : vector<8x128xf32>
      %337 = arith.mulf %332, %336 : vector<8x128xf32>
      %338 = arith.addf %334, %337 : vector<8x128xf32>
      %339 = math.tanh %338 : vector<8x128xf32>
      %cst_104 = arith.constant 1.000000e+00 : f32
      %340 = vector.broadcast %cst_104 : f32 to vector<8x128xf32>
      %341 = arith.subf %340, %333 : vector<8x128xf32>
      %342 = arith.mulf %341, %339 : vector<8x128xf32>
      %343 = arith.mulf %333, %314 : vector<8x128xf32>
      %344 = arith.addf %342, %343 : vector<8x128xf32>
      %c7_i32 = arith.constant 7 : i32
      %345 = arith.addi %0, %c7_i32 : i32
      %346 = vector.broadcast %345 : i32 to vector<8x1xi32>
      %347 = arith.cmpi slt, %346, %24 : vector<8x1xi32>
      %348 = arith.extui %347 : vector<8x1xi1> to vector<8x1xi32>
      %349 = arith.sitofp %348 : vector<8x1xi32> to vector<8x1xf32>
      %350 = vector.broadcast %349 : vector<8x1xf32> to vector<8x128xf32>
      %351 = arith.mulf %350, %344 : vector<8x128xf32>
      %cst_105 = arith.constant 1.000000e+00 : f32
      %352 = vector.broadcast %cst_105 : f32 to vector<8x1xf32>
      %353 = arith.subf %352, %349 : vector<8x1xf32>
      %354 = vector.broadcast %353 : vector<8x1xf32> to vector<8x128xf32>
      %355 = arith.mulf %354, %314 : vector<8x128xf32>
      %356 = arith.addf %351, %355 : vector<8x128xf32>
      %357 = vector.broadcast %349 : vector<8x1xf32> to vector<8x128xf32>
      %358 = arith.mulf %357, %344 : vector<8x128xf32>
      %c7_106 = arith.constant 7 : index
      %c0_107 = arith.constant 0 : index
      %c0_108 = arith.constant 0 : index
      %359 = vector.load %arg17[%c7_106, %c0_107, %c0_108] : memref<8x8x128xf32, #tpu.memory_space<vmem>>, vector<1x8x128xf32>
      %360 = vector.shape_cast %359 : vector<1x8x128xf32> to vector<8x128xf32>
      %361 = vector.shape_cast %358 : vector<8x128xf32> to vector<1x8x128xf32>
      tpu.vector_store %arg17[%c7_106, %c0_107, %c0_108], %361 {strides = array<i32>} : memref<8x8x128xf32, #tpu.memory_space<vmem>>, vector<1x8x128xf32>,
      %c0_109 = arith.constant 0 : index
      %c0_110 = arith.constant 0 : index
      %362 = vector.load %arg13[%c0_109, %c0_110] : memref<8x128xf32, #tpu.memory_space<vmem>>, vector<8x128xf32>
      tpu.vector_store %arg13[%c0_109, %c0_110], %356 {strides = array<i32>} : memref<8x128xf32, #tpu.memory_space<vmem>>, vector<8x128xf32>,
      %c0_111 = arith.constant 0 : index
      %c0_112 = arith.constant 0 : index
      %c0_113 = arith.constant 0 : index
      %363 = vector.load %arg17[%c0_111, %c0_112, %c0_113] : memref<8x8x128xf32, #tpu.memory_space<vmem>>, vector<8x8x128xf32>
      %364 = vector.shape_cast %363 : vector<8x8x128xf32> to vector<64x128xf32>
      %cst_114 = arith.constant 0.000000e+00 : f32
      %365 = vector.broadcast %cst_114 : f32 to vector<64x128xf32>
      %366 = arith.cmpf one, %364, %365 : vector<64x128xf32>
      %367 = arith.extui %366 : vector<64x128xi1> to vector<64x128xi32>
      %368 = arith.sitofp %367 : vector<64x128xi32> to vector<64x128xf32>
      %369 = arith.mulf %364, %368 : vector<64x128xf32>
      %cst_115 = arith.constant dense<0.000000e+00> : vector<64xf32>
      %370 = vector.multi_reduction <add>, %368, %cst_115 [1] : vector<64x128xf32> to vector<64xf32>
      %371 = vector.shape_cast %370 : vector<64xf32> to vector<64x1xf32>
      %cst_116 = arith.constant 0.000000e+00 : f32
      %372 = vector.broadcast %cst_116 : f32 to vector<64x1xf32>
      %373 = arith.cmpf ogt, %371, %372 : vector<64x1xf32>
      %374 = arith.extui %373 : vector<64x1xi1> to vector<64x1xi32>
      %375 = arith.sitofp %374 : vector<64x1xi32> to vector<64x1xf32>
      %c0_117 = arith.constant 0 : index
      %c0_118 = arith.constant 0 : index
      %376 = vector.load %arg9[%c0_117, %c0_118] : memref<128x128xf32, #tpu.memory_space<vmem>>, vector<128x128xf32>
      %cst_119 = arith.constant dense<0.000000e+00> : vector<64x128xf32>
      %377 = tpu.matmul %369, %376, %cst_119 {dimension_numbers = #tpu.dot_dimension_numbers<[1], [0], [0], [1], [0, 0, 1, 1], [], []>} : vector<64x128xf32>, vector<128x128xf32>, vector<64x128xf32> -> vector<64x128xf32>
      %c0_120 = arith.constant 0 : index
      %c0_121 = arith.constant 0 : index
      %378 = vector.load %arg10[%c0_120, %c0_121] : memref<1x128xf32, #tpu.memory_space<vmem>>, vector<1x128xf32>
      %379 = vector.broadcast %378 : vector<1x128xf32> to vector<64x128xf32>
      %380 = arith.addf %377, %379 : vector<64x128xf32>
      %381 = math.tanh %380 : vector<64x128xf32>
      %c0_122 = arith.constant 0 : index
      %c0_123 = arith.constant 0 : index
      %382 = vector.load %arg11[%c0_122, %c0_123] : memref<1x128xf32, #tpu.memory_space<vmem>>, vector<1x128xf32>
      %383 = vector.broadcast %382 : vector<1x128xf32> to vector<64x128xf32>
      %384 = arith.mulf %381, %383 : vector<64x128xf32>
      %cst_124 = arith.constant dense<0.000000e+00> : vector<64xf32>
      %385 = vector.multi_reduction <add>, %384, %cst_124 [1] : vector<64x128xf32> to vector<64xf32>
      %386 = vector.shape_cast %385 : vector<64xf32> to vector<64x1xf32>
      %387 = math.exp %386 : vector<64x1xf32>
      %388 = arith.mulf %387, %375 : vector<64x1xf32>
      %c0_125 = arith.constant 0 : index
      %c0_126 = arith.constant 0 : index
      %389 = vector.load %arg14[%c0_125, %c0_126] : memref<8x128xf32, #tpu.memory_space<vmem>>, vector<8x128xf32>
      %390 = vector.broadcast %388 : vector<64x1xf32> to vector<64x128xf32>
      %391 = arith.mulf %369, %390 : vector<64x128xf32>
      %392 = vector.shape_cast %391 : vector<64x128xf32> to vector<8x8x128xf32>
      %cst_127 = arith.constant dense<0.000000e+00> : vector<8x128xf32>
      %393 = vector.multi_reduction <add>, %392, %cst_127 [0] : vector<8x8x128xf32> to vector<8x128xf32>
      %394 = arith.addf %389, %393 : vector<8x128xf32>
      %c0_128 = arith.constant 0 : index
      %c0_129 = arith.constant 0 : index
      %395 = vector.load %arg14[%c0_128, %c0_129] : memref<8x128xf32, #tpu.memory_space<vmem>>, vector<8x128xf32>
      tpu.vector_store %arg14[%c0_128, %c0_129], %394 {strides = array<i32>} : memref<8x128xf32, #tpu.memory_space<vmem>>, vector<8x128xf32>,
      %c0_130 = arith.constant 0 : index
      %c0_131 = arith.constant 0 : index
      %396 = vector.load %arg15[%c0_130, %c0_131] : memref<8x1xf32, #tpu.memory_space<vmem>>, vector<8x1xf32>
      %397 = vector.shape_cast %388 : vector<64x1xf32> to vector<8x8x1xf32>
      %cst_132 = arith.constant dense<0.000000e+00> : vector<8x1xf32>
      %398 = vector.multi_reduction <add>, %397, %cst_132 [0] : vector<8x8x1xf32> to vector<8x1xf32>
      %399 = arith.addf %396, %398 : vector<8x1xf32>
      %c0_133 = arith.constant 0 : index
      %c0_134 = arith.constant 0 : index
      %400 = vector.load %arg15[%c0_133, %c0_134] : memref<8x1xf32, #tpu.memory_space<vmem>>, vector<8x1xf32>
      tpu.vector_store %arg15[%c0_133, %c0_134], %399 {strides = array<i32>} : memref<8x1xf32, #tpu.memory_space<vmem>>, vector<8x1xf32>,
    } else {
    }
    %c1_i32 = arith.constant 1 : i32
    %9 = arith.cmpi eq, %arg1, %c1_i32 : i32
    %10 = arith.extui %9 : i1 to i32
    %c0_i32_2 = arith.constant 0 : i32
    %11 = arith.cmpi ne, %10, %c0_i32_2 : i32
    scf.if %11 {
      %c0 = arith.constant 0 : index
      %c0_3 = arith.constant 0 : index
      %12 = vector.load %arg14[%c0, %c0_3] : memref<8x128xf32, #tpu.memory_space<vmem>>, vector<8x128xf32>
      %c0_4 = arith.constant 0 : index
      %c0_5 = arith.constant 0 : index
      %13 = vector.load %arg15[%c0_4, %c0_5] : memref<8x1xf32, #tpu.memory_space<vmem>>, vector<8x1xf32>
      %cst = arith.constant 1.000000e-10 : f32
      %14 = vector.broadcast %cst : f32 to vector<8x1xf32>
      %15 = arith.addf %13, %14 : vector<8x1xf32>
      %16 = vector.broadcast %15 : vector<8x1xf32> to vector<8x128xf32>
      %17 = arith.divf %12, %16 : vector<8x128xf32>
      %c0_6 = arith.constant 0 : index
      %c0_7 = arith.constant 0 : index
      %18 = vector.load %arg12[%c0_6, %c0_7] : memref<8x128xf32, #tpu.memory_space<vmem>>, vector<8x128xf32>
      tpu.vector_store %arg12[%c0_6, %c0_7], %17 {strides = array<i32>} : memref<8x128xf32, #tpu.memory_space<vmem>>, vector<8x128xf32>,
    } else {
    }
    return
  }
  func.func @transform_0(%arg0: i32, %arg1: i32, %arg2: memref<2xi32, #tpu.memory_space<smem>>) -> (i32, i32, i32) {
    %c0_i32 = arith.constant 0 : i32
    %c0_i32_0 = arith.constant 0 : i32
    return %arg1, %arg0, %c0_i32 : i32, i32, i32
  }
  func.func @transform_1(%arg0: i32, %arg1: i32, %arg2: memref<2xi32, #tpu.memory_space<smem>>) -> (i32, i32) {
    %c0_i32 = arith.constant 0 : i32
    %c0_i32_0 = arith.constant 0 : i32
    return %arg0, %c0_i32 : i32, i32
  }
  func.func @transform_2(%arg0: i32, %arg1: i32, %arg2: memref<2xi32, #tpu.memory_space<smem>>) -> (i32, i32) {
    %c0_i32 = arith.constant 0 : i32
    %c0_i32_0 = arith.constant 0 : i32
    %c0_i32_1 = arith.constant 0 : i32
    return %c0_i32, %c0_i32_0 : i32, i32
  }
  func.func @transform_3(%arg0: i32, %arg1: i32, %arg2: memref<2xi32, #tpu.memory_space<smem>>) -> (i32, i32) {
    %c0_i32 = arith.constant 0 : i32
    %c0_i32_0 = arith.constant 0 : i32
    %c0_i32_1 = arith.constant 0 : i32
    return %c0_i32, %c0_i32_0 : i32, i32
  }
  func.func @transform_4(%arg0: i32, %arg1: i32, %arg2: memref<2xi32, #tpu.memory_space<smem>>) -> (i32, i32) {
    %c0_i32 = arith.constant 0 : i32
    %c0_i32_0 = arith.constant 0 : i32
    %c0_i32_1 = arith.constant 0 : i32
    return %c0_i32, %c0_i32_0 : i32, i32
  }
  func.func @transform_5(%arg0: i32, %arg1: i32, %arg2: memref<2xi32, #tpu.memory_space<smem>>) -> (i32, i32) {
    %c0_i32 = arith.constant 0 : i32
    %c0_i32_0 = arith.constant 0 : i32
    %c0_i32_1 = arith.constant 0 : i32
    return %c0_i32, %c0_i32_0 : i32, i32
  }
  func.func @transform_6(%arg0: i32, %arg1: i32, %arg2: memref<2xi32, #tpu.memory_space<smem>>) -> (i32, i32) {
    %c0_i32 = arith.constant 0 : i32
    %c0_i32_0 = arith.constant 0 : i32
    %c0_i32_1 = arith.constant 0 : i32
    return %c0_i32, %c0_i32_0 : i32, i32
  }
  func.func @transform_7(%arg0: i32, %arg1: i32, %arg2: memref<2xi32, #tpu.memory_space<smem>>) -> (i32, i32) {
    %c0_i32 = arith.constant 0 : i32
    %c0_i32_0 = arith.constant 0 : i32
    %c0_i32_1 = arith.constant 0 : i32
    return %c0_i32, %c0_i32_0 : i32, i32
  }
  func.func @transform_8(%arg0: i32, %arg1: i32, %arg2: memref<2xi32, #tpu.memory_space<smem>>) -> (i32, i32) {
    %c0_i32 = arith.constant 0 : i32
    %c0_i32_0 = arith.constant 0 : i32
    %c0_i32_1 = arith.constant 0 : i32
    return %c0_i32, %c0_i32_0 : i32, i32
  }
  func.func @transform_9(%arg0: i32, %arg1: i32, %arg2: memref<2xi32, #tpu.memory_space<smem>>) -> (i32, i32) {
    %c0_i32 = arith.constant 0 : i32
    %c0_i32_0 = arith.constant 0 : i32
    return %arg0, %c0_i32 : i32, i32
  }
}

</mosaic_0001>

<llo_original>
// kernel: tpu_custom_call.1
$region0: #{tpu_custom_call.1}
  #allocation0 [shape = 'u32[]', space=smem, size = 0x4, offset = 0x4, fixed_abs, tag = 'smem constant byte address 0x4 - core index']
  #allocation1 [shape = 'u32[72,128]{1,0:T(1,128)}', space=vmem, size = 0x9000, scoped, tag = 'internal scratch']
  #allocation2 [shape = 'f32[8,128]{1,0:T(8,128)}', space=vmem, size = 0x1000, scoped, tag = 'scratch operand']
  #allocation3 [shape = 'f32[8,128]{1,0:T(8,128)}', space=vmem, size = 0x1000, scoped, tag = 'scratch operand']
  #allocation4 [shape = 'f32[8,1]{1,0:T(8,128)}', space=vmem, size = 0x1000, scoped, tag = 'scratch operand']
  #allocation5 [shape = 'f32[8,8,384]{2,1,0:T(8,128)}', space=vmem, size = 0x18000, scoped, tag = 'scratch operand']
  #allocation6 [shape = 'f32[8,8,128]{2,1,0:T(8,128)}', space=vmem, size = 0x8000, scoped, tag = 'scratch operand']
  #allocation7 [shape = 's32[1]{0}', space=sflag, size = 0x4, scoped, tag = 'scoped memory for tpu_custom_call.1']
  #allocation8 [shape = 'u8[512]{0}', space=smem, size = 0x200, scoped, tag = 'prefetched SMEM operand 0']
  %s0 = inlined_call_operand.vmem [shape: s32[2], index: 0, kind: input, shape index: {}]
  %s1 = inlined_call_operand.hbm [shape: f32[16,16,32], index: 1, kind: input, shape index: {}]
  %s2 = inlined_call_operand.vmem [shape: s32[16,1], index: 2, kind: input, shape index: {}]
  %s3 = inlined_call_operand.hbm [shape: f32[32,384], index: 3, kind: input, shape index: {}]
  %s4 = inlined_call_operand.hbm [shape: f32[128,384], index: 4, kind: input, shape index: {}]
  %s5 = inlined_call_operand.vmem [shape: f32[1,384], index: 5, kind: input, shape index: {}]
  %s6 = inlined_call_operand.vmem [shape: f32[1,128], index: 6, kind: input, shape index: {}]
  %s7 = inlined_call_operand.hbm [shape: f32[128,128], index: 7, kind: input, shape index: {}]
  %s8 = inlined_call_operand.vmem [shape: f32[1,128], index: 8, kind: input, shape index: {}]
  %s9 = inlined_call_operand.vmem [shape: f32[1,128], index: 9, kind: input, shape index: {}]
  %s10 = inlined_call_operand.hbm [shape: f32[16,128], index: 10, kind: output, shape index: {}]
  %s11 = sld [smem:[#allocation0]]
  $region97: #{tpu_custom_call.1} parent=0
    _
  %s13 = ssub.s32 1, %s11
  %s14 = scalar_select 0, %s13, %s11
  %s16 = sshll.u32 %s0, 4
  %s17 = int_to_ptr.vmem [resolvable:$true] %s16
  %19 = dma.vmem_to_smem %s17, 16, [#allocation8], [#allocation7]
  %21 = dma.done [#allocation7], 16
  %22 = sfence
  $region1: #{tpu_custom_call.1} parent=0
    #allocation9 [shape = 'u8[65536]{0}', space=vmem, size = 0x10000, scoped, tag = 'input window, operand 1']
    #allocation10 [shape = 's32[2]{0}', space=sflag, size = 0x8, scoped, tag = 'scoped memory for tpu_custom_call.1']
    #allocation11 [shape = 's32[2]{0}', space=sflag, size = 0x8, scoped, tag = 'scoped memory for tpu_custom_call.1']
    #allocation12 [shape = 'u8[49152]{0}', space=vmem, size = 0xc000, scoped, tag = 'input window, operand 3, single buffered']
    #allocation13 [shape = 's32[1]{0}', space=sflag, size = 0x4, scoped, tag = 'scoped memory for tpu_custom_call.1']
    #allocation14 [shape = 'u8[196608]{0}', space=vmem, size = 0x30000, scoped, tag = 'input window, operand 4, single buffered']
    #allocation15 [shape = 'u8[65536]{0}', space=vmem, size = 0x10000, scoped, tag = 'input window, operand 7, single buffered']
    #allocation16 [shape = 's32[1]{0}', space=sflag, size = 0x4, scoped, tag = 'scoped memory for tpu_custom_call.1']
    #allocation17 [shape = 'u8[8192]{0}', space=vmem, size = 0x2000, scoped, tag = 'output window, operand 0']
    %23 = vsyncpa [#allocation10], 0
    %s24 = scalar_lea.sflag [#allocation10], 1
    %25 = vsyncpa %s24, 0
    %26 = vsyncpa [#allocation13], 0
    %27 = vsyncpa [#allocation16], 0
    %28 = vsyncpa [#allocation11], 0
    %s29 = scalar_lea.sflag [#allocation11], 1
    %30 = vsyncpa %s29, 0
    loop: start=0, step=1, limit=6
    $region2: #{tpu_custom_call.1} parent=1 // loop_pre_header
      _
    $region3: #{tpu_custom_call.1} parent=1 // loop_header
      %s32 = sphi 0, %s36
      %p33 = scmp.ge.s32.totalorder %s32, 6
      %s39 = sphi 0, %s51
      %s40 = sphi 0, %s47
      %s41 = sphi 0, %s39
      %s42 = sphi 0, %s40
      %s43 = sphi 0, %s41
      %s44 = sphi 0, %s42
      %s56 = sphi 0, %s58
      %s59 = sphi 0, %s56
      %s60 = sphi 0, %s59
      %s76 = sphi 0, %s60
      %s82 = sphi 0, %s84
      %s85 = sphi 0, %s82
      %s86 = sphi 0, %s85
      %s102 = sphi 0, %s86
      %s106 = sphi 0, %s106
      %s108 = sphi 0, %s106
      %s109 = sphi 0, %s108
      %s123 = sphi 0, %s109
      %s127 = sphi 0, %s127
      %s129 = sphi 0, %s127
      %s130 = sphi 0, %s129
      %s144 = sphi 0, %s130
      %s148 = sphi 0, %s148
      %s150 = sphi 0, %s148
      %s151 = sphi 0, %s150
      %s165 = sphi 0, %s151
      %s169 = sphi 0, %s169
      %s171 = sphi 0, %s169
      %s172 = sphi 0, %s171
      %s186 = sphi 0, %s172
      %s190 = sphi 0, %s190
      %s192 = sphi 0, %s190
      %s193 = sphi 0, %s192
      %s207 = sphi 0, %s193
      %s211 = sphi 0, %s211
      %s213 = sphi 0, %s211
      %s214 = sphi 0, %s213
      %s228 = sphi 0, %s214
      %s232 = sphi 0, %s232
      %s234 = sphi 0, %s232
      %s235 = sphi 0, %s234
      %s249 = sphi 0, %s235
      %s255 = sphi 0, %s257
      %s258 = sphi 0, %s255
      %s259 = sphi 0, %s258
      %s275 = sphi 0, %s259
    $region4: #{tpu_custom_call.1} parent=1 // loop_header_branch
      %35 = sbr.rel (%p33) target = $region8
    $region5: #{tpu_custom_call.1} parent=1 // loop_body
      %s37 = ssub.s32 %s32, 1
      %s38 = ssub.s32 %s32, 2
      %s45 = sadd.s32 1, %s40
      %p46 = scmp.ge.s32.totalorder %s45, 2
      %s47 = scalar_select %p46, 0, %s45
      %s48 = sadd.s32 1, %s39
      %s49 = scalar_select %p46, %s48, %s39
      %p50 = scmp.ge.s32.totalorder %s49, 2
      %s51 = scalar_select %p50, 0, %s49
      %s52 = ssub.s32 %s40, %s47
      %s53 = ssub.s32 %s39, %s51
      %s54 = sor.u32 %s52, %s53
      %p55 = scmp.eq.s32.totalorder %s54, 0
      %s57 = sadd.s32 %s56, 1
      %s58 = scalar_select %p55, %s56, %s57
      %p61 = pneg %p55
      %p62 = scmp.eq.s32.totalorder %s32, 3
      %p63 = por %p61, %p62
      %p64 = scmp.ne.s32.totalorder %s56, %s59
      %p65 = scmp.eq.s32.totalorder %s32, 0
      %p66 = por %p64, %p65
      %p67 = scmp.ne.s32.totalorder %s56, %s59
      %p68 = scmp.eq.s32.totalorder %s37, 3
      %p69 = por %p67, %p68
      %p70 = scmp.ne.s32.totalorder %s59, %s60
      %p71 = scmp.eq.s32.totalorder %s37, 0
      %p72 = por %p70, %p71
      %p73 = scmp.ne.s32.totalorder %s59, %s60
      %p74 = scmp.eq.s32.totalorder %s38, 3
      %p75 = por %p73, %p74
      %p77 = scmp.ne.s32.totalorder %s60, %s76
      %p78 = scmp.eq.s32.totalorder %s38, 0
      %p79 = por %p77, %p78
      %s80 = ssub.s32 %s39, %s51
      %p81 = scmp.eq.s32.totalorder %s80, 0
      %s83 = sadd.s32 %s82, 1
      %s84 = scalar_select %p81, %s82, %s83
      %p87 = pneg %p81
      %p88 = scmp.eq.s32.totalorder %s32, 3
      %p89 = por %p87, %p88
      %p90 = scmp.ne.s32.totalorder %s82, %s85
      %p91 = scmp.eq.s32.totalorder %s32, 0
      %p92 = por %p90, %p91
      %p93 = scmp.ne.s32.totalorder %s82, %s85
      %p94 = scmp.eq.s32.totalorder %s37, 3
      %p95 = por %p93, %p94
      %p96 = scmp.ne.s32.totalorder %s85, %s86
      %p97 = scmp.eq.s32.totalorder %s37, 0
      %p98 = por %p96, %p97
      %p99 = scmp.ne.s32.totalorder %s85, %s86
      %p100 = scmp.eq.s32.totalorder %s38, 3
      %p101 = por %p99, %p100
      %p103 = scmp.ne.s32.totalorder %s86, %s102
      %p104 = scmp.eq.s32.totalorder %s38, 0
      %p105 = por %p103, %p104
      %s107 = sadd.s32 %s106, 1
      %p110 = scmp.eq.s32.totalorder %s32, 3
      %p111 = scmp.ne.s32.totalorder %s106, %s108
      %p112 = scmp.eq.s32.totalorder %s32, 0
      %p113 = por %p111, %p112
      %p114 = scmp.ne.s32.totalorder %s106, %s108
      %p115 = scmp.eq.s32.totalorder %s37, 3
      %p116 = por %p114, %p115
      %p117 = scmp.ne.s32.totalorder %s108, %s109
      %p118 = scmp.eq.s32.totalorder %s37, 0
      %p119 = por %p117, %p118
      %p120 = scmp.ne.s32.totalorder %s108, %s109
      %p121 = scmp.eq.s32.totalorder %s38, 3
      %p122 = por %p120, %p121
      %p124 = scmp.ne.s32.totalorder %s109, %s123
      %p125 = scmp.eq.s32.totalorder %s38, 0
      %p126 = por %p124, %p125
      %s128 = sadd.s32 %s127, 1
      %p131 = scmp.eq.s32.totalorder %s32, 3
      %p132 = scmp.ne.s32.totalorder %s127, %s129
      %p133 = scmp.eq.s32.totalorder %s32, 0
      %p134 = por %p132, %p133
      %p135 = scmp.ne.s32.totalorder %s127, %s129
      %p136 = scmp.eq.s32.totalorder %s37, 3
      %p137 = por %p135, %p136
      %p138 = scmp.ne.s32.totalorder %s129, %s130
      %p139 = scmp.eq.s32.totalorder %s37, 0
      %p140 = por %p138, %p139
      %p141 = scmp.ne.s32.totalorder %s129, %s130
      %p142 = scmp.eq.s32.totalorder %s38, 3
      %p143 = por %p141, %p142
      %p145 = scmp.ne.s32.totalorder %s130, %s144
      %p146 = scmp.eq.s32.totalorder %s38, 0
      %p147 = por %p145, %p146
      %s149 = sadd.s32 %s148, 1
      %p152 = scmp.eq.s32.totalorder %s32, 3
      %p153 = scmp.ne.s32.totalorder %s148, %s150
      %p154 = scmp.eq.s32.totalorder %s32, 0
      %p155 = por %p153, %p154
      %p156 = scmp.ne.s32.totalorder %s148, %s150
      %p157 = scmp.eq.s32.totalorder %s37, 3
      %p158 = por %p156, %p157
      %p159 = scmp.ne.s32.totalorder %s150, %s151
      %p160 = scmp.eq.s32.totalorder %s37, 0
      %p161 = por %p159, %p160
      %p162 = scmp.ne.s32.totalorder %s150, %s151
      %p163 = scmp.eq.s32.totalorder %s38, 3
      %p164 = por %p162, %p163
      %p166 = scmp.ne.s32.totalorder %s151, %s165
      %p167 = scmp.eq.s32.totalorder %s38, 0
      %p168 = por %p166, %p167
      %s170 = sadd.s32 %s169, 1
      %p173 = scmp.eq.s32.totalorder %s32, 3
      %p174 = scmp.ne.s32.totalorder %s169, %s171
      %p175 = scmp.eq.s32.totalorder %s32, 0
      %p176 = por %p174, %p175
      %p177 = scmp.ne.s32.totalorder %s169, %s171
      %p178 = scmp.eq.s32.totalorder %s37, 3
      %p179 = por %p177, %p178
      %p180 = scmp.ne.s32.totalorder %s171, %s172
      %p181 = scmp.eq.s32.totalorder %s37, 0
      %p182 = por %p180, %p181
      %p183 = scmp.ne.s32.totalorder %s171, %s172
      %p184 = scmp.eq.s32.totalorder %s38, 3
      %p185 = por %p183, %p184
      %p187 = scmp.ne.s32.totalorder %s172, %s186
      %p188 = scmp.eq.s32.totalorder %s38, 0
      %p189 = por %p187, %p188
      %s191 = sadd.s32 %s190, 1
      %p194 = scmp.eq.s32.totalorder %s32, 3
      %p195 = scmp.ne.s32.totalorder %s190, %s192
      %p196 = scmp.eq.s32.totalorder %s32, 0
      %p197 = por %p195, %p196
      %p198 = scmp.ne.s32.totalorder %s190, %s192
      %p199 = scmp.eq.s32.totalorder %s37, 3
      %p200 = por %p198, %p199
      %p201 = scmp.ne.s32.totalorder %s192, %s193
      %p202 = scmp.eq.s32.totalorder %s37, 0
      %p203 = por %p201, %p202
      %p204 = scmp.ne.s32.totalorder %s192, %s193
      %p205 = scmp.eq.s32.totalorder %s38, 3
      %p206 = por %p204, %p205
      %p208 = scmp.ne.s32.totalorder %s193, %s207
      %p209 = scmp.eq.s32.totalorder %s38, 0
      %p210 = por %p208, %p209
      %s212 = sadd.s32 %s211, 1
      %p215 = scmp.eq.s32.totalorder %s32, 3
      %p216 = scmp.ne.s32.totalorder %s211, %s213
      %p217 = scmp.eq.s32.totalorder %s32, 0
      %p218 = por %p216, %p217
      %p219 = scmp.ne.s32.totalorder %s211, %s213
      %p220 = scmp.eq.s32.totalorder %s37, 3
      %p221 = por %p219, %p220
      %p222 = scmp.ne.s32.totalorder %s213, %s214
      %p223 = scmp.eq.s32.totalorder %s37, 0
      %p224 = por %p222, %p223
      %p225 = scmp.ne.s32.totalorder %s213, %s214
      %p226 = scmp.eq.s32.totalorder %s38, 3
      %p227 = por %p225, %p226
      %p229 = scmp.ne.s32.totalorder %s214, %s228
      %p230 = scmp.eq.s32.totalorder %s38, 0
      %p231 = por %p229, %p230
      %s233 = sadd.s32 %s232, 1
      %p236 = scmp.eq.s32.totalorder %s32, 3
      %p237 = scmp.ne.s32.totalorder %s232, %s234
      %p238 = scmp.eq.s32.totalorder %s32, 0
      %p239 = por %p237, %p238
      %p240 = scmp.ne.s32.totalorder %s232, %s234
      %p241 = scmp.eq.s32.totalorder %s37, 3
      %p242 = por %p240, %p241
      %p243 = scmp.ne.s32.totalorder %s234, %s235
      %p244 = scmp.eq.s32.totalorder %s37, 0
      %p245 = por %p243, %p244
      %p246 = scmp.ne.s32.totalorder %s234, %s235
      %p247 = scmp.eq.s32.totalorder %s38, 3
      %p248 = por %p246, %p247
      %p250 = scmp.ne.s32.totalorder %s235, %s249
      %p251 = scmp.eq.s32.totalorder %s38, 0
      %p252 = por %p250, %p251
      %s253 = ssub.s32 %s39, %s51
      %p254 = scmp.eq.s32.totalorder %s253, 0
      %s256 = sadd.s32 %s255, 1
      %s257 = scalar_select %p254, %s255, %s256
      %p260 = pneg %p254
      %p261 = scmp.eq.s32.totalorder %s32, 3
      %p262 = por %p260, %p261
      %p263 = scmp.ne.s32.totalorder %s255, %s258
      %p264 = scmp.eq.s32.totalorder %s32, 0
      %p265 = por %p263, %p264
      %p266 = scmp.ne.s32.totalorder %s255, %s258
      %p267 = scmp.eq.s32.totalorder %s37, 3
      %p268 = por %p266, %p267
      %p269 = scmp.ne.s32.totalorder %s258, %s259
      %p270 = scmp.eq.s32.totalorder %s37, 0
      %p271 = por %p269, %p270
      %p272 = scmp.ne.s32.totalorder %s258, %s259
      %p273 = scmp.eq.s32.totalorder %s38, 3
      %p274 = por %p272, %p273
      %p276 = scmp.ne.s32.totalorder %s259, %s275
      %p277 = scmp.eq.s32.totalorder %s38, 0
      %p278 = por %p276, %p277
      %p279 = scmp.le.s32.totalorder 1, %s32
      %p280 = scmp.lt.s32.totalorder %s32, 5
      %p281 = pnand %p279, %p280
      %p282 = pneg %p281
      // Predicated region
      $region9: #{tpu_custom_call.1} parent=5 // pred_check
        _
      $region10: #{tpu_custom_call.1} parent=5 // pred_check_branch
        %284 = sbr.rel (%p281) target = $region12
      $region11: #{tpu_custom_call.1} parent=5 // pred_region
        %s285 = ssub.s32 %s32, 1
        // Predicated region
        $region13: #{tpu_custom_call.1} parent=11 // pred_check
          %p286 = pneg %p119
        $region14: #{tpu_custom_call.1} parent=11 // pred_check_branch
          %288 = sbr.rel (%p286) target = $region16
        $region15: #{tpu_custom_call.1} parent=11 // pred_region
          %290 = vsyncadd [#allocation13], 0
          %s291 = sshll.u32 %s3, 4
          %s292 = int_to_ptr.hbm [resolvable:$true] %s291
          %s293 = sshll.u32 [#allocation12], 4
          %s294 = int_to_ptr.vmem [resolvable:$true] %s293
          %299 = dma.hbm_to_vmem [thread:$0]  %s292, 1536, %s294, [#allocation13], 384, 384, 24
        $region16: #{tpu_custom_call.1} parent=11 // pred_fallthru
          _
        // Predicated region
        $region17: #{tpu_custom_call.1} parent=11 // pred_check
          %p300 = pneg %p140
        $region18: #{tpu_custom_call.1} parent=11 // pred_check_branch
          %302 = sbr.rel (%p300) target = $region20
        $region19: #{tpu_custom_call.1} parent=11 // pred_region
          %304 = vsyncadd [#allocation13], 0
          %s305 = sshll.u32 %s4, 4
          %s306 = int_to_ptr.hbm [resolvable:$true] %s305
          %s307 = sshll.u32 [#allocation14], 4
          %s308 = int_to_ptr.vmem [resolvable:$true] %s307
          %313 = dma.hbm_to_vmem [thread:$0]  %s306, 6144, %s308, [#allocation13], 384, 384, 24
        $region20: #{tpu_custom_call.1} parent=11 // pred_fallthru
          _
        // Predicated region
        $region21: #{tpu_custom_call.1} parent=11 // pred_check
          %p314 = pneg %p161
        $region22: #{tpu_custom_call.1} parent=11 // pred_check_branch
          %316 = sbr.rel (%p314) target = $region24
        $region23: #{tpu_custom_call.1} parent=11 // pred_region
          _
        $region24: #{tpu_custom_call.1} parent=11 // pred_fallthru
          _
        // Predicated region
        $region25: #{tpu_custom_call.1} parent=11 // pred_check
          %p317 = pneg %p182
        $region26: #{tpu_custom_call.1} parent=11 // pred_check_branch
          %319 = sbr.rel (%p317) target = $region28
        $region27: #{tpu_custom_call.1} parent=11 // pred_region
          _
        $region28: #{tpu_custom_call.1} parent=11 // pred_fallthru
          _
        // Predicated region
        $region29: #{tpu_custom_call.1} parent=11 // pred_check
          %p320 = pneg %p203
        $region30: #{tpu_custom_call.1} parent=11 // pred_check_branch
          %322 = sbr.rel (%p320) target = $region32
        $region31: #{tpu_custom_call.1} parent=11 // pred_region
          %324 = vsyncadd [#allocation16], 0
          %s325 = sshll.u32 %s7, 4
          %s326 = int_to_ptr.hbm [resolvable:$true] %s325
          %s327 = sshll.u32 [#allocation15], 4
          %s328 = int_to_ptr.vmem [resolvable:$true] %s327
          %333 = dma.hbm_to_vmem [thread:$0]  %s326, 2048, %s328, [#allocation16], 128, 128, 8
        $region32: #{tpu_custom_call.1} parent=11 // pred_fallthru
          _
        // Predicated region
        $region33: #{tpu_custom_call.1} parent=11 // pred_check
          %p334 = pneg %p224
        $region34: #{tpu_custom_call.1} parent=11 // pred_check_branch
          %336 = sbr.rel (%p334) target = $region36
        $region35: #{tpu_custom_call.1} parent=11 // pred_region
          _
        $region36: #{tpu_custom_call.1} parent=11 // pred_fallthru
          _
        // Predicated region
        $region37: #{tpu_custom_call.1} parent=11 // pred_check
          %p337 = pneg %p245
        $region38: #{tpu_custom_call.1} parent=11 // pred_check_branch
          %339 = sbr.rel (%p337) target = $region40
        $region39: #{tpu_custom_call.1} parent=11 // pred_region
          _
        $region40: #{tpu_custom_call.1} parent=11 // pred_fallthru
          _
      $region12: #{tpu_custom_call.1} parent=5 // pred_fallthru
        _
      %p340 = scmp.lt.s32.totalorder %s32, 4
      // Predicated region
      $region41: #{tpu_custom_call.1} parent=5 // pred_check
        %p341 = pneg %p340
      $region42: #{tpu_custom_call.1} parent=5 // pred_check_branch
        %343 = sbr.rel (%p341) target = $region44
      $region43: #{tpu_custom_call.1} parent=5 // pred_region
        // Predicated region
        $region45: #{tpu_custom_call.1} parent=43 // pred_check
          %p344 = pneg %p66
        $region46: #{tpu_custom_call.1} parent=43 // pred_check_branch
          %346 = sbr.rel (%p344) target = $region48
        $region47: #{tpu_custom_call.1} parent=43 // pred_region
          %s347 = sand.u32 %s56, 1
          %s348 = scalar_lea.sflag [#allocation10], %s347
          %s349 = sand.u32 %s56, 1
          %s350 = smul.addr %s349, 64
          %s351 = scalar_lea.vmem [#allocation9], %s350
          %s352 = smul.u32 8, %s40
          %354 = vsyncadd %s348, 0
          %s355 = smul.addr %s352, 2
          %s356 = sadd.s32 %s39, %s355
          %s357 = smul.addr %s356, 8
          %s358 = scalar_lea.hbm %s1, %s357
          %s359 = sshll.u32 %s358, 4
          %s360 = int_to_ptr.hbm [resolvable:$true] %s359
          %s361 = sshll.u32 %s351, 4
          %s362 = int_to_ptr.vmem [resolvable:$true] %s361
          %367 = dma.hbm_to_vmem [thread:$0]  %s360, 1024, %s362, %s348, 256, 128, 8
        $region48: #{tpu_custom_call.1} parent=43 // pred_fallthru
          _
        // Predicated region
        $region49: #{tpu_custom_call.1} parent=43 // pred_check
          %p368 = pneg %p92
        $region50: #{tpu_custom_call.1} parent=43 // pred_check_branch
          %370 = sbr.rel (%p368) target = $region52
        $region51: #{tpu_custom_call.1} parent=43 // pred_region
          %p371 = scmp.lt.s32.totalorder %s39, 1
          %s372 = scalar_select %p371, %s39, 1
          %s373 = smul.addr %s372, 8
          %s374 = scalar_lea.vmem %s2, %s373
        $region52: #{tpu_custom_call.1} parent=43 // pred_fallthru
          _
      $region44: #{tpu_custom_call.1} parent=5 // pred_fallthru
        _
      %p375 = scmp.le.s32.totalorder 1, %s32
      %p376 = scmp.lt.s32.totalorder %s32, 5
      %p377 = pnand %p375, %p376
      %p378 = pneg %p377
      // Predicated region
      $region53: #{tpu_custom_call.1} parent=5 // pred_check
        _
      $region54: #{tpu_custom_call.1} parent=5 // pred_check_branch
        %380 = sbr.rel (%p377) target = $region56
      $region55: #{tpu_custom_call.1} parent=5 // pred_region
        %s381 = ssub.s32 %s32, 1
        %s382 = sand.u32 %s59, 1
        %s383 = scalar_lea.sflag [#allocation10], %s382
        %s384 = sand.u32 %s59, 1
        %s385 = smul.addr %s384, 64
        %s386 = scalar_lea.vmem [#allocation9], %s385
        // Predicated region
        $region57: #{tpu_custom_call.1} parent=55 // pred_check
          %p387 = pneg %p72
        $region58: #{tpu_custom_call.1} parent=55 // pred_check_branch
          %389 = sbr.rel (%p387) target = $region60
        $region59: #{tpu_custom_call.1} parent=55 // pred_region
          %391 = dma.done %s383, 1024
        $region60: #{tpu_custom_call.1} parent=55 // pred_fallthru
          _
        // Predicated region
        $region61: #{tpu_custom_call.1} parent=55 // pred_check
          %p392 = pneg %p119
        $region62: #{tpu_custom_call.1} parent=55 // pred_check_branch
          %394 = sbr.rel (%p392) target = $region64
        $region63: #{tpu_custom_call.1} parent=55 // pred_region
          %396 = dma.done [#allocation13], 1536
        $region64: #{tpu_custom_call.1} parent=55 // pred_fallthru
          _
        // Predicated region
        $region65: #{tpu_custom_call.1} parent=55 // pred_check
          %p397 = pneg %p140
        $region66: #{tpu_custom_call.1} parent=55 // pred_check_branch
          %399 = sbr.rel (%p397) target = $region68
        $region67: #{tpu_custom_call.1} parent=55 // pred_region
          %401 = dma.done [#allocation13], 6144
        $region68: #{tpu_custom_call.1} parent=55 // pred_fallthru
          _
        // Predicated region
        $region69: #{tpu_custom_call.1} parent=55 // pred_check
          %p402 = pneg %p203
        $region70: #{tpu_custom_call.1} parent=55 // pred_check_branch
          %404 = sbr.rel (%p402) target = $region72
        $region71: #{tpu_custom_call.1} parent=55 // pred_region
          %406 = dma.done [#allocation16], 2048
        $region72: #{tpu_custom_call.1} parent=55 // pred_fallthru
          _
        %s407 = sand.u32 %s59, 1
        %s408 = scalar_lea.sflag [#allocation10], %s407
        %s409 = sand.u32 %s59, 1
        %s410 = smul.addr %s409, 64
        %s411 = scalar_lea.vmem [#allocation9], %s410
        %p412 = pneg %p72
        %p413 = pneg %p69
        %p414 = scmp.lt.s32.totalorder %s41, 1
        %s415 = scalar_select %p414, %s41, 1
        %s416 = smul.addr %s415, 8
        %s417 = scalar_lea.vmem %s2, %s416
        %p418 = pneg %p98
        %p419 = pneg %p95
        %p420 = pneg %p119
        %p421 = pneg %p116
        %p422 = pneg %p140
        %p423 = pneg %p137
        %p424 = pneg %p161
        %p425 = pneg %p158
        %p426 = pneg %p182
        %p427 = pneg %p179
        %p428 = pneg %p203
        %p429 = pneg %p200
        %p430 = pneg %p224
        %p431 = pneg %p221
        %p432 = pneg %p245
        %p433 = pneg %p242
        %p434 = pneg %p271
        %p435 = pneg %p268
        %s436 = sand.u32 %s258, 1
        %s437 = scalar_lea.sflag [#allocation11], %s436
        %s438 = sand.u32 %s258, 1
        %s439 = smul.addr %s438, 8
        %s440 = scalar_lea.vmem [#allocation17], %s439
        %s441 = smul.u32 8, %s42
        %p442 = scmp.lt.s32.totalorder %s41, 1
        %s443 = scalar_select %p442, %s41, 1
        %s444 = smul.addr %s443, 8
        %s445 = scalar_lea.vmem %s2, %s444
        %s446 = smul.u32 %s42, 8
        %p447 = scmp.eq.s32.totalorder %s42, 0
        // Predicated region
        $region73: #{tpu_custom_call.1} parent=55 // pred_check
          %p448 = pneg %p447
        $region74: #{tpu_custom_call.1} parent=55 // pred_check_branch
          %450 = sbr.rel (%p448) target = $region76
        $region75: #{tpu_custom_call.1} parent=55 // pred_region
          %451 = vst [vmem:[#allocation2] sm:$0xff] 0.0
          %452 = vst [vmem:[#allocation3] sm:$0xff] 0.0
          %vm453 = vcmask 7168
          %454 = vst.msk [vmem:[#allocation4] sm:$0xff] %vm453, 0.0
        $region76: #{tpu_custom_call.1} parent=55 // pred_fallthru
          _
        %s455 = sld [smem:[#allocation8 + %s41]]
        %p456 = scmp.lt.s32.totalorder %s446, %s455
        // Predicated region
        $region77: #{tpu_custom_call.1} parent=55 // pred_check
          %p457 = pneg %p456
        $region78: #{tpu_custom_call.1} parent=55 // pred_check_branch
          %459 = sbr.rel (%p457) target = $region80
        $region79: #{tpu_custom_call.1} parent=55 // pred_region
          %v460 = vld [vmem:[%s386] sm:$0xff]
          %v461 = vld [vmem:[%s386 + $0x8] sm:$0xff]
          %v462 = vld [vmem:[%s386 + $0x10] sm:$0xff]
          %v463 = vld [vmem:[%s386 + $0x18] sm:$0xff]
          %v464 = vld [vmem:[%s386 + $0x20] sm:$0xff]
          %v465 = vld [vmem:[%s386 + $0x28] sm:$0xff]
          %v466 = vld [vmem:[%s386 + $0x30] sm:$0xff]
          %v467 = vld [vmem:[%s386 + $0x38] sm:$0xff]
          %v468 = vld [vmem:[#allocation12] sm:$0xff]
          %v469 = vld [vmem:[#allocation12 + $0x8] sm:$0xff]
          %v470 = vld [vmem:[#allocation12 + $0x10] sm:$0xff]
          %v471 = vld [vmem:[#allocation12 + $0x18] sm:$0xff]
          %v472 = vld [vmem:[#allocation12 + $0x20] sm:$0xff]
          %v473 = vld [vmem:[#allocation12 + $0x28] sm:$0xff]
          %v474 = vld [vmem:[#allocation12 + $0x30] sm:$0xff]
          %v475 = vld [vmem:[#allocation12 + $0x38] sm:$0xff]
          %v476 = vld [vmem:[#allocation12 + $0x40] sm:$0xff]
          %v477 = vld [vmem:[#allocation12 + $0x48] sm:$0xff]
          %v478 = vld [vmem:[#allocation12 + $0x50] sm:$0xff]
          %v479 = vld [vmem:[#allocation12 + $0x58] sm:$0xff]
          %v480 = vld [vmem:[%s5] sm:$0x7]
          %v482 = vperm.slane %v480, 0
          %v483 = vperm.slane %v480, 1
          %v484 = vperm.slane %v480, 2
          %vm488 = vcmask 261120
          %v490 = vsel %vm488, %v460, 0
          %v493 = vsel %vm488, %v461, 0
          %v496 = vsel %vm488, %v462, 0
          %v499 = vsel %vm488, %v463, 0
          %v502 = vsel %vm488, %v464, 0
          %v505 = vsel %vm488, %v465, 0
          %v508 = vsel %vm488, %v466, 0
          %v511 = vsel %vm488, %v467, 0
          %513 = vmatpush.msra.mxu0 0.0
          %514 = vmatpush.msra.mxu0 0.0
          %515 = vmatpush.msra.mxu0 0.0
          %516 = vmatpush.msra.mxu0 0.0
          %517 = vmatpush.msra.mxu0 0.0
          %518 = vmatpush.msra.mxu0 0.0
          %519 = vmatpush.msra.mxu0 0.0
          %520 = vmatpush.msra.mxu0 0.0
          %521 = vmatpush.msra.mxu0 0.0
          %522 = vmatpush.msra.mxu0 0.0
          %523 = vmatpush.msra.mxu0 0.0
          %524 = vmatpush.msra.mxu0 0.0
          %525 = vmatpush.msra.mxu0 %v477
          %526 = vmatpush.msra.mxu0 %v474
          %527 = vmatpush.msra.mxu0 %v471
          %528 = vmatpush.msra.mxu0 %v468
          %529 = vmatmul.f32.gmra.mxu0 %v490
          %v530 = vpop.f32.mrf.mxu0
          %v531 = vadd.f32 %v482, %v530
          %532 = vmatmul.f32.gmra.mxu0 %v493
          %v533 = vpop.f32.mrf.mxu0
          %v534 = vadd.f32 %v482, %v533
          %535 = vmatmul.f32.gmra.mxu0 %v496
          %v536 = vpop.f32.mrf.mxu0
          %v537 = vadd.f32 %v482, %v536
          %538 = vmatmul.f32.gmra.mxu0 %v499
          %v539 = vpop.f32.mrf.mxu0
          %v540 = vadd.f32 %v482, %v539
          %541 = vmatmul.f32.gmra.mxu0 %v502
          %v542 = vpop.f32.mrf.mxu0
          %v543 = vadd.f32 %v482, %v542
          %544 = vmatmul.f32.gmra.mxu0 %v505
          %v545 = vpop.f32.mrf.mxu0
          %v546 = vadd.f32 %v482, %v545
          %547 = vmatmul.f32.gmra.mxu0 %v508
          %v548 = vpop.f32.mrf.mxu0
          %v549 = vadd.f32 %v482, %v548
          %550 = vmatmul.f32.gmra.mxu0 %v511
          %v551 = vpop.f32.mrf.mxu0
          %v552 = vadd.f32 %v482, %v551
          %553 = vdwg.mxu0
          %554 = vmatpush.msra.mxu0 0.0
          %555 = vmatpush.msra.mxu0 0.0
          %556 = vmatpush.msra.mxu0 0.0
          %557 = vmatpush.msra.mxu0 0.0
          %558 = vmatpush.msra.mxu0 0.0
          %559 = vmatpush.msra.mxu0 0.0
          %560 = vmatpush.msra.mxu0 0.0
          %561 = vmatpush.msra.mxu0 0.0
          %562 = vmatpush.msra.mxu0 0.0
          %563 = vmatpush.msra.mxu0 0.0
          %564 = vmatpush.msra.mxu0 0.0
          %565 = vmatpush.msra.mxu0 0.0
          %566 = vmatpush.msra.mxu0 %v478
          %567 = vmatpush.msra.mxu0 %v475
          %568 = vmatpush.msra.mxu0 %v472
          %569 = vmatpush.msra.mxu0 %v469
          %570 = vmatmul.f32.gmra.mxu0 %v490
          %v571 = vpop.f32.mrf.mxu0
          %v572 = vadd.f32 %v483, %v571
          %573 = vmatmul.f32.gmra.mxu0 %v493
          %v574 = vpop.f32.mrf.mxu0
          %v575 = vadd.f32 %v483, %v574
          %576 = vmatmul.f32.gmra.mxu0 %v496
          %v577 = vpop.f32.mrf.mxu0
          %v578 = vadd.f32 %v483, %v577
          %579 = vmatmul.f32.gmra.mxu0 %v499
          %v580 = vpop.f32.mrf.mxu0
          %v581 = vadd.f32 %v483, %v580
          %582 = vmatmul.f32.gmra.mxu0 %v502
          %v583 = vpop.f32.mrf.mxu0
          %v584 = vadd.f32 %v483, %v583
          %585 = vmatmul.f32.gmra.mxu0 %v505
          %v586 = vpop.f32.mrf.mxu0
          %v587 = vadd.f32 %v483, %v586
          %588 = vmatmul.f32.gmra.mxu0 %v508
          %v589 = vpop.f32.mrf.mxu0
          %v590 = vadd.f32 %v483, %v589
          %591 = vmatmul.f32.gmra.mxu0 %v511
          %v592 = vpop.f32.mrf.mxu0
          %v593 = vadd.f32 %v483, %v592
          %594 = vdwg.mxu0
          %595 = vmatpush.msra.mxu0 0.0
          %596 = vmatpush.msra.mxu0 0.0
          %597 = vmatpush.msra.mxu0 0.0
          %598 = vmatpush.msra.mxu0 0.0
          %599 = vmatpush.msra.mxu0 0.0
          %600 = vmatpush.msra.mxu0 0.0
          %601 = vmatpush.msra.mxu0 0.0
          %602 = vmatpush.msra.mxu0 0.0
          %603 = vmatpush.msra.mxu0 0.0
          %604 = vmatpush.msra.mxu0 0.0
          %605 = vmatpush.msra.mxu0 0.0
          %606 = vmatpush.msra.mxu0 0.0
          %607 = vmatpush.msra.mxu0 %v479
          %608 = vmatpush.msra.mxu0 %v476
          %609 = vmatpush.msra.mxu0 %v473
          %610 = vmatpush.msra.mxu0 %v470
          %611 = vmatmul.f32.gmra.mxu0 %v490
          %v612 = vpop.f32.mrf.mxu0
          %v613 = vadd.f32 %v484, %v612
          %614 = vmatmul.f32.gmra.mxu0 %v493
          %v615 = vpop.f32.mrf.mxu0
          %v616 = vadd.f32 %v484, %v615
          %617 = vmatmul.f32.gmra.mxu0 %v496
          %v618 = vpop.f32.mrf.mxu0
          %v619 = vadd.f32 %v484, %v618
          %620 = vmatmul.f32.gmra.mxu0 %v499
          %v621 = vpop.f32.mrf.mxu0
          %v622 = vadd.f32 %v484, %v621
          %623 = vmatmul.f32.gmra.mxu0 %v502
          %v624 = vpop.f32.mrf.mxu0
          %v625 = vadd.f32 %v484, %v624
          %626 = vmatmul.f32.gmra.mxu0 %v505
          %v627 = vpop.f32.mrf.mxu0
          %v628 = vadd.f32 %v484, %v627
          %629 = vmatmul.f32.gmra.mxu0 %v508
          %v630 = vpop.f32.mrf.mxu0
          %v631 = vadd.f32 %v484, %v630
          %632 = vmatmul.f32.gmra.mxu0 %v511
          %v633 = vpop.f32.mrf.mxu0
          %v634 = vadd.f32 %v484, %v633
          %635 = vdwg.mxu0
          %636 = vst [vmem:[#allocation5] sm:$0xff] %v531
          %637 = vst [vmem:[#allocation5 + $0x8] sm:$0xff] %v572
          %638 = vst [vmem:[#allocation5 + $0x10] sm:$0xff] %v613
          %639 = vst [vmem:[#allocation5 + $0x18] sm:$0xff] %v534
          %640 = vst [vmem:[#allocation5 + $0x20] sm:$0xff] %v575
          %641 = vst [vmem:[#allocation5 + $0x28] sm:$0xff] %v616
          %642 = vst [vmem:[#allocation5 + $0x30] sm:$0xff] %v537
          %643 = vst [vmem:[#allocation5 + $0x38] sm:$0xff] %v578
          %644 = vst [vmem:[#allocation5 + $0x40] sm:$0xff] %v619
          %645 = vst [vmem:[#allocation5 + $0x48] sm:$0xff] %v540
          %646 = vst [vmem:[#allocation5 + $0x50] sm:$0xff] %v581
          %647 = vst [vmem:[#allocation5 + $0x58] sm:$0xff] %v622
          %648 = vst [vmem:[#allocation5 + $0x60] sm:$0xff] %v543
          %649 = vst [vmem:[#allocation5 + $0x68] sm:$0xff] %v584
          %650 = vst [vmem:[#allocation5 + $0x70] sm:$0xff] %v625
          %651 = vst [vmem:[#allocation5 + $0x78] sm:$0xff] %v546
          %652 = vst [vmem:[#allocation5 + $0x80] sm:$0xff] %v587
          %653 = vst [vmem:[#allocation5 + $0x88] sm:$0xff] %v628
          %654 = vst [vmem:[#allocation5 + $0x90] sm:$0xff] %v549
          %655 = vst [vmem:[#allocation5 + $0x98] sm:$0xff] %v590
          %656 = vst [vmem:[#allocation5 + $0xa0] sm:$0xff] %v631
          %657 = vst [vmem:[#allocation5 + $0xa8] sm:$0xff] %v552
          %658 = vst [vmem:[#allocation5 + $0xb0] sm:$0xff] %v593
          %659 = vst [vmem:[#allocation5 + $0xb8] sm:$0xff] %v634
          %v660 = vld [vmem:[%s6] sm:$0x1]
          %v662 = vperm.slane %v660, 0
          %v664 = vld [vmem:[%s445] sm:$0xff]
          %v665 = vld [vmem:[#allocation2] sm:$0xff]
          %v666 = vld [vmem:[#allocation5] sm:$0xff]
          %v667 = vld [vmem:[#allocation5 + $0x8] sm:$0xff]
          %v668 = vld [vmem:[#allocation5 + $0x10] sm:$0xff]
          %v669 = vld [vmem:[#allocation14] sm:$0xff]
          %v670 = vld [vmem:[#allocation14 + $0x8] sm:$0xff]
          %v671 = vld [vmem:[#allocation14 + $0x10] sm:$0xff]
          %v672 = vld [vmem:[#allocation14 + $0x18] sm:$0xff]
          %v673 = vld [vmem:[#allocation14 + $0x20] sm:$0xff]
          %v674 = vld [vmem:[#allocation14 + $0x28] sm:$0xff]
          %v675 = vld [vmem:[#allocation14 + $0x30] sm:$0xff]
          %v676 = vld [vmem:[#allocation14 + $0x38] sm:$0xff]
          %v677 = vld [vmem:[#allocation14 + $0x40] sm:$0xff]
          %v678 = vld [vmem:[#allocation14 + $0x48] sm:$0xff]
          %v679 = vld [vmem:[#allocation14 + $0x50] sm:$0xff]
          %v680 = vld [vmem:[#allocation14 + $0x58] sm:$0xff]
          %v681 = vld [vmem:[#allocation14 + $0x60] sm:$0xff]
          %v682 = vld [vmem:[#allocation14 + $0x68] sm:$0xff]
          %v683 = vld [vmem:[#allocation14 + $0x70] sm:$0xff]
          %v684 = vld [vmem:[#allocation14 + $0x78] sm:$0xff]
          %v685 = vld [vmem:[#allocation14 + $0x80] sm:$0xff]
          %v686 = vld [vmem:[#allocation14 + $0x88] sm:$0xff]
          %v687 = vld [vmem:[#allocation14 + $0x90] sm:$0xff]
          %v688 = vld [vmem:[#allocation14 + $0x98] sm:$0xff]
          %v689 = vld [vmem:[#allocation14 + $0xa0] sm:$0xff]
          %v690 = vld [vmem:[#allocation14 + $0xa8] sm:$0xff]
          %v691 = vld [vmem:[#allocation14 + $0xb0] sm:$0xff]
          %v692 = vld [vmem:[#allocation14 + $0xb8] sm:$0xff]
          %v693 = vld [vmem:[#allocation14 + $0xc0] sm:$0xff]
          %v694 = vld [vmem:[#allocation14 + $0xc8] sm:$0xff]
          %v695 = vld [vmem:[#allocation14 + $0xd0] sm:$0xff]
          %v696 = vld [vmem:[#allocation14 + $0xd8] sm:$0xff]
          %v697 = vld [vmem:[#allocation14 + $0xe0] sm:$0xff]
          %v698 = vld [vmem:[#allocation14 + $0xe8] sm:$0xff]
          %v699 = vld [vmem:[#allocation14 + $0xf0] sm:$0xff]
          %v700 = vld [vmem:[#allocation14 + $0xf8] sm:$0xff]
          %v701 = vld [vmem:[#allocation14 + $0x100] sm:$0xff]
          %v702 = vld [vmem:[#allocation14 + $0x108] sm:$0xff]
          %v703 = vld [vmem:[#allocation14 + $0x110] sm:$0xff]
          %v704 = vld [vmem:[#allocation14 + $0x118] sm:$0xff]
          %v705 = vld [vmem:[#allocation14 + $0x120] sm:$0xff]
          %v706 = vld [vmem:[#allocation14 + $0x128] sm:$0xff]
          %v707 = vld [vmem:[#allocation14 + $0x130] sm:$0xff]
          %v708 = vld [vmem:[#allocation14 + $0x138] sm:$0xff]
          %v709 = vld [vmem:[#allocation14 + $0x140] sm:$0xff]
          %v710 = vld [vmem:[#allocation14 + $0x148] sm:$0xff]
          %v711 = vld [vmem:[#allocation14 + $0x150] sm:$0xff]
          %v712 = vld [vmem:[#allocation14 + $0x158] sm:$0xff]
          %v713 = vld [vmem:[#allocation14 + $0x160] sm:$0xff]
          %v714 = vld [vmem:[#allocation14 + $0x168] sm:$0xff]
          %v715 = vld [vmem:[#allocation14 + $0x170] sm:$0xff]
          %v716 = vld [vmem:[#allocation14 + $0x178] sm:$0xff]
          %717 = vmatpush.msra.mxu0 %v714
          %718 = vmatpush.msra.mxu0 %v711
          %719 = vmatpush.msra.mxu0 %v708
          %720 = vmatpush.msra.mxu0 %v705
          %721 = vmatpush.msra.mxu0 %v702
          %722 = vmatpush.msra.mxu0 %v699
          %723 = vmatpush.msra.mxu0 %v696
          %724 = vmatpush.msra.mxu0 %v693
          %725 = vmatpush.msra.mxu0 %v690
          %726 = vmatpush.msra.mxu0 %v687
          %727 = vmatpush.msra.mxu0 %v684
          %728 = vmatpush.msra.mxu0 %v681
          %729 = vmatpush.msra.mxu0 %v678
          %730 = vmatpush.msra.mxu0 %v675
          %731 = vmatpush.msra.mxu0 %v672
          %732 = vmatpush.msra.mxu0 %v669
          %733 = vmatmul.f32.gmra.mxu0 %v665
          %v734 = vpop.f32.mrf.mxu0
          %v735 = vadd.f32 0.0, %v734
          %736 = vdwg.mxu0
          %737 = vmatpush.msra.mxu0 %v715
          %738 = vmatpush.msra.mxu0 %v712
          %739 = vmatpush.msra.mxu0 %v709
          %740 = vmatpush.msra.mxu0 %v706
          %741 = vmatpush.msra.mxu0 %v703
          %742 = vmatpush.msra.mxu0 %v700
          %743 = vmatpush.msra.mxu0 %v697
          %744 = vmatpush.msra.mxu0 %v694
          %745 = vmatpush.msra.mxu0 %v691
          %746 = vmatpush.msra.mxu0 %v688
          %747 = vmatpush.msra.mxu0 %v685
          %748 = vmatpush.msra.mxu0 %v682
          %749 = vmatpush.msra.mxu0 %v679
          %750 = vmatpush.msra.mxu0 %v676
          %751 = vmatpush.msra.mxu0 %v673
          %752 = vmatpush.msra.mxu0 %v670
          %753 = vmatmul.f32.gmra.mxu0 %v665
          %v754 = vpop.f32.mrf.mxu0
          %v755 = vadd.f32 0.0, %v754
          %756 = vdwg.mxu0
          %757 = vmatpush.msra.mxu0 %v716
          %758 = vmatpush.msra.mxu0 %v713
          %759 = vmatpush.msra.mxu0 %v710
          %760 = vmatpush.msra.mxu0 %v707
          %761 = vmatpush.msra.mxu0 %v704
          %762 = vmatpush.msra.mxu0 %v701
          %763 = vmatpush.msra.mxu0 %v698
          %764 = vmatpush.msra.mxu0 %v695
          %765 = vmatpush.msra.mxu0 %v692
          %766 = vmatpush.msra.mxu0 %v689
          %767 = vmatpush.msra.mxu0 %v686
          %768 = vmatpush.msra.mxu0 %v683
          %769 = vmatpush.msra.mxu0 %v680
          %770 = vmatpush.msra.mxu0 %v677
          %771 = vmatpush.msra.mxu0 %v674
          %772 = vmatpush.msra.mxu0 %v671
          %773 = vmatmul.f32.gmra.mxu0 %v665
          %v774 = vpop.f32.mrf.mxu0
          %v775 = vadd.f32 0.0, %v774
          %776 = vdwg.mxu0
          %v777 = vadd.f32 %v666, %v735
          %v778 = vadd.f32 %v667, %v755
          %v779 = vxor.u32 %v777, 2147483648
          %v780 = vxor.u32 %v778, 2147483648
          %v781 = vmul.f32 %v779, 1.442695
          %v782 = vpow.pop %v781
          %v783 = vmul.f32 %v780, 1.442695
          %v784 = vpow.pop %v783
          %v785 = vadd.f32 %v782, 1.0
          %v786 = vadd.f32 %v784, 1.0
          %v787 = vrcp.pop %v785
          %v788 = vmul.f32 %v785, %v787
          %v789 = vsub.f32 1.0, %v788
          %v790 = vmul.f32 %v787, %v789
          %v791 = vadd.f32 %v787, %v790
          %vm792 = vweird.f32 %v785
          %vm793 = vweird.f32 %v787
          %vm794 = vmor %vm792, %vm793
          %v795 = vsel %vm794, %v787, %v791
          %v796 = vand.u32 2147483647, %v785
          %vm797 = vcmp.eq.f32.partialorder %v796, 8.507059e+37
          %v798 = vand.u32 %v785, 2147483648
          %v799 = vor.u32 1.1754944e-38, %v798
          %v800 = vsel %vm797, %v799, %v795
          %v801 = vmul.f32 1.0, %v800
          %v802 = vrcp.pop %v786
          %v803 = vmul.f32 %v786, %v802
          %v804 = vsub.f32 1.0, %v803
          %v805 = vmul.f32 %v802, %v804
          %v806 = vadd.f32 %v802, %v805
          %vm807 = vweird.f32 %v786
          %vm808 = vweird.f32 %v802
          %vm809 = vmor %vm807, %vm808
          %v810 = vsel %vm809, %v802, %v806
          %v811 = vand.u32 2147483647, %v786
          %vm812 = vcmp.eq.f32.partialorder %v811, 8.507059e+37
          %v813 = vand.u32 %v786, 2147483648
          %v814 = vor.u32 1.1754944e-38, %v813
          %v815 = vsel %vm812, %v814, %v810
          %v816 = vmul.f32 1.0, %v815
          %v817 = vadd.f32 %v775, %v662
          %v818 = vmul.f32 %v801, %v817
          %v819 = vadd.f32 %v668, %v818
          %v820 = vtanh.pop %v819
          %v821 = vsub.f32 1.0, %v816
          %v822 = vmul.f32 %v821, %v820
          %v823 = vmul.f32 %v816, %v665
          %v824 = vadd.f32 %v822, %v823
          %v825 = vstv %s446
          %vm826 = vcmp.lt.s32.totalorder %v825, %v664
          %v827 = vsel %vm826, 1, 0
          %v828 = vcvt.s32.f32 %v827
          %830 = vset.pattern.permute.xlu0 0
          %831 = vperm.xlu0 %830, %v828
          %v832 = vpop.permute.xlu0 %831
          %v834 = vmul.f32 %v832, %v824
          %v835 = vsub.f32 1.0, %v828
          %837 = vset.pattern.permute.xlu0 0
          %838 = vperm.xlu0 %837, %v835
          %v839 = vpop.permute.xlu0 %838
          %v841 = vmul.f32 %v839, %v665
          %v842 = vadd.f32 %v834, %v841
          %843 = vst [vmem:[#allocation6] sm:$0xff] %v834
          %s844 = scalar_lea.vmem [#allocation5], 24
          %v845 = vld [vmem:[%s844] sm:$0xff]
          %v846 = vld [vmem:[%s844 + $0x8] sm:$0xff]
          %v847 = vld [vmem:[%s844 + $0x10] sm:$0xff]
          %v848 = vld [vmem:[#allocation14] sm:$0xff]
          %v849 = vld [vmem:[#allocation14 + $0x8] sm:$0xff]
          %v850 = vld [vmem:[#allocation14 + $0x10] sm:$0xff]
          %v851 = vld [vmem:[#allocation14 + $0x18] sm:$0xff]
          %v852 = vld [vmem:[#allocation14 + $0x20] sm:$0xff]
          %v853 = vld [vmem:[#allocation14 + $0x28] sm:$0xff]
          %v854 = vld [vmem:[#allocation14 + $0x30] sm:$0xff]
          %v855 = vld [vmem:[#allocation14 + $0x38] sm:$0xff]
          %v856 = vld [vmem:[#allocation14 + $0x40] sm:$0xff]
          %v857 = vld [vmem:[#allocation14 + $0x48] sm:$0xff]
          %v858 = vld [vmem:[#allocation14 + $0x50] sm:$0xff]
          %v859 = vld [vmem:[#allocation14 + $0x58] sm:$0xff]
          %v860 = vld [vmem:[#allocation14 + $0x60] sm:$0xff]
          %v861 = vld [vmem:[#allocation14 + $0x68] sm:$0xff]
          %v862 = vld [vmem:[#allocation14 + $0x70] sm:$0xff]
          %v863 = vld [vmem:[#allocation14 + $0x78] sm:$0xff]
          %v864 = vld [vmem:[#allocation14 + $0x80] sm:$0xff]
          %v865 = vld [vmem:[#allocation14 + $0x88] sm:$0xff]
          %v866 = vld [vmem:[#allocation14 + $0x90] sm:$0xff]
          %v867 = vld [vmem:[#allocation14 + $0x98] sm:$0xff]
          %v868 = vld [vmem:[#allocation14 + $0xa0] sm:$0xff]
          %v869 = vld [vmem:[#allocation14 + $0xa8] sm:$0xff]
          %v870 = vld [vmem:[#allocation14 + $0xb0] sm:$0xff]
          %v871 = vld [vmem:[#allocation14 + $0xb8] sm:$0xff]
          %v872 = vld [vmem:[#allocation14 + $0xc0] sm:$0xff]
          %v873 = vld [vmem:[#allocation14 + $0xc8] sm:$0xff]
          %v874 = vld [vmem:[#allocation14 + $0xd0] sm:$0xff]
          %v875 = vld [vmem:[#allocation14 + $0xd8] sm:$0xff]
          %v876 = vld [vmem:[#allocation14 + $0xe0] sm:$0xff]
          %v877 = vld [vmem:[#allocation14 + $0xe8] sm:$0xff]
          %v878 = vld [vmem:[#allocation14 + $0xf0] sm:$0xff]
          %v879 = vld [vmem:[#allocation14 + $0xf8] sm:$0xff]
          %v880 = vld [vmem:[#allocation14 + $0x100] sm:$0xff]
          %v881 = vld [vmem:[#allocation14 + $0x108] sm:$0xff]
          %v882 = vld [vmem:[#allocation14 + $0x110] sm:$0xff]
          %v883 = vld [vmem:[#allocation14 + $0x118] sm:$0xff]
          %v884 = vld [vmem:[#allocation14 + $0x120] sm:$0xff]
          %v885 = vld [vmem:[#allocation14 + $0x128] sm:$0xff]
          %v886 = vld [vmem:[#allocation14 + $0x130] sm:$0xff]
          %v887 = vld [vmem:[#allocation14 + $0x138] sm:$0xff]
          %v888 = vld [vmem:[#allocation14 + $0x140] sm:$0xff]
          %v889 = vld [vmem:[#allocation14 + $0x148] sm:$0xff]
          %v890 = vld [vmem:[#allocation14 + $0x150] sm:$0xff]
          %v891 = vld [vmem:[#allocation14 + $0x158] sm:$0xff]
          %v892 = vld [vmem:[#allocation14 + $0x160] sm:$0xff]
          %v893 = vld [vmem:[#allocation14 + $0x168] sm:$0xff]
          %v894 = vld [vmem:[#allocation14 + $0x170] sm:$0xff]
          %v895 = vld [vmem:[#allocation14 + $0x178] sm:$0xff]
          %896 = vmatpush.msra.mxu0 %v893
          %897 = vmatpush.msra.mxu0 %v890
          %898 = vmatpush.msra.mxu0 %v887
          %899 = vmatpush.msra.mxu0 %v884
          %900 = vmatpush.msra.mxu0 %v881
          %901 = vmatpush.msra.mxu0 %v878
          %902 = vmatpush.msra.mxu0 %v875
          %903 = vmatpush.msra.mxu0 %v872
          %904 = vmatpush.msra.mxu0 %v869
          %905 = vmatpush.msra.mxu0 %v866
          %906 = vmatpush.msra.mxu0 %v863
          %907 = vmatpush.msra.mxu0 %v860
          %908 = vmatpush.msra.mxu0 %v857
          %909 = vmatpush.msra.mxu0 %v854
          %910 = vmatpush.msra.mxu0 %v851
          %911 = vmatpush.msra.mxu0 %v848
          %912 = vmatmul.f32.gmra.mxu0 %v842
          %v913 = vpop.f32.mrf.mxu0
          %v914 = vadd.f32 0.0, %v913
          %915 = vdwg.mxu0
          %916 = vmatpush.msra.mxu0 %v894
          %917 = vmatpush.msra.mxu0 %v891
          %918 = vmatpush.msra.mxu0 %v888
          %919 = vmatpush.msra.mxu0 %v885
          %920 = vmatpush.msra.mxu0 %v882
          %921 = vmatpush.msra.mxu0 %v879
          %922 = vmatpush.msra.mxu0 %v876
          %923 = vmatpush.msra.mxu0 %v873
          %924 = vmatpush.msra.mxu0 %v870
          %925 = vmatpush.msra.mxu0 %v867
          %926 = vmatpush.msra.mxu0 %v864
          %927 = vmatpush.msra.mxu0 %v861
          %928 = vmatpush.msra.mxu0 %v858
          %929 = vmatpush.msra.mxu0 %v855
          %930 = vmatpush.msra.mxu0 %v852
          %931 = vmatpush.msra.mxu0 %v849
          %932 = vmatmul.f32.gmra.mxu0 %v842
          %v933 = vpop.f32.mrf.mxu0
          %v934 = vadd.f32 0.0, %v933
          %935 = vdwg.mxu0
          %936 = vmatpush.msra.mxu0 %v895
          %937 = vmatpush.msra.mxu0 %v892
          %938 = vmatpush.msra.mxu0 %v889
          %939 = vmatpush.msra.mxu0 %v886
          %940 = vmatpush.msra.mxu0 %v883
          %941 = vmatpush.msra.mxu0 %v880
          %942 = vmatpush.msra.mxu0 %v877
          %943 = vmatpush.msra.mxu0 %v874
          %944 = vmatpush.msra.mxu0 %v871
          %945 = vmatpush.msra.mxu0 %v868
          %946 = vmatpush.msra.mxu0 %v865
          %947 = vmatpush.msra.mxu0 %v862
          %948 = vmatpush.msra.mxu0 %v859
          %949 = vmatpush.msra.mxu0 %v856
          %950 = vmatpush.msra.mxu0 %v853
          %951 = vmatpush.msra.mxu0 %v850
          %952 = vmatmul.f32.gmra.mxu0 %v842
          %v953 = vpop.f32.mrf.mxu0
          %v954 = vadd.f32 0.0, %v953
          %955 = vdwg.mxu0
          %v956 = vadd.f32 %v845, %v914
          %v957 = vadd.f32 %v846, %v934
          %v958 = vxor.u32 %v956, 2147483648
          %v959 = vxor.u32 %v957, 2147483648
          %v960 = vmul.f32 %v958, 1.442695
          %v961 = vpow.pop %v960
          %v962 = vmul.f32 %v959, 1.442695
          %v963 = vpow.pop %v962
          %v964 = vadd.f32 %v961, 1.0
          %v965 = vadd.f32 %v963, 1.0
          %v966 = vrcp.pop %v964
          %v967 = vmul.f32 %v964, %v966
          %v968 = vsub.f32 1.0, %v967
          %v969 = vmul.f32 %v966, %v968
          %v970 = vadd.f32 %v966, %v969
          %vm971 = vweird.f32 %v964
          %vm972 = vweird.f32 %v966
          %vm973 = vmor %vm971, %vm972
          %v974 = vsel %vm973, %v966, %v970
          %v975 = vand.u32 2147483647, %v964
          %vm976 = vcmp.eq.f32.partialorder %v975, 8.507059e+37
          %v977 = vand.u32 %v964, 2147483648
          %v978 = vor.u32 1.1754944e-38, %v977
          %v979 = vsel %vm976, %v978, %v974
          %v980 = vmul.f32 1.0, %v979
          %v981 = vrcp.pop %v965
          %v982 = vmul.f32 %v965, %v981
          %v983 = vsub.f32 1.0, %v982
          %v984 = vmul.f32 %v981, %v983
          %v985 = vadd.f32 %v981, %v984
          %vm986 = vweird.f32 %v965
          %vm987 = vweird.f32 %v981
          %vm988 = vmor %vm986, %vm987
          %v989 = vsel %vm988, %v981, %v985
          %v990 = vand.u32 2147483647, %v965
          %vm991 = vcmp.eq.f32.partialorder %v990, 8.507059e+37
          %v992 = vand.u32 %v965, 2147483648
          %v993 = vor.u32 1.1754944e-38, %v992
          %v994 = vsel %vm991, %v993, %v989
          %v995 = vmul.f32 1.0, %v994
          %v996 = vadd.f32 %v954, %v662
          %v997 = vmul.f32 %v980, %v996
          %v998 = vadd.f32 %v847, %v997
          %v999 = vtanh.pop %v998
          %v1000 = vsub.f32 1.0, %v995
          %v1001 = vmul.f32 %v1000, %v999
          %v1002 = vmul.f32 %v995, %v842
          %v1003 = vadd.f32 %v1001, %v1002
          %s1004 = sadd.s32 %s446, 1
          %v1005 = vstv %s1004
          %vm1006 = vcmp.lt.s32.totalorder %v1005, %v664
          %v1007 = vsel %vm1006, 1, 0
          %v1008 = vcvt.s32.f32 %v1007
          %1010 = vset.pattern.permute.xlu0 0
          %1011 = vperm.xlu0 %1010, %v1008
          %v1012 = vpop.permute.xlu0 %1011
          %v1014 = vmul.f32 %v1012, %v1003
          %v1015 = vsub.f32 1.0, %v1008
          %1017 = vset.pattern.permute.xlu0 0
          %1018 = vperm.xlu0 %1017, %v1015
          %v1019 = vpop.permute.xlu0 %1018
          %v1021 = vmul.f32 %v1019, %v842
          %v1022 = vadd.f32 %v1014, %v1021
          %s1023 = scalar_lea.vmem [#allocation6], 8
          %1024 = vst [vmem:[%s1023] sm:$0xff] %v1014
          %s1025 = scalar_lea.vmem [#allocation5], 48
          %v1026 = vld [vmem:[%s1025] sm:$0xff]
          %v1027 = vld [vmem:[%s1025 + $0x8] sm:$0xff]
          %v1028 = vld [vmem:[%s1025 + $0x10] sm:$0xff]
          %v1029 = vld [vmem:[#allocation14] sm:$0xff]
          %v1030 = vld [vmem:[#allocation14 + $0x8] sm:$0xff]
          %v1031 = vld [vmem:[#allocation14 + $0x10] sm:$0xff]
          %v1032 = vld [vmem:[#allocation14 + $0x18] sm:$0xff]
          %v1033 = vld [vmem:[#allocation14 + $0x20] sm:$0xff]
          %v1034 = vld [vmem:[#allocation14 + $0x28] sm:$0xff]
          %v1035 = vld [vmem:[#allocation14 + $0x30] sm:$0xff]
          %v1036 = vld [vmem:[#allocation14 + $0x38] sm:$0xff]
          %v1037 = vld [vmem:[#allocation14 + $0x40] sm:$0xff]
          %v1038 = vld [vmem:[#allocation14 + $0x48] sm:$0xff]
          %v1039 = vld [vmem:[#allocation14 + $0x50] sm:$0xff]
          %v1040 = vld [vmem:[#allocation14 + $0x58] sm:$0xff]
          %v1041 = vld [vmem:[#allocation14 + $0x60] sm:$0xff]
          %v1042 = vld [vmem:[#allocation14 + $0x68] sm:$0xff]
          %v1043 = vld [vmem:[#allocation14 + $0x70] sm:$0xff]
          %v1044 = vld [vmem:[#allocation14 + $0x78] sm:$0xff]
          %v1045 = vld [vmem:[#allocation14 + $0x80] sm:$0xff]
          %v1046 = vld [vmem:[#allocation14 + $0x88] sm:$0xff]
          %v1047 = vld [vmem:[#allocation14 + $0x90] sm:$0xff]
          %v1048 = vld [vmem:[#allocation14 + $0x98] sm:$0xff]
          %v1049 = vld [vmem:[#allocation14 + $0xa0] sm:$0xff]
          %v1050 = vld [vmem:[#allocation14 + $0xa8] sm:$0xff]
          %v1051 = vld [vmem:[#allocation14 + $0xb0] sm:$0xff]
          %v1052 = vld [vmem:[#allocation14 + $0xb8] sm:$0xff]
          %v1053 = vld [vmem:[#allocation14 + $0xc0] sm:$0xff]
          %v1054 = vld [vmem:[#allocation14 + $0xc8] sm:$0xff]
          %v1055 = vld [vmem:[#allocation14 + $0xd0] sm:$0xff]
          %v1056 = vld [vmem:[#allocation14 + $0xd8] sm:$0xff]
          %v1057 = vld [vmem:[#allocation14 + $0xe0] sm:$0xff]
          %v1058 = vld [vmem:[#allocation14 + $0xe8] sm:$0xff]
          %v1059 = vld [vmem:[#allocation14 + $0xf0] sm:$0xff]
          %v1060 = vld [vmem:[#allocation14 + $0xf8] sm:$0xff]
          %v1061 = vld [vmem:[#allocation14 + $0x100] sm:$0xff]
          %v1062 = vld [vmem:[#allocation14 + $0x108] sm:$0xff]
          %v1063 = vld [vmem:[#allocation14 + $0x110] sm:$0xff]
          %v1064 = vld [vmem:[#allocation14 + $0x118] sm:$0xff]
          %v1065 = vld [vmem:[#allocation14 + $0x120] sm:$0xff]
          %v1066 = vld [vmem:[#allocation14 + $0x128] sm:$0xff]
          %v1067 = vld [vmem:[#allocation14 + $0x130] sm:$0xff]
          %v1068 = vld [vmem:[#allocation14 + $0x138] sm:$0xff]
          %v1069 = vld [vmem:[#allocation14 + $0x140] sm:$0xff]
          %v1070 = vld [vmem:[#allocation14 + $0x148] sm:$0xff]
          %v1071 = vld [vmem:[#allocation14 + $0x150] sm:$0xff]
          %v1072 = vld [vmem:[#allocation14 + $0x158] sm:$0xff]
          %v1073 = vld [vmem:[#allocation14 + $0x160] sm:$0xff]
          %v1074 = vld [vmem:[#allocation14 + $0x168] sm:$0xff]
          %v1075 = vld [vmem:[#allocation14 + $0x170] sm:$0xff]
          %v1076 = vld [vmem:[#allocation14 + $0x178] sm:$0xff]
          %1077 = vmatpush.msra.mxu0 %v1074
          %1078 = vmatpush.msra.mxu0 %v1071
          %1079 = vmatpush.msra.mxu0 %v1068
          %1080 = vmatpush.msra.mxu0 %v1065
          %1081 = vmatpush.msra.mxu0 %v1062
          %1082 = vmatpush.msra.mxu0 %v1059
          %1083 = vmatpush.msra.mxu0 %v1056
          %1084 = vmatpush.msra.mxu0 %v1053
          %1085 = vmatpush.msra.mxu0 %v1050
          %1086 = vmatpush.msra.mxu0 %v1047
          %1087 = vmatpush.msra.mxu0 %v1044
          %1088 = vmatpush.msra.mxu0 %v1041
          %1089 = vmatpush.msra.mxu0 %v1038
          %1090 = vmatpush.msra.mxu0 %v1035
          %1091 = vmatpush.msra.mxu0 %v1032
          %1092 = vmatpush.msra.mxu0 %v1029
          %1093 = vmatmul.f32.gmra.mxu0 %v1022
          %v1094 = vpop.f32.mrf.mxu0
          %v1095 = vadd.f32 0.0, %v1094
          %1096 = vdwg.mxu0
          %1097 = vmatpush.msra.mxu0 %v1075
          %1098 = vmatpush.msra.mxu0 %v1072
          %1099 = vmatpush.msra.mxu0 %v1069
          %1100 = vmatpush.msra.mxu0 %v1066
          %1101 = vmatpush.msra.mxu0 %v1063
          %1102 = vmatpush.msra.mxu0 %v1060
          %1103 = vmatpush.msra.mxu0 %v1057
          %1104 = vmatpush.msra.mxu0 %v1054
          %1105 = vmatpush.msra.mxu0 %v1051
          %1106 = vmatpush.msra.mxu0 %v1048
          %1107 = vmatpush.msra.mxu0 %v1045
          %1108 = vmatpush.msra.mxu0 %v1042
          %1109 = vmatpush.msra.mxu0 %v1039
          %1110 = vmatpush.msra.mxu0 %v1036
          %1111 = vmatpush.msra.mxu0 %v1033
          %1112 = vmatpush.msra.mxu0 %v1030
          %1113 = vmatmul.f32.gmra.mxu0 %v1022
          %v1114 = vpop.f32.mrf.mxu0
          %v1115 = vadd.f32 0.0, %v1114
          %1116 = vdwg.mxu0
          %1117 = vmatpush.msra.mxu0 %v1076
          %1118 = vmatpush.msra.mxu0 %v1073
          %1119 = vmatpush.msra.mxu0 %v1070
          %1120 = vmatpush.msra.mxu0 %v1067
          %1121 = vmatpush.msra.mxu0 %v1064
          %1122 = vmatpush.msra.mxu0 %v1061
          %1123 = vmatpush.msra.mxu0 %v1058
          %1124 = vmatpush.msra.mxu0 %v1055
          %1125 = vmatpush.msra.mxu0 %v1052
          %1126 = vmatpush.msra.mxu0 %v1049
          %1127 = vmatpush.msra.mxu0 %v1046
          %1128 = vmatpush.msra.mxu0 %v1043
          %1129 = vmatpush.msra.mxu0 %v1040
          %1130 = vmatpush.msra.mxu0 %v1037
          %1131 = vmatpush.msra.mxu0 %v1034
          %1132 = vmatpush.msra.mxu0 %v1031
          %1133 = vmatmul.f32.gmra.mxu0 %v1022
          %v1134 = vpop.f32.mrf.mxu0
          %v1135 = vadd.f32 0.0, %v1134
          %1136 = vdwg.mxu0
          %v1137 = vadd.f32 %v1026, %v1095
          %v1138 = vadd.f32 %v1027, %v1115
          %v1139 = vxor.u32 %v1137, 2147483648
          %v1140 = vxor.u32 %v1138, 2147483648
          %v1141 = vmul.f32 %v1139, 1.442695
          %v1142 = vpow.pop %v1141
          %v1143 = vmul.f32 %v1140, 1.442695
          %v1144 = vpow.pop %v1143
          %v1145 = vadd.f32 %v1142, 1.0
          %v1146 = vadd.f32 %v1144, 1.0
          %v1147 = vrcp.pop %v1145
          %v1148 = vmul.f32 %v1145, %v1147
          %v1149 = vsub.f32 1.0, %v1148
          %v1150 = vmul.f32 %v1147, %v1149
          %v1151 = vadd.f32 %v1147, %v1150
          %vm1152 = vweird.f32 %v1145
          %vm1153 = vweird.f32 %v1147
          %vm1154 = vmor %vm1152, %vm1153
          %v1155 = vsel %vm1154, %v1147, %v1151
          %v1156 = vand.u32 2147483647, %v1145
          %vm1157 = vcmp.eq.f32.partialorder %v1156, 8.507059e+37
          %v1158 = vand.u32 %v1145, 2147483648
          %v1159 = vor.u32 1.1754944e-38, %v1158
          %v1160 = vsel %vm1157, %v1159, %v1155
          %v1161 = vmul.f32 1.0, %v1160
          %v1162 = vrcp.pop %v1146
          %v1163 = vmul.f32 %v1146, %v1162
          %v1164 = vsub.f32 1.0, %v1163
          %v1165 = vmul.f32 %v1162, %v1164
          %v1166 = vadd.f32 %v1162, %v1165
          %vm1167 = vweird.f32 %v1146
          %vm1168 = vweird.f32 %v1162
          %vm1169 = vmor %vm1167, %vm1168
          %v1170 = vsel %vm1169, %v1162, %v1166
          %v1171 = vand.u32 2147483647, %v1146
          %vm1172 = vcmp.eq.f32.partialorder %v1171, 8.507059e+37
          %v1173 = vand.u32 %v1146, 2147483648
          %v1174 = vor.u32 1.1754944e-38, %v1173
          %v1175 = vsel %vm1172, %v1174, %v1170
          %v1176 = vmul.f32 1.0, %v1175
          %v1177 = vadd.f32 %v1135, %v662
          %v1178 = vmul.f32 %v1161, %v1177
          %v1179 = vadd.f32 %v1028, %v1178
          %v1180 = vtanh.pop %v1179
          %v1181 = vsub.f32 1.0, %v1176
          %v1182 = vmul.f32 %v1181, %v1180
          %v1183 = vmul.f32 %v1176, %v1022
          %v1184 = vadd.f32 %v1182, %v1183
          %s1185 = sadd.s32 %s446, 2
          %v1186 = vstv %s1185
          %vm1187 = vcmp.lt.s32.totalorder %v1186, %v664
          %v1188 = vsel %vm1187, 1, 0
          %v1189 = vcvt.s32.f32 %v1188
          %1191 = vset.pattern.permute.xlu0 0
          %1192 = vperm.xlu0 %1191, %v1189
          %v1193 = vpop.permute.xlu0 %1192
          %v1195 = vmul.f32 %v1193, %v1184
          %v1196 = vsub.f32 1.0, %v1189
          %1198 = vset.pattern.permute.xlu0 0
          %1199 = vperm.xlu0 %1198, %v1196
          %v1200 = vpop.permute.xlu0 %1199
          %v1202 = vmul.f32 %v1200, %v1022
          %v1203 = vadd.f32 %v1195, %v1202
          %s1204 = scalar_lea.vmem [#allocation6], 16
          %1205 = vst [vmem:[%s1204] sm:$0xff] %v1195
          %s1206 = scalar_lea.vmem [#allocation5], 72
          %v1207 = vld [vmem:[%s1206] sm:$0xff]
          %v1208 = vld [vmem:[%s1206 + $0x8] sm:$0xff]
          %v1209 = vld [vmem:[%s1206 + $0x10] sm:$0xff]
          %v1210 = vld [vmem:[#allocation14] sm:$0xff]
          %v1211 = vld [vmem:[#allocation14 + $0x8] sm:$0xff]
          %v1212 = vld [vmem:[#allocation14 + $0x10] sm:$0xff]
          %v1213 = vld [vmem:[#allocation14 + $0x18] sm:$0xff]
          %v1214 = vld [vmem:[#allocation14 + $0x20] sm:$0xff]
          %v1215 = vld [vmem:[#allocation14 + $0x28] sm:$0xff]
          %v1216 = vld [vmem:[#allocation14 + $0x30] sm:$0xff]
          %v1217 = vld [vmem:[#allocation14 + $0x38] sm:$0xff]
          %v1218 = vld [vmem:[#allocation14 + $0x40] sm:$0xff]
          %v1219 = vld [vmem:[#allocation14 + $0x48] sm:$0xff]
          %v1220 = vld [vmem:[#allocation14 + $0x50] sm:$0xff]
          %v1221 = vld [vmem:[#allocation14 + $0x58] sm:$0xff]
          %v1222 = vld [vmem:[#allocation14 + $0x60] sm:$0xff]
          %v1223 = vld [vmem:[#allocation14 + $0x68] sm:$0xff]
          %v1224 = vld [vmem:[#allocation14 + $0x70] sm:$0xff]
          %v1225 = vld [vmem:[#allocation14 + $0x78] sm:$0xff]
          %v1226 = vld [vmem:[#allocation14 + $0x80] sm:$0xff]
          %v1227 = vld [vmem:[#allocation14 + $0x88] sm:$0xff]
          %v1228 = vld [vmem:[#allocation14 + $0x90] sm:$0xff]
          %v1229 = vld [vmem:[#allocation14 + $0x98] sm:$0xff]
          %v1230 = vld [vmem:[#allocation14 + $0xa0] sm:$0xff]
          %v1231 = vld [vmem:[#allocation14 + $0xa8] sm:$0xff]
          %v1232 = vld [vmem:[#allocation14 + $0xb0] sm:$0xff]
          %v1233 = vld [vmem:[#allocation14 + $0xb8] sm:$0xff]
          %v1234 = vld [vmem:[#allocation14 + $0xc0] sm:$0xff]
          %v1235 = vld [vmem:[#allocation14 + $0xc8] sm:$0xff]
          %v1236 = vld [vmem:[#allocation14 + $0xd0] sm:$0xff]
          %v1237 = vld [vmem:[#allocation14 + $0xd8] sm:$0xff]
          %v1238 = vld [vmem:[#allocation14 + $0xe0] sm:$0xff]
          %v1239 = vld [vmem:[#allocation14 + $0xe8] sm:$0xff]
          %v1240 = vld [vmem:[#allocation14 + $0xf0] sm:$0xff]
          %v1241 = vld [vmem:[#allocation14 + $0xf8] sm:$0xff]
          %v1242 = vld [vmem:[#allocation14 + $0x100] sm:$0xff]
          %v1243 = vld [vmem:[#allocation14 + $0x108] sm:$0xff]
          %v1244 = vld [vmem:[#allocation14 + $0x110] sm:$0xff]
          %v1245 = vld [vmem:[#allocation14 + $0x118] sm:$0xff]
          %v1246 = vld [vmem:[#allocation14 + $0x120] sm:$0xff]
          %v1247 = vld [vmem:[#allocation14 + $0x128] sm:$0xff]
          %v1248 = vld [vmem:[#allocation14 + $0x130] sm:$0xff]
          %v1249 = vld [vmem:[#allocation14 + $0x138] sm:$0xff]
          %v1250 = vld [vmem:[#allocation14 + $0x140] sm:$0xff]
          %v1251 = vld [vmem:[#allocation14 + $0x148] sm:$0xff]
          %v1252 = vld [vmem:[#allocation14 + $0x150] sm:$0xff]
          %v1253 = vld [vmem:[#allocation14 + $0x158] sm:$0xff]
          %v1254 = vld [vmem:[#allocation14 + $0x160] sm:$0xff]
          %v1255 = vld [vmem:[#allocation14 + $0x168] sm:$0xff]
          %v1256 = vld [vmem:[#allocation14 + $0x170] sm:$0xff]
          %v1257 = vld [vmem:[#allocation14 + $0x178] sm:$0xff]
          %1258 = vmatpush.msra.mxu0 %v1255
          %1259 = vmatpush.msra.mxu0 %v1252
          %1260 = vmatpush.msra.mxu0 %v1249
          %1261 = vmatpush.msra.mxu0 %v1246
          %1262 = vmatpush.msra.mxu0 %v1243
          %1263 = vmatpush.msra.mxu0 %v1240
          %1264 = vmatpush.msra.mxu0 %v1237
          %1265 = vmatpush.msra.mxu0 %v1234
          %1266 = vmatpush.msra.mxu0 %v1231
          %1267 = vmatpush.msra.mxu0 %v1228
          %1268 = vmatpush.msra.mxu0 %v1225
          %1269 = vmatpush.msra.mxu0 %v1222
          %1270 = vmatpush.msra.mxu0 %v1219
          %1271 = vmatpush.msra.mxu0 %v1216
          %1272 = vmatpush.msra.mxu0 %v1213
          %1273 = vmatpush.msra.mxu0 %v1210
          %1274 = vmatmul.f32.gmra.mxu0 %v1203
          %v1275 = vpop.f32.mrf.mxu0
          %v1276 = vadd.f32 0.0, %v1275
          %1277 = vdwg.mxu0
          %1278 = vmatpush.msra.mxu0 %v1256
          %1279 = vmatpush.msra.mxu0 %v1253
          %1280 = vmatpush.msra.mxu0 %v1250
          %1281 = vmatpush.msra.mxu0 %v1247
          %1282 = vmatpush.msra.mxu0 %v1244
          %1283 = vmatpush.msra.mxu0 %v1241
          %1284 = vmatpush.msra.mxu0 %v1238
          %1285 = vmatpush.msra.mxu0 %v1235
          %1286 = vmatpush.msra.mxu0 %v1232
          %1287 = vmatpush.msra.mxu0 %v1229
          %1288 = vmatpush.msra.mxu0 %v1226
          %1289 = vmatpush.msra.mxu0 %v1223
          %1290 = vmatpush.msra.mxu0 %v1220
          %1291 = vmatpush.msra.mxu0 %v1217
          %1292 = vmatpush.msra.mxu0 %v1214
          %1293 = vmatpush.msra.mxu0 %v1211
          %1294 = vmatmul.f32.gmra.mxu0 %v1203
          %v1295 = vpop.f32.mrf.mxu0
          %v1296 = vadd.f32 0.0, %v1295
          %1297 = vdwg.mxu0
          %1298 = vmatpush.msra.mxu0 %v1257
          %1299 = vmatpush.msra.mxu0 %v1254
          %1300 = vmatpush.msra.mxu0 %v1251
          %1301 = vmatpush.msra.mxu0 %v1248
          %1302 = vmatpush.msra.mxu0 %v1245
          %1303 = vmatpush.msra.mxu0 %v1242
          %1304 = vmatpush.msra.mxu0 %v1239
          %1305 = vmatpush.msra.mxu0 %v1236
          %1306 = vmatpush.msra.mxu0 %v1233
          %1307 = vmatpush.msra.mxu0 %v1230
          %1308 = vmatpush.msra.mxu0 %v1227
          %1309 = vmatpush.msra.mxu0 %v1224
          %1310 = vmatpush.msra.mxu0 %v1221
          %1311 = vmatpush.msra.mxu0 %v1218
          %1312 = vmatpush.msra.mxu0 %v1215
          %1313 = vmatpush.msra.mxu0 %v1212
          %1314 = vmatmul.f32.gmra.mxu0 %v1203
          %v1315 = vpop.f32.mrf.mxu0
          %v1316 = vadd.f32 0.0, %v1315
          %1317 = vdwg.mxu0
          %v1318 = vadd.f32 %v1207, %v1276
          %v1319 = vadd.f32 %v1208, %v1296
          %v1320 = vxor.u32 %v1318, 2147483648
          %v1321 = vxor.u32 %v1319, 2147483648
          %v1322 = vmul.f32 %v1320, 1.442695
          %v1323 = vpow.pop %v1322
          %v1324 = vmul.f32 %v1321, 1.442695
          %v1325 = vpow.pop %v1324
          %v1326 = vadd.f32 %v1323, 1.0
          %v1327 = vadd.f32 %v1325, 1.0
          %v1328 = vrcp.pop %v1326
          %v1329 = vmul.f32 %v1326, %v1328
          %v1330 = vsub.f32 1.0, %v1329
          %v1331 = vmul.f32 %v1328, %v1330
          %v1332 = vadd.f32 %v1328, %v1331
          %vm1333 = vweird.f32 %v1326
          %vm1334 = vweird.f32 %v1328
          %vm1335 = vmor %vm1333, %vm1334
          %v1336 = vsel %vm1335, %v1328, %v1332
          %v1337 = vand.u32 2147483647, %v1326
          %vm1338 = vcmp.eq.f32.partialorder %v1337, 8.507059e+37
          %v1339 = vand.u32 %v1326, 2147483648
          %v1340 = vor.u32 1.1754944e-38, %v1339
          %v1341 = vsel %vm1338, %v1340, %v1336
          %v1342 = vmul.f32 1.0, %v1341
          %v1343 = vrcp.pop %v1327
          %v1344 = vmul.f32 %v1327, %v1343
          %v1345 = vsub.f32 1.0, %v1344
          %v1346 = vmul.f32 %v1343, %v1345
          %v1347 = vadd.f32 %v1343, %v1346
          %vm1348 = vweird.f32 %v1327
          %vm1349 = vweird.f32 %v1343
          %vm1350 = vmor %vm1348, %vm1349
          %v1351 = vsel %vm1350, %v1343, %v1347
          %v1352 = vand.u32 2147483647, %v1327
          %vm1353 = vcmp.eq.f32.partialorder %v1352, 8.507059e+37
          %v1354 = vand.u32 %v1327, 2147483648
          %v1355 = vor.u32 1.1754944e-38, %v1354
          %v1356 = vsel %vm1353, %v1355, %v1351
          %v1357 = vmul.f32 1.0, %v1356
          %v1358 = vadd.f32 %v1316, %v662
          %v1359 = vmul.f32 %v1342, %v1358
          %v1360 = vadd.f32 %v1209, %v1359
          %v1361 = vtanh.pop %v1360
          %v1362 = vsub.f32 1.0, %v1357
          %v1363 = vmul.f32 %v1362, %v1361
          %v1364 = vmul.f32 %v1357, %v1203
          %v1365 = vadd.f32 %v1363, %v1364
          %s1366 = sadd.s32 %s446, 3
          %v1367 = vstv %s1366
          %vm1368 = vcmp.lt.s32.totalorder %v1367, %v664
          %v1369 = vsel %vm1368, 1, 0
          %v1370 = vcvt.s32.f32 %v1369
          %1372 = vset.pattern.permute.xlu0 0
          %1373 = vperm.xlu0 %1372, %v1370
          %v1374 = vpop.permute.xlu0 %1373
          %v1376 = vmul.f32 %v1374, %v1365
          %v1377 = vsub.f32 1.0, %v1370
          %1379 = vset.pattern.permute.xlu0 0
          %1380 = vperm.xlu0 %1379, %v1377
          %v1381 = vpop.permute.xlu0 %1380
          %v1383 = vmul.f32 %v1381, %v1203
          %v1384 = vadd.f32 %v1376, %v1383
          %s1385 = scalar_lea.vmem [#allocation6], 24
          %1386 = vst [vmem:[%s1385] sm:$0xff] %v1376
          %s1387 = scalar_lea.vmem [#allocation5], 96
          %v1388 = vld [vmem:[%s1387] sm:$0xff]
          %v1389 = vld [vmem:[%s1387 + $0x8] sm:$0xff]
          %v1390 = vld [vmem:[%s1387 + $0x10] sm:$0xff]
          %v1391 = vld [vmem:[#allocation14] sm:$0xff]
          %v1392 = vld [vmem:[#allocation14 + $0x8] sm:$0xff]
          %v1393 = vld [vmem:[#allocation14 + $0x10] sm:$0xff]
          %v1394 = vld [vmem:[#allocation14 + $0x18] sm:$0xff]
          %v1395 = vld [vmem:[#allocation14 + $0x20] sm:$0xff]
          %v1396 = vld [vmem:[#allocation14 + $0x28] sm:$0xff]
          %v1397 = vld [vmem:[#allocation14 + $0x30] sm:$0xff]
          %v1398 = vld [vmem:[#allocation14 + $0x38] sm:$0xff]
          %v1399 = vld [vmem:[#allocation14 + $0x40] sm:$0xff]
          %v1400 = vld [vmem:[#allocation14 + $0x48] sm:$0xff]
          %v1401 = vld [vmem:[#allocation14 + $0x50] sm:$0xff]
          %v1402 = vld [vmem:[#allocation14 + $0x58] sm:$0xff]
          %v1403 = vld [vmem:[#allocation14 + $0x60] sm:$0xff]
          %v1404 = vld [vmem:[#allocation14 + $0x68] sm:$0xff]
          %v1405 = vld [vmem:[#allocation14 + $0x70] sm:$0xff]
          %v1406 = vld [vmem:[#allocation14 + $0x78] sm:$0xff]
          %v1407 = vld [vmem:[#allocation14 + $0x80] sm:$0xff]
          %v1408 = vld [vmem:[#allocation14 + $0x88] sm:$0xff]
          %v1409 = vld [vmem:[#allocation14 + $0x90] sm:$0xff]
          %v1410 = vld [vmem:[#allocation14 + $0x98] sm:$0xff]
          %v1411 = vld [vmem:[#allocation14 + $0xa0] sm:$0xff]
          %v1412 = vld [vmem:[#allocation14 + $0xa8] sm:$0xff]
          %v1413 = vld [vmem:[#allocation14 + $0xb0] sm:$0xff]
          %v1414 = vld [vmem:[#allocation14 + $0xb8] sm:$0xff]
          %v1415 = vld [vmem:[#allocation14 + $0xc0] sm:$0xff]
          %v1416 = vld [vmem:[#allocation14 + $0xc8] sm:$0xff]
          %v1417 = vld [vmem:[#allocation14 + $0xd0] sm:$0xff]
          %v1418 = vld [vmem:[#allocation14 + $0xd8] sm:$0xff]
          %v1419 = vld [vmem:[#allocation14 + $0xe0] sm:$0xff]
          %v1420 = vld [vmem:[#allocation14 + $0xe8] sm:$0xff]
          %v1421 = vld [vmem:[#allocation14 + $0xf0] sm:$0xff]
          %v1422 = vld [vmem:[#allocation14 + $0xf8] sm:$0xff]
          %v1423 = vld [vmem:[#allocation14 + $0x100] sm:$0xff]
          %v1424 = vld [vmem:[#allocation14 + $0x108] sm:$0xff]
          %v1425 = vld [vmem:[#allocation14 + $0x110] sm:$0xff]
          %v1426 = vld [vmem:[#allocation14 + $0x118] sm:$0xff]
          %v1427 = vld [vmem:[#allocation14 + $0x120] sm:$0xff]
          %v1428 = vld [vmem:[#allocation14 + $0x128] sm:$0xff]
          %v1429 = vld [vmem:[#allocation14 + $0x130] sm:$0xff]
          %v1430 = vld [vmem:[#allocation14 + $0x138] sm:$0xff]
          %v1431 = vld [vmem:[#allocation14 + $0x140] sm:$0xff]
          %v1432 = vld [vmem:[#allocation14 + $0x148] sm:$0xff]
          %v1433 = vld [vmem:[#allocation14 + $0x150] sm:$0xff]
          %v1434 = vld [vmem:[#allocation14 + $0x158] sm:$0xff]
          %v1435 = vld [vmem:[#allocation14 + $0x160] sm:$0xff]
          %v1436 = vld [vmem:[#allocation14 + $0x168] sm:$0xff]
          %v1437 = vld [vmem:[#allocation14 + $0x170] sm:$0xff]
          %v1438 = vld [vmem:[#allocation14 + $0x178] sm:$0xff]
          %1439 = vmatpush.msra.mxu0 %v1436
          %1440 = vmatpush.msra.mxu0 %v1433
          %1441 = vmatpush.msra.mxu0 %v1430
          %1442 = vmatpush.msra.mxu0 %v1427
          %1443 = vmatpush.msra.mxu0 %v1424
          %1444 = vmatpush.msra.mxu0 %v1421
          %1445 = vmatpush.msra.mxu0 %v1418
          %1446 = vmatpush.msra.mxu0 %v1415
          %1447 = vmatpush.msra.mxu0 %v1412
          %1448 = vmatpush.msra.mxu0 %v1409
          %1449 = vmatpush.msra.mxu0 %v1406
          %1450 = vmatpush.msra.mxu0 %v1403
          %1451 = vmatpush.msra.mxu0 %v1400
          %1452 = vmatpush.msra.mxu0 %v1397
          %1453 = vmatpush.msra.mxu0 %v1394
          %1454 = vmatpush.msra.mxu0 %v1391
          %1455 = vmatmul.f32.gmra.mxu0 %v1384
          %v1456 = vpop.f32.mrf.mxu0
          %v1457 = vadd.f32 0.0, %v1456
          %1458 = vdwg.mxu0
          %1459 = vmatpush.msra.mxu0 %v1437
          %1460 = vmatpush.msra.mxu0 %v1434
          %1461 = vmatpush.msra.mxu0 %v1431
          %1462 = vmatpush.msra.mxu0 %v1428
          %1463 = vmatpush.msra.mxu0 %v1425
          %1464 = vmatpush.msra.mxu0 %v1422
          %1465 = vmatpush.msra.mxu0 %v1419
          %1466 = vmatpush.msra.mxu0 %v1416
          %1467 = vmatpush.msra.mxu0 %v1413
          %1468 = vmatpush.msra.mxu0 %v1410
          %1469 = vmatpush.msra.mxu0 %v1407
          %1470 = vmatpush.msra.mxu0 %v1404
          %1471 = vmatpush.msra.mxu0 %v1401
          %1472 = vmatpush.msra.mxu0 %v1398
          %1473 = vmatpush.msra.mxu0 %v1395
          %1474 = vmatpush.msra.mxu0 %v1392
          %1475 = vmatmul.f32.gmra.mxu0 %v1384
          %v1476 = vpop.f32.mrf.mxu0
          %v1477 = vadd.f32 0.0, %v1476
          %1478 = vdwg.mxu0
          %1479 = vmatpush.msra.mxu0 %v1438
          %1480 = vmatpush.msra.mxu0 %v1435
          %1481 = vmatpush.msra.mxu0 %v1432
          %1482 = vmatpush.msra.mxu0 %v1429
          %1483 = vmatpush.msra.mxu0 %v1426
          %1484 = vmatpush.msra.mxu0 %v1423
          %1485 = vmatpush.msra.mxu0 %v1420
          %1486 = vmatpush.msra.mxu0 %v1417
          %1487 = vmatpush.msra.mxu0 %v1414
          %1488 = vmatpush.msra.mxu0 %v1411
          %1489 = vmatpush.msra.mxu0 %v1408
          %1490 = vmatpush.msra.mxu0 %v1405
          %1491 = vmatpush.msra.mxu0 %v1402
          %1492 = vmatpush.msra.mxu0 %v1399
          %1493 = vmatpush.msra.mxu0 %v1396
          %1494 = vmatpush.msra.mxu0 %v1393
          %1495 = vmatmul.f32.gmra.mxu0 %v1384
          %v1496 = vpop.f32.mrf.mxu0
          %v1497 = vadd.f32 0.0, %v1496
          %1498 = vdwg.mxu0
          %v1499 = vadd.f32 %v1388, %v1457
          %v1500 = vadd.f32 %v1389, %v1477
          %v1501 = vxor.u32 %v1499, 2147483648
          %v1502 = vxor.u32 %v1500, 2147483648
          %v1503 = vmul.f32 %v1501, 1.442695
          %v1504 = vpow.pop %v1503
          %v1505 = vmul.f32 %v1502, 1.442695
          %v1506 = vpow.pop %v1505
          %v1507 = vadd.f32 %v1504, 1.0
          %v1508 = vadd.f32 %v1506, 1.0
          %v1509 = vrcp.pop %v1507
          %v1510 = vmul.f32 %v1507, %v1509
          %v1511 = vsub.f32 1.0, %v1510
          %v1512 = vmul.f32 %v1509, %v1511
          %v1513 = vadd.f32 %v1509, %v1512
          %vm1514 = vweird.f32 %v1507
          %vm1515 = vweird.f32 %v1509
          %vm1516 = vmor %vm1514, %vm1515
          %v1517 = vsel %vm1516, %v1509, %v1513
          %v1518 = vand.u32 2147483647, %v1507
          %vm1519 = vcmp.eq.f32.partialorder %v1518, 8.507059e+37
          %v1520 = vand.u32 %v1507, 2147483648
          %v1521 = vor.u32 1.1754944e-38, %v1520
          %v1522 = vsel %vm1519, %v1521, %v1517
          %v1523 = vmul.f32 1.0, %v1522
          %v1524 = vrcp.pop %v1508
          %v1525 = vmul.f32 %v1508, %v1524
          %v1526 = vsub.f32 1.0, %v1525
          %v1527 = vmul.f32 %v1524, %v1526
          %v1528 = vadd.f32 %v1524, %v1527
          %vm1529 = vweird.f32 %v1508
          %vm1530 = vweird.f32 %v1524
          %vm1531 = vmor %vm1529, %vm1530
          %v1532 = vsel %vm1531, %v1524, %v1528
          %v1533 = vand.u32 2147483647, %v1508
          %vm1534 = vcmp.eq.f32.partialorder %v1533, 8.507059e+37
          %v1535 = vand.u32 %v1508, 2147483648
          %v1536 = vor.u32 1.1754944e-38, %v1535
          %v1537 = vsel %vm1534, %v1536, %v1532
          %v1538 = vmul.f32 1.0, %v1537
          %v1539 = vadd.f32 %v1497, %v662
          %v1540 = vmul.f32 %v1523, %v1539
          %v1541 = vadd.f32 %v1390, %v1540
          %v1542 = vtanh.pop %v1541
          %v1543 = vsub.f32 1.0, %v1538
          %v1544 = vmul.f32 %v1543, %v1542
          %v1545 = vmul.f32 %v1538, %v1384
          %v1546 = vadd.f32 %v1544, %v1545
          %s1547 = sadd.s32 %s446, 4
          %v1548 = vstv %s1547
          %vm1549 = vcmp.lt.s32.totalorder %v1548, %v664
          %v1550 = vsel %vm1549, 1, 0
          %v1551 = vcvt.s32.f32 %v1550
          %1553 = vset.pattern.permute.xlu0 0
          %1554 = vperm.xlu0 %1553, %v1551
          %v1555 = vpop.permute.xlu0 %1554
          %v1557 = vmul.f32 %v1555, %v1546
          %v1558 = vsub.f32 1.0, %v1551
          %1560 = vset.pattern.permute.xlu0 0
          %1561 = vperm.xlu0 %1560, %v1558
          %v1562 = vpop.permute.xlu0 %1561
          %v1564 = vmul.f32 %v1562, %v1384
          %v1565 = vadd.f32 %v1557, %v1564
          %s1566 = scalar_lea.vmem [#allocation6], 32
          %1567 = vst [vmem:[%s1566] sm:$0xff] %v1557
          %s1568 = scalar_lea.vmem [#allocation5], 120
          %v1569 = vld [vmem:[%s1568] sm:$0xff]
          %v1570 = vld [vmem:[%s1568 + $0x8] sm:$0xff]
          %v1571 = vld [vmem:[%s1568 + $0x10] sm:$0xff]
          %v1572 = vld [vmem:[#allocation14] sm:$0xff]
          %v1573 = vld [vmem:[#allocation14 + $0x8] sm:$0xff]
          %v1574 = vld [vmem:[#allocation14 + $0x10] sm:$0xff]
          %v1575 = vld [vmem:[#allocation14 + $0x18] sm:$0xff]
          %v1576 = vld [vmem:[#allocation14 + $0x20] sm:$0xff]
          %v1577 = vld [vmem:[#allocation14 + $0x28] sm:$0xff]
          %v1578 = vld [vmem:[#allocation14 + $0x30] sm:$0xff]
          %v1579 = vld [vmem:[#allocation14 + $0x38] sm:$0xff]
          %v1580 = vld [vmem:[#allocation14 + $0x40] sm:$0xff]
          %v1581 = vld [vmem:[#allocation14 + $0x48] sm:$0xff]
          %v1582 = vld [vmem:[#allocation14 + $0x50] sm:$0xff]
          %v1583 = vld [vmem:[#allocation14 + $0x58] sm:$0xff]
          %v1584 = vld [vmem:[#allocation14 + $0x60] sm:$0xff]
          %v1585 = vld [vmem:[#allocation14 + $0x68] sm:$0xff]
          %v1586 = vld [vmem:[#allocation14 + $0x70] sm:$0xff]
          %v1587 = vld [vmem:[#allocation14 + $0x78] sm:$0xff]
          %v1588 = vld [vmem:[#allocation14 + $0x80] sm:$0xff]
          %v1589 = vld [vmem:[#allocation14 + $0x88] sm:$0xff]
          %v1590 = vld [vmem:[#allocation14 + $0x90] sm:$0xff]
          %v1591 = vld [vmem:[#allocation14 + $0x98] sm:$0xff]
          %v1592 = vld [vmem:[#allocation14 + $0xa0] sm:$0xff]
          %v1593 = vld [vmem:[#allocation14 + $0xa8] sm:$0xff]
          %v1594 = vld [vmem:[#allocation14 + $0xb0] sm:$0xff]
          %v1595 = vld [vmem:[#allocation14 + $0xb8] sm:$0xff]
          %v1596 = vld [vmem:[#allocation14 + $0xc0] sm:$0xff]
          %v1597 = vld [vmem:[#allocation14 + $0xc8] sm:$0xff]
          %v1598 = vld [vmem:[#allocation14 + $0xd0] sm:$0xff]
          %v1599 = vld [vmem:[#allocation14 + $0xd8] sm:$0xff]
          %v1600 = vld [vmem:[#allocation14 + $0xe0] sm:$0xff]
          %v1601 = vld [vmem:[#allocation14 + $0xe8] sm:$0xff]
          %v1602 = vld [vmem:[#allocation14 + $0xf0] sm:$0xff]
          %v1603 = vld [vmem:[#allocation14 + $0xf8] sm:$0xff]
          %v1604 = vld [vmem:[#allocation14 + $0x100] sm:$0xff]
          %v1605 = vld [vmem:[#allocation14 + $0x108] sm:$0xff]
          %v1606 = vld [vmem:[#allocation14 + $0x110] sm:$0xff]
          %v1607 = vld [vmem:[#allocation14 + $0x118] sm:$0xff]
          %v1608 = vld [vmem:[#allocation14 + $0x120] sm:$0xff]
          %v1609 = vld [vmem:[#allocation14 + $0x128] sm:$0xff]
          %v1610 = vld [vmem:[#allocation14 + $0x130] sm:$0xff]
          %v1611 = vld [vmem:[#allocation14 + $0x138] sm:$0xff]
          %v1612 = vld [vmem:[#allocation14 + $0x140] sm:$0xff]
          %v1613 = vld [vmem:[#allocation14 + $0x148] sm:$0xff]
          %v1614 = vld [vmem:[#allocation14 + $0x150] sm:$0xff]
          %v1615 = vld [vmem:[#allocation14 + $0x158] sm:$0xff]
          %v1616 = vld [vmem:[#allocation14 + $0x160] sm:$0xff]
          %v1617 = vld [vmem:[#allocation14 + $0x168] sm:$0xff]
          %v1618 = vld [vmem:[#allocation14 + $0x170] sm:$0xff]
          %v1619 = vld [vmem:[#allocation14 + $0x178] sm:$0xff]
          %1620 = vmatpush.msra.mxu0 %v1617
          %1621 = vmatpush.msra.mxu0 %v1614
          %1622 = vmatpush.msra.mxu0 %v1611
          %1623 = vmatpush.msra.mxu0 %v1608
          %1624 = vmatpush.msra.mxu0 %v1605
          %1625 = vmatpush.msra.mxu0 %v1602
          %1626 = vmatpush.msra.mxu0 %v1599
          %1627 = vmatpush.msra.mxu0 %v1596
          %1628 = vmatpush.msra.mxu0 %v1593
          %1629 = vmatpush.msra.mxu0 %v1590
          %1630 = vmatpush.msra.mxu0 %v1587
          %1631 = vmatpush.msra.mxu0 %v1584
          %1632 = vmatpush.msra.mxu0 %v1581
          %1633 = vmatpush.msra.mxu0 %v1578
          %1634 = vmatpush.msra.mxu0 %v1575
          %1635 = vmatpush.msra.mxu0 %v1572
          %1636 = vmatmul.f32.gmra.mxu0 %v1565
          %v1637 = vpop.f32.mrf.mxu0
          %v1638 = vadd.f32 0.0, %v1637
          %1639 = vdwg.mxu0
          %1640 = vmatpush.msra.mxu0 %v1618
          %1641 = vmatpush.msra.mxu0 %v1615
          %1642 = vmatpush.msra.mxu0 %v1612
          %1643 = vmatpush.msra.mxu0 %v1609
          %1644 = vmatpush.msra.mxu0 %v1606
          %1645 = vmatpush.msra.mxu0 %v1603
          %1646 = vmatpush.msra.mxu0 %v1600
          %1647 = vmatpush.msra.mxu0 %v1597
          %1648 = vmatpush.msra.mxu0 %v1594
          %1649 = vmatpush.msra.mxu0 %v1591
          %1650 = vmatpush.msra.mxu0 %v1588
          %1651 = vmatpush.msra.mxu0 %v1585
          %1652 = vmatpush.msra.mxu0 %v1582
          %1653 = vmatpush.msra.mxu0 %v1579
          %1654 = vmatpush.msra.mxu0 %v1576
          %1655 = vmatpush.msra.mxu0 %v1573
          %1656 = vmatmul.f32.gmra.mxu0 %v1565
          %v1657 = vpop.f32.mrf.mxu0
          %v1658 = vadd.f32 0.0, %v1657
          %1659 = vdwg.mxu0
          %1660 = vmatpush.msra.mxu0 %v1619
          %1661 = vmatpush.msra.mxu0 %v1616
          %1662 = vmatpush.msra.mxu0 %v1613
          %1663 = vmatpush.msra.mxu0 %v1610
          %1664 = vmatpush.msra.mxu0 %v1607
          %1665 = vmatpush.msra.mxu0 %v1604
          %1666 = vmatpush.msra.mxu0 %v1601
          %1667 = vmatpush.msra.mxu0 %v1598
          %1668 = vmatpush.msra.mxu0 %v1595
          %1669 = vmatpush.msra.mxu0 %v1592
          %1670 = vmatpush.msra.mxu0 %v1589
          %1671 = vmatpush.msra.mxu0 %v1586
          %1672 = vmatpush.msra.mxu0 %v1583
          %1673 = vmatpush.msra.mxu0 %v1580
          %1674 = vmatpush.msra.mxu0 %v1577
          %1675 = vmatpush.msra.mxu0 %v1574
          %1676 = vmatmul.f32.gmra.mxu0 %v1565
          %v1677 = vpop.f32.mrf.mxu0
          %v1678 = vadd.f32 0.0, %v1677
          %1679 = vdwg.mxu0
          %v1680 = vadd.f32 %v1569, %v1638
          %v1681 = vadd.f32 %v1570, %v1658
          %v1682 = vxor.u32 %v1680, 2147483648
          %v1683 = vxor.u32 %v1681, 2147483648
          %v1684 = vmul.f32 %v1682, 1.442695
          %v1685 = vpow.pop %v1684
          %v1686 = vmul.f32 %v1683, 1.442695
          %v1687 = vpow.pop %v1686
          %v1688 = vadd.f32 %v1685, 1.0
          %v1689 = vadd.f32 %v1687, 1.0
          %v1690 = vrcp.pop %v1688
          %v1691 = vmul.f32 %v1688, %v1690
          %v1692 = vsub.f32 1.0, %v1691
          %v1693 = vmul.f32 %v1690, %v1692
          %v1694 = vadd.f32 %v1690, %v1693
          %vm1695 = vweird.f32 %v1688
          %vm1696 = vweird.f32 %v1690
          %vm1697 = vmor %vm1695, %vm1696
          %v1698 = vsel %vm1697, %v1690, %v1694
          %v1699 = vand.u32 2147483647, %v1688
          %vm1700 = vcmp.eq.f32.partialorder %v1699, 8.507059e+37
          %v1701 = vand.u32 %v1688, 2147483648
          %v1702 = vor.u32 1.1754944e-38, %v1701
          %v1703 = vsel %vm1700, %v1702, %v1698
          %v1704 = vmul.f32 1.0, %v1703
          %v1705 = vrcp.pop %v1689
          %v1706 = vmul.f32 %v1689, %v1705
          %v1707 = vsub.f32 1.0, %v1706
          %v1708 = vmul.f32 %v1705, %v1707
          %v1709 = vadd.f32 %v1705, %v1708
          %vm1710 = vweird.f32 %v1689
          %vm1711 = vweird.f32 %v1705
          %vm1712 = vmor %vm1710, %vm1711
          %v1713 = vsel %vm1712, %v1705, %v1709
          %v1714 = vand.u32 2147483647, %v1689
          %vm1715 = vcmp.eq.f32.partialorder %v1714, 8.507059e+37
          %v1716 = vand.u32 %v1689, 2147483648
          %v1717 = vor.u32 1.1754944e-38, %v1716
          %v1718 = vsel %vm1715, %v1717, %v1713
          %v1719 = vmul.f32 1.0, %v1718
          %v1720 = vadd.f32 %v1678, %v662
          %v1721 = vmul.f32 %v1704, %v1720
          %v1722 = vadd.f32 %v1571, %v1721
          %v1723 = vtanh.pop %v1722
          %v1724 = vsub.f32 1.0, %v1719
          %v1725 = vmul.f32 %v1724, %v1723
          %v1726 = vmul.f32 %v1719, %v1565
          %v1727 = vadd.f32 %v1725, %v1726
          %s1728 = sadd.s32 %s446, 5
          %v1729 = vstv %s1728
          %vm1730 = vcmp.lt.s32.totalorder %v1729, %v664
          %v1731 = vsel %vm1730, 1, 0
          %v1732 = vcvt.s32.f32 %v1731
          %1734 = vset.pattern.permute.xlu0 0
          %1735 = vperm.xlu0 %1734, %v1732
          %v1736 = vpop.permute.xlu0 %1735
          %v1738 = vmul.f32 %v1736, %v1727
          %v1739 = vsub.f32 1.0, %v1732
          %1741 = vset.pattern.permute.xlu0 0
          %1742 = vperm.xlu0 %1741, %v1739
          %v1743 = vpop.permute.xlu0 %1742
          %v1745 = vmul.f32 %v1743, %v1565
          %v1746 = vadd.f32 %v1738, %v1745
          %s1747 = scalar_lea.vmem [#allocation6], 40
          %1748 = vst [vmem:[%s1747] sm:$0xff] %v1738
          %s1749 = scalar_lea.vmem [#allocation5], 144
          %v1750 = vld [vmem:[%s1749] sm:$0xff]
          %v1751 = vld [vmem:[%s1749 + $0x8] sm:$0xff]
          %v1752 = vld [vmem:[%s1749 + $0x10] sm:$0xff]
          %v1753 = vld [vmem:[#allocation14] sm:$0xff]
          %v1754 = vld [vmem:[#allocation14 + $0x8] sm:$0xff]
          %v1755 = vld [vmem:[#allocation14 + $0x10] sm:$0xff]
          %v1756 = vld [vmem:[#allocation14 + $0x18] sm:$0xff]
          %v1757 = vld [vmem:[#allocation14 + $0x20] sm:$0xff]
          %v1758 = vld [vmem:[#allocation14 + $0x28] sm:$0xff]
          %v1759 = vld [vmem:[#allocation14 + $0x30] sm:$0xff]
          %v1760 = vld [vmem:[#allocation14 + $0x38] sm:$0xff]
          %v1761 = vld [vmem:[#allocation14 + $0x40] sm:$0xff]
          %v1762 = vld [vmem:[#allocation14 + $0x48] sm:$0xff]
          %v1763 = vld [vmem:[#allocation14 + $0x50] sm:$0xff]
          %v1764 = vld [vmem:[#allocation14 + $0x58] sm:$0xff]
          %v1765 = vld [vmem:[#allocation14 + $0x60] sm:$0xff]
          %v1766 = vld [vmem:[#allocation14 + $0x68] sm:$0xff]
          %v1767 = vld [vmem:[#allocation14 + $0x70] sm:$0xff]
          %v1768 = vld [vmem:[#allocation14 + $0x78] sm:$0xff]
          %v1769 = vld [vmem:[#allocation14 + $0x80] sm:$0xff]
          %v1770 = vld [vmem:[#allocation14 + $0x88] sm:$0xff]
          %v1771 = vld [vmem:[#allocation14 + $0x90] sm:$0xff]
          %v1772 = vld [vmem:[#allocation14 + $0x98] sm:$0xff]
          %v1773 = vld [vmem:[#allocation14 + $0xa0] sm:$0xff]
          %v1774 = vld [vmem:[#allocation14 + $0xa8] sm:$0xff]
          %v1775 = vld [vmem:[#allocation14 + $0xb0] sm:$0xff]
          %v1776 = vld [vmem:[#allocation14 + $0xb8] sm:$0xff]
          %v1777 = vld [vmem:[#allocation14 + $0xc0] sm:$0xff]
          %v1778 = vld [vmem:[#allocation14 + $0xc8] sm:$0xff]
          %v1779 = vld [vmem:[#allocation14 + $0xd0] sm:$0xff]
          %v1780 = vld [vmem:[#allocation14 + $0xd8] sm:$0xff]
          %v1781 = vld [vmem:[#allocation14 + $0xe0] sm:$0xff]
          %v1782 = vld [vmem:[#allocation14 + $0xe8] sm:$0xff]
          %v1783 = vld [vmem:[#allocation14 + $0xf0] sm:$0xff]
          %v1784 = vld [vmem:[#allocation14 + $0xf8] sm:$0xff]
          %v1785 = vld [vmem:[#allocation14 + $0x100] sm:$0xff]
          %v1786 = vld [vmem:[#allocation14 + $0x108] sm:$0xff]
          %v1787 = vld [vmem:[#allocation14 + $0x110] sm:$0xff]
          %v1788 = vld [vmem:[#allocation14 + $0x118] sm:$0xff]
          %v1789 = vld [vmem:[#allocation14 + $0x120] sm:$0xff]
          %v1790 = vld [vmem:[#allocation14 + $0x128] sm:$0xff]
          %v1791 = vld [vmem:[#allocation14 + $0x130] sm:$0xff]
          %v1792 = vld [vmem:[#allocation14 + $0x138] sm:$0xff]
          %v1793 = vld [vmem:[#allocation14 + $0x140] sm:$0xff]
          %v1794 = vld [vmem:[#allocation14 + $0x148] sm:$0xff]
          %v1795 = vld [vmem:[#allocation14 + $0x150] sm:$0xff]
          %v1796 = vld [vmem:[#allocation14 + $0x158] sm:$0xff]
          %v1797 = vld [vmem:[#allocation14 + $0x160] sm:$0xff]
          %v1798 = vld [vmem:[#allocation14 + $0x168] sm:$0xff]
          %v1799 = vld [vmem:[#allocation14 + $0x170] sm:$0xff]
          %v1800 = vld [vmem:[#allocation14 + $0x178] sm:$0xff]
          %1801 = vmatpush.msra.mxu0 %v1798
          %1802 = vmatpush.msra.mxu0 %v1795
          %1803 = vmatpush.msra.mxu0 %v1792
          %1804 = vmatpush.msra.mxu0 %v1789
          %1805 = vmatpush.msra.mxu0 %v1786
          %1806 = vmatpush.msra.mxu0 %v1783
          %1807 = vmatpush.msra.mxu0 %v1780
          %1808 = vmatpush.msra.mxu0 %v1777
          %1809 = vmatpush.msra.mxu0 %v1774
          %1810 = vmatpush.msra.mxu0 %v1771
          %1811 = vmatpush.msra.mxu0 %v1768
          %1812 = vmatpush.msra.mxu0 %v1765
          %1813 = vmatpush.msra.mxu0 %v1762
          %1814 = vmatpush.msra.mxu0 %v1759
          %1815 = vmatpush.msra.mxu0 %v1756
          %1816 = vmatpush.msra.mxu0 %v1753
          %1817 = vmatmul.f32.gmra.mxu0 %v1746
          %v1818 = vpop.f32.mrf.mxu0
          %v1819 = vadd.f32 0.0, %v1818
          %1820 = vdwg.mxu0
          %1821 = vmatpush.msra.mxu0 %v1799
          %1822 = vmatpush.msra.mxu0 %v1796
          %1823 = vmatpush.msra.mxu0 %v1793
          %1824 = vmatpush.msra.mxu0 %v1790
          %1825 = vmatpush.msra.mxu0 %v1787
          %1826 = vmatpush.msra.mxu0 %v1784
          %1827 = vmatpush.msra.mxu0 %v1781
          %1828 = vmatpush.msra.mxu0 %v1778
          %1829 = vmatpush.msra.mxu0 %v1775
          %1830 = vmatpush.msra.mxu0 %v1772
          %1831 = vmatpush.msra.mxu0 %v1769
          %1832 = vmatpush.msra.mxu0 %v1766
          %1833 = vmatpush.msra.mxu0 %v1763
          %1834 = vmatpush.msra.mxu0 %v1760
          %1835 = vmatpush.msra.mxu0 %v1757
          %1836 = vmatpush.msra.mxu0 %v1754
          %1837 = vmatmul.f32.gmra.mxu0 %v1746
          %v1838 = vpop.f32.mrf.mxu0
          %v1839 = vadd.f32 0.0, %v1838
          %1840 = vdwg.mxu0
          %1841 = vmatpush.msra.mxu0 %v1800
          %1842 = vmatpush.msra.mxu0 %v1797
          %1843 = vmatpush.msra.mxu0 %v1794
          %1844 = vmatpush.msra.mxu0 %v1791
          %1845 = vmatpush.msra.mxu0 %v1788
          %1846 = vmatpush.msra.mxu0 %v1785
          %1847 = vmatpush.msra.mxu0 %v1782
          %1848 = vmatpush.msra.mxu0 %v1779
          %1849 = vmatpush.msra.mxu0 %v1776
          %1850 = vmatpush.msra.mxu0 %v1773
          %1851 = vmatpush.msra.mxu0 %v1770
          %1852 = vmatpush.msra.mxu0 %v1767
          %1853 = vmatpush.msra.mxu0 %v1764
          %1854 = vmatpush.msra.mxu0 %v1761
          %1855 = vmatpush.msra.mxu0 %v1758
          %1856 = vmatpush.msra.mxu0 %v1755
          %1857 = vmatmul.f32.gmra.mxu0 %v1746
          %v1858 = vpop.f32.mrf.mxu0
          %v1859 = vadd.f32 0.0, %v1858
          %1860 = vdwg.mxu0
          %v1861 = vadd.f32 %v1750, %v1819
          %v1862 = vadd.f32 %v1751, %v1839
          %v1863 = vxor.u32 %v1861, 2147483648
          %v1864 = vxor.u32 %v1862, 2147483648
          %v1865 = vmul.f32 %v1863, 1.442695
          %v1866 = vpow.pop %v1865
          %v1867 = vmul.f32 %v1864, 1.442695
          %v1868 = vpow.pop %v1867
          %v1869 = vadd.f32 %v1866, 1.0
          %v1870 = vadd.f32 %v1868, 1.0
          %v1871 = vrcp.pop %v1869
          %v1872 = vmul.f32 %v1869, %v1871
          %v1873 = vsub.f32 1.0, %v1872
          %v1874 = vmul.f32 %v1871, %v1873
          %v1875 = vadd.f32 %v1871, %v1874
          %vm1876 = vweird.f32 %v1869
          %vm1877 = vweird.f32 %v1871
          %vm1878 = vmor %vm1876, %vm1877
          %v1879 = vsel %vm1878, %v1871, %v1875
          %v1880 = vand.u32 2147483647, %v1869
          %vm1881 = vcmp.eq.f32.partialorder %v1880, 8.507059e+37
          %v1882 = vand.u32 %v1869, 2147483648
          %v1883 = vor.u32 1.1754944e-38, %v1882
          %v1884 = vsel %vm1881, %v1883, %v1879
          %v1885 = vmul.f32 1.0, %v1884
          %v1886 = vrcp.pop %v1870
          %v1887 = vmul.f32 %v1870, %v1886
          %v1888 = vsub.f32 1.0, %v1887
          %v1889 = vmul.f32 %v1886, %v1888
          %v1890 = vadd.f32 %v1886, %v1889
          %vm1891 = vweird.f32 %v1870
          %vm1892 = vweird.f32 %v1886
          %vm1893 = vmor %vm1891, %vm1892
          %v1894 = vsel %vm1893, %v1886, %v1890
          %v1895 = vand.u32 2147483647, %v1870
          %vm1896 = vcmp.eq.f32.partialorder %v1895, 8.507059e+37
          %v1897 = vand.u32 %v1870, 2147483648
          %v1898 = vor.u32 1.1754944e-38, %v1897
          %v1899 = vsel %vm1896, %v1898, %v1894
          %v1900 = vmul.f32 1.0, %v1899
          %v1901 = vadd.f32 %v1859, %v662
          %v1902 = vmul.f32 %v1885, %v1901
          %v1903 = vadd.f32 %v1752, %v1902
          %v1904 = vtanh.pop %v1903
          %v1905 = vsub.f32 1.0, %v1900
          %v1906 = vmul.f32 %v1905, %v1904
          %v1907 = vmul.f32 %v1900, %v1746
          %v1908 = vadd.f32 %v1906, %v1907
          %s1909 = sadd.s32 %s446, 6
          %v1910 = vstv %s1909
          %vm1911 = vcmp.lt.s32.totalorder %v1910, %v664
          %v1912 = vsel %vm1911, 1, 0
          %v1913 = vcvt.s32.f32 %v1912
          %1915 = vset.pattern.permute.xlu0 0
          %1916 = vperm.xlu0 %1915, %v1913
          %v1917 = vpop.permute.xlu0 %1916
          %v1919 = vmul.f32 %v1917, %v1908
          %v1920 = vsub.f32 1.0, %v1913
          %1922 = vset.pattern.permute.xlu0 0
          %1923 = vperm.xlu0 %1922, %v1920
          %v1924 = vpop.permute.xlu0 %1923
          %v1926 = vmul.f32 %v1924, %v1746
          %v1927 = vadd.f32 %v1919, %v1926
          %s1928 = scalar_lea.vmem [#allocation6], 48
          %1929 = vst [vmem:[%s1928] sm:$0xff] %v1919
          %s1930 = scalar_lea.vmem [#allocation5], 168
          %v1931 = vld [vmem:[%s1930] sm:$0xff]
          %v1932 = vld [vmem:[%s1930 + $0x8] sm:$0xff]
          %v1933 = vld [vmem:[%s1930 + $0x10] sm:$0xff]
          %v1934 = vld [vmem:[#allocation14] sm:$0xff]
          %v1935 = vld [vmem:[#allocation14 + $0x8] sm:$0xff]
          %v1936 = vld [vmem:[#allocation14 + $0x10] sm:$0xff]
          %v1937 = vld [vmem:[#allocation14 + $0x18] sm:$0xff]
          %v1938 = vld [vmem:[#allocation14 + $0x20] sm:$0xff]
          %v1939 = vld [vmem:[#allocation14 + $0x28] sm:$0xff]
          %v1940 = vld [vmem:[#allocation14 + $0x30] sm:$0xff]
          %v1941 = vld [vmem:[#allocation14 + $0x38] sm:$0xff]
          %v1942 = vld [vmem:[#allocation14 + $0x40] sm:$0xff]
          %v1943 = vld [vmem:[#allocation14 + $0x48] sm:$0xff]
          %v1944 = vld [vmem:[#allocation14 + $0x50] sm:$0xff]
          %v1945 = vld [vmem:[#allocation14 + $0x58] sm:$0xff]
          %v1946 = vld [vmem:[#allocation14 + $0x60] sm:$0xff]
          %v1947 = vld [vmem:[#allocation14 + $0x68] sm:$0xff]
          %v1948 = vld [vmem:[#allocation14 + $0x70] sm:$0xff]
          %v1949 = vld [vmem:[#allocation14 + $0x78] sm:$0xff]
          %v1950 = vld [vmem:[#allocation14 + $0x80] sm:$0xff]
          %v1951 = vld [vmem:[#allocation14 + $0x88] sm:$0xff]
          %v1952 = vld [vmem:[#allocation14 + $0x90] sm:$0xff]
          %v1953 = vld [vmem:[#allocation14 + $0x98] sm:$0xff]
          %v1954 = vld [vmem:[#allocation14 + $0xa0] sm:$0xff]
          %v1955 = vld [vmem:[#allocation14 + $0xa8] sm:$0xff]
          %v1956 = vld [vmem:[#allocation14 + $0xb0] sm:$0xff]
          %v1957 = vld [vmem:[#allocation14 + $0xb8] sm:$0xff]
          %v1958 = vld [vmem:[#allocation14 + $0xc0] sm:$0xff]
          %v1959 = vld [vmem:[#allocation14 + $0xc8] sm:$0xff]
          %v1960 = vld [vmem:[#allocation14 + $0xd0] sm:$0xff]
          %v1961 = vld [vmem:[#allocation14 + $0xd8] sm:$0xff]
          %v1962 = vld [vmem:[#allocation14 + $0xe0] sm:$0xff]
          %v1963 = vld [vmem:[#allocation14 + $0xe8] sm:$0xff]
          %v1964 = vld [vmem:[#allocation14 + $0xf0] sm:$0xff]
          %v1965 = vld [vmem:[#allocation14 + $0xf8] sm:$0xff]
          %v1966 = vld [vmem:[#allocation14 + $0x100] sm:$0xff]
          %v1967 = vld [vmem:[#allocation14 + $0x108] sm:$0xff]
          %v1968 = vld [vmem:[#allocation14 + $0x110] sm:$0xff]
          %v1969 = vld [vmem:[#allocation14 + $0x118] sm:$0xff]
          %v1970 = vld [vmem:[#allocation14 + $0x120] sm:$0xff]
          %v1971 = vld [vmem:[#allocation14 + $0x128] sm:$0xff]
          %v1972 = vld [vmem:[#allocation14 + $0x130] sm:$0xff]
          %v1973 = vld [vmem:[#allocation14 + $0x138] sm:$0xff]
          %v1974 = vld [vmem:[#allocation14 + $0x140] sm:$0xff]
          %v1975 = vld [vmem:[#allocation14 + $0x148] sm:$0xff]
          %v1976 = vld [vmem:[#allocation14 + $0x150] sm:$0xff]
          %v1977 = vld [vmem:[#allocation14 + $0x158] sm:$0xff]
          %v1978 = vld [vmem:[#allocation14 + $0x160] sm:$0xff]
          %v1979 = vld [vmem:[#allocation14 + $0x168] sm:$0xff]
          %v1980 = vld [vmem:[#allocation14 + $0x170] sm:$0xff]
          %v1981 = vld [vmem:[#allocation14 + $0x178] sm:$0xff]
          %1982 = vmatpush.msra.mxu0 %v1979
          %1983 = vmatpush.msra.mxu0 %v1976
          %1984 = vmatpush.msra.mxu0 %v1973
          %1985 = vmatpush.msra.mxu0 %v1970
          %1986 = vmatpush.msra.mxu0 %v1967
          %1987 = vmatpush.msra.mxu0 %v1964
          %1988 = vmatpush.msra.mxu0 %v1961
          %1989 = vmatpush.msra.mxu0 %v1958
          %1990 = vmatpush.msra.mxu0 %v1955
          %1991 = vmatpush.msra.mxu0 %v1952
          %1992 = vmatpush.msra.mxu0 %v1949
          %1993 = vmatpush.msra.mxu0 %v1946
          %1994 = vmatpush.msra.mxu0 %v1943
          %1995 = vmatpush.msra.mxu0 %v1940
          %1996 = vmatpush.msra.mxu0 %v1937
          %1997 = vmatpush.msra.mxu0 %v1934
          %1998 = vmatmul.f32.gmra.mxu0 %v1927
          %v1999 = vpop.f32.mrf.mxu0
          %v2000 = vadd.f32 0.0, %v1999
          %2001 = vdwg.mxu0
          %2002 = vmatpush.msra.mxu0 %v1980
          %2003 = vmatpush.msra.mxu0 %v1977
          %2004 = vmatpush.msra.mxu0 %v1974
          %2005 = vmatpush.msra.mxu0 %v1971
          %2006 = vmatpush.msra.mxu0 %v1968
          %2007 = vmatpush.msra.mxu0 %v1965
          %2008 = vmatpush.msra.mxu0 %v1962
          %2009 = vmatpush.msra.mxu0 %v1959
          %2010 = vmatpush.msra.mxu0 %v1956
          %2011 = vmatpush.msra.mxu0 %v1953
          %2012 = vmatpush.msra.mxu0 %v1950
          %2013 = vmatpush.msra.mxu0 %v1947
          %2014 = vmatpush.msra.mxu0 %v1944
          %2015 = vmatpush.msra.mxu0 %v1941
          %2016 = vmatpush.msra.mxu0 %v1938
          %2017 = vmatpush.msra.mxu0 %v1935
          %2018 = vmatmul.f32.gmra.mxu0 %v1927
          %v2019 = vpop.f32.mrf.mxu0
          %v2020 = vadd.f32 0.0, %v2019
          %2021 = vdwg.mxu0
          %2022 = vmatpush.msra.mxu0 %v1981
          %2023 = vmatpush.msra.mxu0 %v1978
          %2024 = vmatpush.msra.mxu0 %v1975
          %2025 = vmatpush.msra.mxu0 %v1972
          %2026 = vmatpush.msra.mxu0 %v1969
          %2027 = vmatpush.msra.mxu0 %v1966
          %2028 = vmatpush.msra.mxu0 %v1963
          %2029 = vmatpush.msra.mxu0 %v1960
          %2030 = vmatpush.msra.mxu0 %v1957
          %2031 = vmatpush.msra.mxu0 %v1954
          %2032 = vmatpush.msra.mxu0 %v1951
          %2033 = vmatpush.msra.mxu0 %v1948
          %2034 = vmatpush.msra.mxu0 %v1945
          %2035 = vmatpush.msra.mxu0 %v1942
          %2036 = vmatpush.msra.mxu0 %v1939
          %2037 = vmatpush.msra.mxu0 %v1936
          %2038 = vmatmul.f32.gmra.mxu0 %v1927
          %v2039 = vpop.f32.mrf.mxu0
          %v2040 = vadd.f32 0.0, %v2039
          %2041 = vdwg.mxu0
          %v2042 = vadd.f32 %v1931, %v2000
          %v2043 = vadd.f32 %v1932, %v2020
          %v2044 = vxor.u32 %v2042, 2147483648
          %v2045 = vxor.u32 %v2043, 2147483648
          %v2046 = vmul.f32 %v2044, 1.442695
          %v2047 = vpow.pop %v2046
          %v2048 = vmul.f32 %v2045, 1.442695
          %v2049 = vpow.pop %v2048
          %v2050 = vadd.f32 %v2047, 1.0
          %v2051 = vadd.f32 %v2049, 1.0
          %v2052 = vrcp.pop %v2050
          %v2053 = vmul.f32 %v2050, %v2052
          %v2054 = vsub.f32 1.0, %v2053
          %v2055 = vmul.f32 %v2052, %v2054
          %v2056 = vadd.f32 %v2052, %v2055
          %vm2057 = vweird.f32 %v2050
          %vm2058 = vweird.f32 %v2052
          %vm2059 = vmor %vm2057, %vm2058
          %v2060 = vsel %vm2059, %v2052, %v2056
          %v2061 = vand.u32 2147483647, %v2050
          %vm2062 = vcmp.eq.f32.partialorder %v2061, 8.507059e+37
          %v2063 = vand.u32 %v2050, 2147483648
          %v2064 = vor.u32 1.1754944e-38, %v2063
          %v2065 = vsel %vm2062, %v2064, %v2060
          %v2066 = vmul.f32 1.0, %v2065
          %v2067 = vrcp.pop %v2051
          %v2068 = vmul.f32 %v2051, %v2067
          %v2069 = vsub.f32 1.0, %v2068
          %v2070 = vmul.f32 %v2067, %v2069
          %v2071 = vadd.f32 %v2067, %v2070
          %vm2072 = vweird.f32 %v2051
          %vm2073 = vweird.f32 %v2067
          %vm2074 = vmor %vm2072, %vm2073
          %v2075 = vsel %vm2074, %v2067, %v2071
          %v2076 = vand.u32 2147483647, %v2051
          %vm2077 = vcmp.eq.f32.partialorder %v2076, 8.507059e+37
          %v2078 = vand.u32 %v2051, 2147483648
          %v2079 = vor.u32 1.1754944e-38, %v2078
          %v2080 = vsel %vm2077, %v2079, %v2075
          %v2081 = vmul.f32 1.0, %v2080
          %v2082 = vadd.f32 %v2040, %v662
          %v2083 = vmul.f32 %v2066, %v2082
          %v2084 = vadd.f32 %v1933, %v2083
          %v2085 = vtanh.pop %v2084
          %v2086 = vsub.f32 1.0, %v2081
          %v2087 = vmul.f32 %v2086, %v2085
          %v2088 = vmul.f32 %v2081, %v1927
          %v2089 = vadd.f32 %v2087, %v2088
          %s2090 = sadd.s32 %s446, 7
          %v2091 = vstv %s2090
          %vm2092 = vcmp.lt.s32.totalorder %v2091, %v664
          %v2093 = vsel %vm2092, 1, 0
          %v2094 = vcvt.s32.f32 %v2093
          %2096 = vset.pattern.permute.xlu0 0
          %2097 = vperm.xlu0 %2096, %v2094
          %v2098 = vpop.permute.xlu0 %2097
          %v2100 = vmul.f32 %v2098, %v2089
          %v2101 = vsub.f32 1.0, %v2094
          %2103 = vset.pattern.permute.xlu0 0
          %2104 = vperm.xlu0 %2103, %v2101
          %v2105 = vpop.permute.xlu0 %2104
          %v2107 = vmul.f32 %v2105, %v1927
          %v2108 = vadd.f32 %v2100, %v2107
          %s2109 = scalar_lea.vmem [#allocation6], 56
          %2110 = vst [vmem:[%s2109] sm:$0xff] %v2100
          %2111 = vst [vmem:[#allocation2] sm:$0xff] %v2108
          %v2112 = vld [vmem:[#allocation6] sm:$0xff]
          %v2113 = vld [vmem:[#allocation6 + $0x8] sm:$0xff]
          %v2114 = vld [vmem:[#allocation6 + $0x10] sm:$0xff]
          %v2115 = vld [vmem:[#allocation6 + $0x18] sm:$0xff]
          %v2116 = vld [vmem:[#allocation6 + $0x20] sm:$0xff]
          %v2117 = vld [vmem:[#allocation6 + $0x28] sm:$0xff]
          %v2118 = vld [vmem:[#allocation6 + $0x30] sm:$0xff]
          %v2119 = vld [vmem:[#allocation6 + $0x38] sm:$0xff]
          %vm2120 = vcmp.ne.f32.partialorder %v2112, 0.0
          %vm2121 = vcmp.ne.f32.partialorder %v2113, 0.0
          %vm2122 = vcmp.ne.f32.partialorder %v2114, 0.0
          %vm2123 = vcmp.ne.f32.partialorder %v2115, 0.0
          %vm2124 = vcmp.ne.f32.partialorder %v2116, 0.0
          %vm2125 = vcmp.ne.f32.partialorder %v2117, 0.0
          %vm2126 = vcmp.ne.f32.partialorder %v2118, 0.0
          %vm2127 = vcmp.ne.f32.partialorder %v2119, 0.0
          %v2128 = vsel %vm2120, 1, 0
          %v2129 = vsel %vm2121, 1, 0
          %v2130 = vsel %vm2122, 1, 0
          %v2131 = vsel %vm2123, 1, 0
          %v2132 = vsel %vm2124, 1, 0
          %v2133 = vsel %vm2125, 1, 0
          %v2134 = vsel %vm2126, 1, 0
          %v2135 = vsel %vm2127, 1, 0
          %v2136 = vcvt.s32.f32 %v2128
          %v2137 = vcvt.s32.f32 %v2129
          %v2138 = vcvt.s32.f32 %v2130
          %v2139 = vcvt.s32.f32 %v2131
          %v2140 = vcvt.s32.f32 %v2132
          %v2141 = vcvt.s32.f32 %v2133
          %v2142 = vcvt.s32.f32 %v2134
          %v2143 = vcvt.s32.f32 %v2135
          %v2144 = vmul.f32 %v2112, %v2136
          %v2145 = vmul.f32 %v2113, %v2137
          %v2146 = vmul.f32 %v2114, %v2138
          %v2147 = vmul.f32 %v2115, %v2139
          %v2148 = vmul.f32 %v2116, %v2140
          %v2149 = vmul.f32 %v2117, %v2141
          %v2150 = vmul.f32 %v2118, %v2142
          %v2151 = vmul.f32 %v2119, %v2143
          %2152 = vadd.xlane.f32.xlu0 %v2136
          %v2153 = vpop.xlane.xlu0 %2152
          %2154 = vadd.xlane.f32.xlu0 %v2137
          %v2155 = vpop.xlane.xlu0 %2154
          %2156 = vadd.xlane.f32.xlu0 %v2138
          %v2157 = vpop.xlane.xlu0 %2156
          %2158 = vadd.xlane.f32.xlu0 %v2139
          %v2159 = vpop.xlane.xlu0 %2158
          %2160 = vadd.xlane.f32.xlu0 %v2140
          %v2161 = vpop.xlane.xlu0 %2160
          %2162 = vadd.xlane.f32.xlu0 %v2141
          %v2163 = vpop.xlane.xlu0 %2162
          %2164 = vadd.xlane.f32.xlu0 %v2142
          %v2165 = vpop.xlane.xlu0 %2164
          %2166 = vadd.xlane.f32.xlu0 %v2143
          %v2167 = vpop.xlane.xlu0 %2166
          %vm2168 = vcmp.gt.f32.partialorder %v2153, 0.0
          %vm2169 = vcmp.gt.f32.partialorder %v2155, 0.0
          %vm2170 = vcmp.gt.f32.partialorder %v2157, 0.0
          %vm2171 = vcmp.gt.f32.partialorder %v2159, 0.0
          %vm2172 = vcmp.gt.f32.partialorder %v2161, 0.0
          %vm2173 = vcmp.gt.f32.partialorder %v2163, 0.0
          %vm2174 = vcmp.gt.f32.partialorder %v2165, 0.0
          %vm2175 = vcmp.gt.f32.partialorder %v2167, 0.0
          %v2176 = vsel %vm2168, 1, 0
          %v2177 = vsel %vm2169, 1, 0
          %v2178 = vsel %vm2170, 1, 0
          %v2179 = vsel %vm2171, 1, 0
          %v2180 = vsel %vm2172, 1, 0
          %v2181 = vsel %vm2173, 1, 0
          %v2182 = vsel %vm2174, 1, 0
          %v2183 = vsel %vm2175, 1, 0
          %v2184 = vcvt.s32.f32 %v2176
          %v2185 = vcvt.s32.f32 %v2177
          %v2186 = vcvt.s32.f32 %v2178
          %v2187 = vcvt.s32.f32 %v2179
          %v2188 = vcvt.s32.f32 %v2180
          %v2189 = vcvt.s32.f32 %v2181
          %v2190 = vcvt.s32.f32 %v2182
          %v2191 = vcvt.s32.f32 %v2183
          %v2192 = vld [vmem:[#allocation15] sm:$0xff]
          %v2193 = vld [vmem:[#allocation15 + $0x8] sm:$0xff]
          %v2194 = vld [vmem:[#allocation15 + $0x10] sm:$0xff]
          %v2195 = vld [vmem:[#allocation15 + $0x18] sm:$0xff]
          %v2196 = vld [vmem:[#allocation15 + $0x20] sm:$0xff]
          %v2197 = vld [vmem:[#allocation15 + $0x28] sm:$0xff]
          %v2198 = vld [vmem:[#allocation15 + $0x30] sm:$0xff]
          %v2199 = vld [vmem:[#allocation15 + $0x38] sm:$0xff]
          %v2200 = vld [vmem:[#allocation15 + $0x40] sm:$0xff]
          %v2201 = vld [vmem:[#allocation15 + $0x48] sm:$0xff]
          %v2202 = vld [vmem:[#allocation15 + $0x50] sm:$0xff]
          %v2203 = vld [vmem:[#allocation15 + $0x58] sm:$0xff]
          %v2204 = vld [vmem:[#allocation15 + $0x60] sm:$0xff]
          %v2205 = vld [vmem:[#allocation15 + $0x68] sm:$0xff]
          %v2206 = vld [vmem:[#allocation15 + $0x70] sm:$0xff]
          %v2207 = vld [vmem:[#allocation15 + $0x78] sm:$0xff]
          %v2208 = vld [vmem:[%s8] sm:$0x1]
          %v2210 = vperm.slane %v2208, 0
          %2212 = vmatpush.msra.mxu0 %v2207
          %2213 = vmatpush.msra.mxu0 %v2206
          %2214 = vmatpush.msra.mxu0 %v2205
          %2215 = vmatpush.msra.mxu0 %v2204
          %2216 = vmatpush.msra.mxu0 %v2203
          %2217 = vmatpush.msra.mxu0 %v2202
          %2218 = vmatpush.msra.mxu0 %v2201
          %2219 = vmatpush.msra.mxu0 %v2200
          %2220 = vmatpush.msra.mxu0 %v2199
          %2221 = vmatpush.msra.mxu0 %v2198
          %2222 = vmatpush.msra.mxu0 %v2197
          %2223 = vmatpush.msra.mxu0 %v2196
          %2224 = vmatpush.msra.mxu0 %v2195
          %2225 = vmatpush.msra.mxu0 %v2194
          %2226 = vmatpush.msra.mxu0 %v2193
          %2227 = vmatpush.msra.mxu0 %v2192
          %2228 = vmatmul.f32.gmra.mxu0 %v2144
          %v2229 = vpop.f32.mrf.mxu0
          %v2230 = vadd.f32 %v2210, %v2229
          %2231 = vmatmul.f32.gmra.mxu0 %v2145
          %v2232 = vpop.f32.mrf.mxu0
          %v2233 = vadd.f32 %v2210, %v2232
          %2234 = vmatmul.f32.gmra.mxu0 %v2146
          %v2235 = vpop.f32.mrf.mxu0
          %v2236 = vadd.f32 %v2210, %v2235
          %2237 = vmatmul.f32.gmra.mxu0 %v2147
          %v2238 = vpop.f32.mrf.mxu0
          %v2239 = vadd.f32 %v2210, %v2238
          %2240 = vmatmul.f32.gmra.mxu0 %v2148
          %v2241 = vpop.f32.mrf.mxu0
          %v2242 = vadd.f32 %v2210, %v2241
          %2243 = vmatmul.f32.gmra.mxu0 %v2149
          %v2244 = vpop.f32.mrf.mxu0
          %v2245 = vadd.f32 %v2210, %v2244
          %2246 = vmatmul.f32.gmra.mxu0 %v2150
          %v2247 = vpop.f32.mrf.mxu0
          %v2248 = vadd.f32 %v2210, %v2247
          %2249 = vmatmul.f32.gmra.mxu0 %v2151
          %v2250 = vpop.f32.mrf.mxu0
          %v2251 = vadd.f32 %v2210, %v2250
          %2252 = vdwg.mxu0
          %v2253 = vtanh.pop %v2230
          %v2254 = vtanh.pop %v2233
          %v2255 = vtanh.pop %v2236
          %v2256 = vtanh.pop %v2239
          %v2257 = vtanh.pop %v2242
          %v2258 = vtanh.pop %v2245
          %v2259 = vtanh.pop %v2248
          %v2260 = vtanh.pop %v2251
          %v2261 = vld [vmem:[%s9] sm:$0x1]
          %v2263 = vperm.slane %v2261, 0
          %v2265 = vmul.f32 %v2253, %v2263
          %v2266 = vmul.f32 %v2254, %v2263
          %v2267 = vmul.f32 %v2255, %v2263
          %v2268 = vmul.f32 %v2256, %v2263
          %v2269 = vmul.f32 %v2257, %v2263
          %v2270 = vmul.f32 %v2258, %v2263
          %v2271 = vmul.f32 %v2259, %v2263
          %v2272 = vmul.f32 %v2260, %v2263
          %2273 = vadd.xlane.f32.xlu0 %v2265
          %v2274 = vpop.xlane.xlu0 %2273
          %2275 = vadd.xlane.f32.xlu0 %v2266
          %v2276 = vpop.xlane.xlu0 %2275
          %2277 = vadd.xlane.f32.xlu0 %v2267
          %v2278 = vpop.xlane.xlu0 %2277
          %2279 = vadd.xlane.f32.xlu0 %v2268
          %v2280 = vpop.xlane.xlu0 %2279
          %2281 = vadd.xlane.f32.xlu0 %v2269
          %v2282 = vpop.xlane.xlu0 %2281
          %2283 = vadd.xlane.f32.xlu0 %v2270
          %v2284 = vpop.xlane.xlu0 %2283
          %2285 = vadd.xlane.f32.xlu0 %v2271
          %v2286 = vpop.xlane.xlu0 %2285
          %2287 = vadd.xlane.f32.xlu0 %v2272
          %v2288 = vpop.xlane.xlu0 %2287
          %v2289 = vmul.f32 %v2274, 1.442695
          %v2290 = vpow.pop %v2289
          %v2291 = vmul.f32 %v2276, 1.442695
          %v2292 = vpow.pop %v2291
          %v2293 = vmul.f32 %v2278, 1.442695
          %v2294 = vpow.pop %v2293
          %v2295 = vmul.f32 %v2280, 1.442695
          %v2296 = vpow.pop %v2295
          %v2297 = vmul.f32 %v2282, 1.442695
          %v2298 = vpow.pop %v2297
          %v2299 = vmul.f32 %v2284, 1.442695
          %v2300 = vpow.pop %v2299
          %v2301 = vmul.f32 %v2286, 1.442695
          %v2302 = vpow.pop %v2301
          %v2303 = vmul.f32 %v2288, 1.442695
          %v2304 = vpow.pop %v2303
          %v2305 = vmul.f32 %v2290, %v2184
          %v2306 = vmul.f32 %v2292, %v2185
          %v2307 = vmul.f32 %v2294, %v2186
          %v2308 = vmul.f32 %v2296, %v2187
          %v2309 = vmul.f32 %v2298, %v2188
          %v2310 = vmul.f32 %v2300, %v2189
          %v2311 = vmul.f32 %v2302, %v2190
          %v2312 = vmul.f32 %v2304, %v2191
          %v2313 = vld [vmem:[#allocation3] sm:$0xff]
          %v2314 = vmul.f32 %v2144, %v2305
          %v2315 = vmul.f32 %v2145, %v2306
          %v2316 = vmul.f32 %v2146, %v2307
          %v2317 = vmul.f32 %v2147, %v2308
          %v2318 = vmul.f32 %v2148, %v2309
          %v2319 = vmul.f32 %v2149, %v2310
          %v2320 = vmul.f32 %v2150, %v2311
          %v2321 = vmul.f32 %v2151, %v2312
          %v2322 = vadd.f32 %v2314, %v2315
          %v2323 = vadd.f32 %v2322, %v2316
          %v2324 = vadd.f32 %v2323, %v2317
          %v2325 = vadd.f32 %v2324, %v2318
          %v2326 = vadd.f32 %v2325, %v2319
          %v2327 = vadd.f32 %v2326, %v2320
          %v2328 = vadd.f32 %v2327, %v2321
          %v2329 = vadd.f32 %v2313, %v2328
          %2330 = vst [vmem:[#allocation3] sm:$0xff] %v2329
          %v2331 = vld [vmem:[#allocation4] sm:$0xff]
          %v2332 = vadd.f32 %v2305, %v2306
          %v2333 = vadd.f32 %v2332, %v2307
          %v2334 = vadd.f32 %v2333, %v2308
          %v2335 = vadd.f32 %v2334, %v2309
          %v2336 = vadd.f32 %v2335, %v2310
          %v2337 = vadd.f32 %v2336, %v2311
          %v2338 = vadd.f32 %v2337, %v2312
          %v2339 = vadd.f32 %v2331, %v2338
          %vm2340 = vcmask 7168
          %2341 = vst.msk [vmem:[#allocation4] sm:$0xff] %vm2340, %v2339
        $region80: #{tpu_custom_call.1} parent=55 // pred_fallthru
          _
        %p2342 = scmp.eq.s32.totalorder %s42, 1
        // Predicated region
        $region81: #{tpu_custom_call.1} parent=55 // pred_check
          %p2343 = pneg %p2342
        $region82: #{tpu_custom_call.1} parent=55 // pred_check_branch
          %2345 = sbr.rel (%p2343) target = $region84
        $region83: #{tpu_custom_call.1} parent=55 // pred_region
          %v2346 = vld [vmem:[#allocation3] sm:$0xff]
          %v2347 = vld [vmem:[#allocation4] sm:$0xff]
          %v2348 = vadd.f32 %v2347, 1e-10
          %2350 = vset.pattern.permute.xlu0 0
          %2351 = vperm.xlu0 %2350, %v2348
          %v2352 = vpop.permute.xlu0 %2351
          %v2354 = vrcp.pop %v2352
          %v2355 = vmul.f32 %v2352, %v2354
          %v2356 = vsub.f32 1.0, %v2355
          %v2357 = vmul.f32 %v2354, %v2356
          %v2358 = vadd.f32 %v2354, %v2357
          %vm2359 = vweird.f32 %v2352
          %vm2360 = vweird.f32 %v2354
          %vm2361 = vmor %vm2359, %vm2360
          %v2362 = vsel %vm2361, %v2354, %v2358
          %v2363 = vand.u32 2147483647, %v2352
          %vm2364 = vcmp.eq.f32.partialorder %v2363, 8.507059e+37
          %v2365 = vand.u32 %v2352, 2147483648
          %v2366 = vor.u32 1.1754944e-38, %v2365
          %v2367 = vsel %vm2364, %v2366, %v2362
          %v2368 = vmul.f32 %v2346, %v2367
          %2369 = vst [vmem:[%s440] sm:$0xff] %v2368
        $region84: #{tpu_custom_call.1} parent=55 // pred_fallthru
          _
        %s2370 = sand.u32 %s258, 1
        %s2371 = scalar_lea.sflag [#allocation11], %s2370
        %s2372 = sand.u32 %s258, 1
        %s2373 = smul.addr %s2372, 8
        %s2374 = scalar_lea.vmem [#allocation17], %s2373
        // Predicated region
        $region85: #{tpu_custom_call.1} parent=55 // pred_check
          %p2375 = pneg %p268
        $region86: #{tpu_custom_call.1} parent=55 // pred_check_branch
          %2377 = sbr.rel (%p2375) target = $region88
        $region87: #{tpu_custom_call.1} parent=55 // pred_region
          %2379 = vsyncadd %s2371, 0
          %s2380 = smul.addr %s41, 8
          %s2381 = scalar_lea.hbm %s10, %s2380
          %s2383 = sshll.u32 %s2374, 4
          %s2384 = int_to_ptr.vmem [resolvable:$true] %s2383
          %s2385 = sshll.u32 %s2381, 4
          %s2386 = int_to_ptr.hbm [resolvable:$true] %s2385
          %2388 = dma.vmem_to_hbm [thread:$0]  %s2384, 128, %s2386, %s2371
        $region88: #{tpu_custom_call.1} parent=55 // pred_fallthru
          _
      $region56: #{tpu_custom_call.1} parent=5 // pred_fallthru
        _
      %p2389 = scmp.le.s32.totalorder 2, %s32
      // Predicated region
      $region89: #{tpu_custom_call.1} parent=5 // pred_check
        %p2390 = pneg %p2389
      $region90: #{tpu_custom_call.1} parent=5 // pred_check_branch
        %2392 = sbr.rel (%p2390) target = $region92
      $region91: #{tpu_custom_call.1} parent=5 // pred_region
        %s2393 = ssub.s32 %s32, 2
        // Predicated region
        $region93: #{tpu_custom_call.1} parent=91 // pred_check
          %p2394 = pneg %p274
        $region94: #{tpu_custom_call.1} parent=91 // pred_check_branch
          %2396 = sbr.rel (%p2394) target = $region96
        $region95: #{tpu_custom_call.1} parent=91 // pred_region
          %s2397 = sand.u32 %s259, 1
          %s2398 = scalar_lea.sflag [#allocation11], %s2397
          %s2399 = sand.u32 %s259, 1
          %s2400 = smul.addr %s2399, 8
          %s2401 = scalar_lea.vmem [#allocation17], %s2400
          %2403 = dma.done %s2398, 128
        $region96: #{tpu_custom_call.1} parent=91 // pred_fallthru
          _
      $region92: #{tpu_custom_call.1} parent=5 // pred_fallthru
        _
    $region6: #{tpu_custom_call.1} parent=1 // loop_footer
      %s36 = sadd.s32 1, %s32
    $region7: #{tpu_custom_call.1} parent=1 // loop_footer_branch
      %31 = sbr.rel target = $region3
    $region8: #{tpu_custom_call.1} parent=1 // loop_exit
      _
    %2404 = vsyncpa [#allocation10], 1
    %s2405 = scalar_lea.sflag [#allocation10], 1
    %2406 = vsyncpa %s2405, 1
    %2407 = vsyncpa [#allocation13], 1
    %2408 = vsyncpa [#allocation16], 1
    %2409 = vsyncpa [#allocation11], 1
    %s2410 = scalar_lea.sflag [#allocation11], 1
    %2411 = vsyncpa %s2410, 1

</llo_original>
